<compile_context>
chip_gen: v7x
topology: tpu7x:2x2x1
jax: 0.10.0
libtpu: 0.0.40
codegen_flags: <defaults>
</compile_context>

<pallas_src>
import functools

import jax
import jax.numpy as jnp
from jax import lax
from jax.experimental import pallas as pl
from jax.experimental.pallas import tpu as pltpu

# ----------------------------- config (small) --------------------------------
HIDDEN = 32          # args.hidden_size
NUM_HEADS = 4        # nn.MultiheadAttention(num_heads=4)
HEAD_DIM = HIDDEN // NUM_HEADS
OBS_DIM = 10         # get_shape_from_obs_space(obs_space)[0]
ACT_N = 5            # action_space.n
ACTOR_HID = 64       # self.actor_hidden_size
BATCH = 2
NUM_AGENTS = 3

# fused head output slab: [dw1 | db1 | dw2 | db2] padded to a multiple of 128
HEADS_TOTAL = OBS_DIM * ACTOR_HID + ACTOR_HID + ACTOR_HID * ACT_N + ACT_N  # 1029
HEADS_PAD = ((HEADS_TOTAL + 127) // 128) * 128                             # 1152

_VMEM = pl.BlockSpec(memory_space=pltpu.MemorySpace.VMEM)


# ------------------------------ kernel ----------------------------------------
def _layernorm(x, g, b, eps=1e-5):
    mu = jnp.mean(x, axis=-1, keepdims=True)
    var = jnp.mean(jnp.square(x - mu), axis=-1, keepdims=True)
    return (x - mu) * lax.rsqrt(var + eps) * g + b


def hypernet_fused_kernel(x_ref,
                          ln0g, ln0b, w1, b1, ln1g, ln1b, w2, b2, ln2g, ln2b,
                          wqkv, bqkv, wo, bo,
                          wheads, bheads,
                          out_ref, *, batch, num_agents):
    """Full HyperNetwork forward (history_obs=None branch) in one kernel.

    x: (B*A, obs_dim) -> out: (B, HEADS_PAD) lane-dense slab.
    bf16 weights / activations on the big matmuls, f32 accumulation; LayerNorm
    and softmax stay f32.
    """
    n = batch * num_agents

    # ---- MLPBase encoder: LN -> Linear+ReLU+LN -> Linear+ReLU+LN (f32 LN) ----
    x = x_ref[...]
    h = _layernorm(x, ln0g[...], ln0b[...])
    h = jnp.dot(h.astype(jnp.bfloat16), w1[...],
                preferred_element_type=jnp.float32) + b1[...]
    h = jnp.maximum(h, 0.0)
    h = _layernorm(h, ln1g[...], ln1b[...])
    h = jnp.dot(h.astype(jnp.bfloat16), w2[...],
                preferred_element_type=jnp.float32) + b2[...]
    h = jnp.maximum(h, 0.0)
    h = _layernorm(h, ln2g[...], ln2b[...])                    # (B*A, H) f32

    # ---- multi-head self-attention over agents (fused QKV projection) -------
    # softmax scale is already folded into the wq/bq columns of wqkv/bqkv.
    qkv = jnp.dot(h.astype(jnp.bfloat16), wqkv[...],
                  preferred_element_type=jnp.float32) + bqkv[...]   # (B*A, 3H)
    q3 = qkv[:, 0 * HIDDEN:1 * HIDDEN].reshape(batch, num_agents, HIDDEN)
    k3 = qkv[:, 1 * HIDDEN:2 * HIDDEN].reshape(batch, num_agents, HIDDEN)
    v3 = qkv[:, 2 * HIDDEN:3 * HIDDEN].reshape(batch, num_agents, HIDDEN)

    wo_full = wo[...]
    out_acc = jnp.zeros((n, HIDDEN), dtype=jnp.float32)
    for hd in range(NUM_HEADS):          # static loop; tiny per-head matmuls
        lo, hi = hd * HEAD_DIM, (hd + 1) * HEAD_DIM
        s = jnp.einsum('bqd,bkd->bqk', q3[:, :, lo:hi], k3[:, :, lo:hi],
                       preferred_element_type=jnp.float32)          # (B, A, A)
        s = s - jnp.max(s, axis=-1, keepdims=True)
        p = jnp.exp(s)
        p = p * pl.reciprocal(jnp.sum(p, axis=-1, keepdims=True), approx=True)
        ctx = jnp.einsum('bqk,bkd->bqd', p, v3[:, :, lo:hi],
                         preferred_element_type=jnp.float32)        # (B, A, dh)
        # concat-of-heads followed by out_proj == sum of per-head partials
        out_acc = out_acc + jnp.dot(ctx.reshape(n, HEAD_DIM),
                                    wo_full[lo:hi, :],
                                    preferred_element_type=jnp.float32)
    attn = (out_acc + bo[...]).reshape(batch, num_agents, HIDDEN)
    # == attn_output.permute(1, 0, 2).mean(dim=1)
    hyper = jnp.mean(attn, axis=1)                               # (B, H)

    # ---- four hyper-net heads fused into one lane-dense output slab ---------
    out_ref[...] = jnp.dot(hyper.astype(jnp.bfloat16), wheads[...],
                           preferred_element_type=jnp.float32) + bheads[...]


# ------------------------------ parameters ------------------------------------
def _linear_params(key, din, dout):
    # torch.nn.Linear default init: U(-1/sqrt(din), 1/sqrt(din))
    bound = 1.0 / (din ** 0.5)
    kw, kb = jax.random.split(key)
    w = jax.random.uniform(kw, (din, dout), jnp.float32, -bound, bound)
    b = jax.random.uniform(kb, (1, dout), jnp.float32, -bound, bound)
    return w, b


def init_params(key):
    ks = jax.random.split(key, 10)
    p = {}
    p['ln0'] = (jnp.ones((1, OBS_DIM), jnp.float32),
                jnp.zeros((1, OBS_DIM), jnp.float32))
    p['fc1'] = _linear_params(ks[0], OBS_DIM, HIDDEN)
    p['ln1'] = (jnp.ones((1, HIDDEN), jnp.float32),
                jnp.zeros((1, HIDDEN), jnp.float32))
    p['fc2'] = _linear_params(ks[1], HIDDEN, HIDDEN)
    p['ln2'] = (jnp.ones((1, HIDDEN), jnp.float32),
                jnp.zeros((1, HIDDEN), jnp.float32))
    p['wq'] = _linear_params(ks[2], HIDDEN, HIDDEN)
    p['wk'] = _linear_params(ks[3], HIDDEN, HIDDEN)
    p['wv'] = _linear_params(ks[4], HIDDEN, HIDDEN)
    p['wo'] = _linear_params(ks[5], HIDDEN, HIDDEN)
    p['dw1'] = _linear_params(ks[6], HIDDEN, OBS_DIM * ACTOR_HID)
    p['db1'] = _linear_params(ks[7], HIDDEN, ACTOR_HID)
    p['dw2'] = _linear_params(ks[8], HIDDEN, ACTOR_HID * ACT_N)
    p['db2'] = _linear_params(ks[9], HIDDEN, ACT_N)
    return p


def fuse_params(params):
    """One-time prep: fold scale into wq, fuse QKV, fuse+pad the 4 head weights,
    and cast large matmul weights to bf16 (biases / LN / wo stay f32)."""
    scale = 1.0 / (HEAD_DIM ** 0.5)
    wq, bq = params['wq']
    wk, bk = params['wk']
    wv, bv = params['wv']
    wqkv = jnp.concatenate([wq * scale, wk, wv], axis=1).astype(jnp.bfloat16)
    bqkv = jnp.concatenate([bq * scale, bk, bv], axis=1)

    w_cat = jnp.concatenate([params['dw1'][0], params['db1'][0],
                             params['dw2'][0], params['db2'][0]], axis=1)
    b_cat = jnp.concatenate([params['dw1'][1], params['db1'][1],
                             params['dw2'][1], params['db2'][1]], axis=1)
    pad = HEADS_PAD - w_cat.shape[1]
    wheads = jnp.pad(w_cat, ((0, 0), (0, pad))).astype(jnp.bfloat16)
    bheads = jnp.pad(b_cat, ((0, 0), (0, pad)))

    return {
        'ln0': params['ln0'],
        'fc1': (params['fc1'][0].astype(jnp.bfloat16), params['fc1'][1]),
        'ln1': params['ln1'],
        'fc2': (params['fc2'][0].astype(jnp.bfloat16), params['fc2'][1]),
        'ln2': params['ln2'],
        'wqkv': wqkv, 'bqkv': bqkv,
        'wo': params['wo'][0], 'bo': params['wo'][1],   # tiny; keep f32
        'wheads': wheads, 'bheads': bheads,
    }


# ------------------------------ forward (wrapper) ------------------------------
@jax.jit
def hypernetwork_forward(fused, obs, rnn_states):
    if obs.ndim == 2:
        obs = obs[:, None, :]
    B, A, D = obs.shape
    x2 = obs.reshape(B * A, D).astype(jnp.float32)

    kernel = functools.partial(hypernet_fused_kernel, batch=B, num_agents=A)
    slab = pl.pallas_call(
        kernel,
        out_shape=jax.ShapeDtypeStruct((B, HEADS_PAD), jnp.float32),
        in_specs=[_VMEM] * 17,
        out_specs=_VMEM,
    )(x2,
      *fused['ln0'], *fused['fc1'], *fused['ln1'], *fused['fc2'], *fused['ln2'],
      fused['wqkv'], fused['bqkv'], fused['wo'], fused['bo'],
      fused['wheads'], fused['bheads'])

    o1 = OBS_DIM * ACTOR_HID
    o2 = o1 + ACTOR_HID
    o3 = o2 + ACTOR_HID * ACT_N
    o4 = o3 + ACT_N
    delta_w1 = slab[:, :o1].reshape(B, OBS_DIM, ACTOR_HID)
    delta_b1 = slab[:, o1:o2]
    delta_w2 = slab[:, o2:o3].reshape(B, ACTOR_HID, ACT_N)
    delta_b2 = slab[:, o3:o4]
    # history_obs is None -> hyper_input = global_info; rnn_states unchanged.
    return delta_w1, delta_b1, delta_w2, delta_b2, rnn_states


# ------------------------------ pure-JAX reference -----------------------------
def _reference_forward(params, obs, rnn_states):
    def ln(v, g, b, eps=1e-5):
        mu = v.mean(-1, keepdims=True)
        var = ((v - mu) ** 2).mean(-1, keepdims=True)
        return (v - mu) / jnp.sqrt(var + eps) * g + b

    if obs.ndim == 2:
        obs = obs[:, None, :]
    B, A, D = obs.shape
    x = obs.reshape(B * A, D).astype(jnp.float32)
    h = ln(x, *params['ln0'])
    h = jnp.maximum(h @ params['fc1'][0] + params['fc1'][1], 0.0)
    h = ln(h, *params['ln1'])
    h = jnp.maximum(h @ params['fc2'][0] + params['fc2'][1], 0.0)
    h = ln(h, *params['ln2'])

    q = (h @ params['wq'][0] + params['wq'][1]).reshape(B, A, HIDDEN)
    k = (h @ params['wk'][0] + params['wk'][1]).reshape(B, A, HIDDEN)
    v = (h @ params['wv'][0] + params['wv'][1]).reshape(B, A, HIDDEN)
    qh = q.reshape(B, A, NUM_HEADS, HEAD_DIM).transpose(0, 2, 1, 3)
    kh = k.reshape(B, A, NUM_HEADS, HEAD_DIM).transpose(0, 2, 1, 3)
    vh = v.reshape(B, A, NUM_HEADS, HEAD_DIM).transpose(0, 2, 1, 3)
    s = jnp.einsum('bhqd,bhkd->bhqk', qh, kh) / (HEAD_DIM ** 0.5)
    p = jax.nn.softmax(s, axis=-1)
    ctx = jnp.einsum('bhqk,bhkd->bhqd', p, vh)
    ctx = ctx.transpose(0, 2, 1, 3).reshape(B * A, HIDDEN)
    attn = (ctx @ params['wo'][0] + params['wo'][1]).reshape(B, A, HIDDEN)
    hyper = attn.mean(axis=1)

    dw1 = (hyper @ params['dw1'][0] + params['dw1'][1]).reshape(B, OBS_DIM, ACTOR_HID)
    db1 = hyper @ params['db1'][0] + params['db1'][1]
    dw2 = (hyper @ params['dw2'][0] + params['dw2'][1]).reshape(B, ACTOR_HID, ACT_N)
    db2 = hyper @ params['db2'][0] + params['db2'][1]
    return dw1, db1, dw2, db2, rnn_states


# ------------------------------ main --------------------------------------------
if __name__ == "__main__":
    key = jax.random.PRNGKey(0)
    k_param, k_obs, k_rnn = jax.random.split(key, 3)

    params = init_params(k_param)
    fused = fuse_params(params)
    obs = jax.random.normal(k_obs, (BATCH, NUM_AGENTS, OBS_DIM), jnp.float32)
    rnn_states = jax.random.normal(k_rnn, (BATCH, HIDDEN), jnp.float32)

    outs = hypernetwork_forward(fused, obs, rnn_states)
    outs = jax.block_until_ready(outs)

    refs = _reference_forward(params, obs, rnn_states)
    # bf16 MXU inputs (f32 accumulation) -> slightly looser tolerance than pure f32.
    for got, want in zip(outs, refs):
        assert got.shape == want.shape and got.dtype == want.dtype
        assert jnp.allclose(got, want, rtol=3e-2, atol=3e-2), "mismatch vs reference"

    print("KERNEL_OK")
</pallas_src>

<mosaic_0001>
module attributes {stable_mosaic.version = 11 : i64} {
  func.func @hypernet_fused_kernel(%arg0: memref<6x10xf32, #tpu.memory_space<vmem>>, %arg1: memref<1x10xf32, #tpu.memory_space<vmem>>, %arg2: memref<1x10xf32, #tpu.memory_space<vmem>>, %arg3: memref<10x32xbf16, #tpu.memory_space<vmem>>, %arg4: memref<1x32xf32, #tpu.memory_space<vmem>>, %arg5: memref<1x32xf32, #tpu.memory_space<vmem>>, %arg6: memref<1x32xf32, #tpu.memory_space<vmem>>, %arg7: memref<32x32xbf16, #tpu.memory_space<vmem>>, %arg8: memref<1x32xf32, #tpu.memory_space<vmem>>, %arg9: memref<1x32xf32, #tpu.memory_space<vmem>>, %arg10: memref<1x32xf32, #tpu.memory_space<vmem>>, %arg11: memref<32x96xbf16, #tpu.memory_space<vmem>>, %arg12: memref<1x96xf32, #tpu.memory_space<vmem>>, %arg13: memref<32x32xf32, #tpu.memory_space<vmem>>, %arg14: memref<1x32xf32, #tpu.memory_space<vmem>>, %arg15: memref<32x1152xbf16, #tpu.memory_space<vmem>>, %arg16: memref<1x1152xf32, #tpu.memory_space<vmem>>, %arg17: memref<2x1152xf32, #tpu.memory_space<vmem>>) attributes {dimension_semantics = [], scalar_prefetch = 0 : i64, scratch_operands = 0 : i64, tpu.core_type = #tpu.core_type<tc>} {
    %c0 = arith.constant 0 : index
    %c0_0 = arith.constant 0 : index
    %0 = vector.load %arg0[%c0, %c0_0] : memref<6x10xf32, #tpu.memory_space<vmem>>, vector<6x10xf32>
    %c0_1 = arith.constant 0 : index
    %c0_2 = arith.constant 0 : index
    %1 = vector.load %arg1[%c0_1, %c0_2] : memref<1x10xf32, #tpu.memory_space<vmem>>, vector<1x10xf32>
    %c0_3 = arith.constant 0 : index
    %c0_4 = arith.constant 0 : index
    %2 = vector.load %arg2[%c0_3, %c0_4] : memref<1x10xf32, #tpu.memory_space<vmem>>, vector<1x10xf32>
    %cst = arith.constant dense<0.000000e+00> : vector<6xf32>
    %3 = vector.multi_reduction <add>, %0, %cst [1] : vector<6x10xf32> to vector<6xf32>
    %4 = vector.shape_cast %3 : vector<6xf32> to vector<6x1xf32>
    %cst_5 = arith.constant 1.000000e+01 : f32
    %5 = vector.broadcast %cst_5 : f32 to vector<6x1xf32>
    %6 = arith.divf %4, %5 : vector<6x1xf32>
    %7 = vector.broadcast %6 : vector<6x1xf32> to vector<6x10xf32>
    %8 = arith.subf %0, %7 : vector<6x10xf32>
    %9 = arith.mulf %8, %8 : vector<6x10xf32>
    %cst_6 = arith.constant dense<0.000000e+00> : vector<6xf32>
    %10 = vector.multi_reduction <add>, %9, %cst_6 [1] : vector<6x10xf32> to vector<6xf32>
    %11 = vector.shape_cast %10 : vector<6xf32> to vector<6x1xf32>
    %cst_7 = arith.constant 1.000000e+01 : f32
    %12 = vector.broadcast %cst_7 : f32 to vector<6x1xf32>
    %13 = arith.divf %11, %12 : vector<6x1xf32>
    %14 = vector.broadcast %6 : vector<6x1xf32> to vector<6x10xf32>
    %15 = arith.subf %0, %14 : vector<6x10xf32>
    %cst_8 = arith.constant 9.99999974E-6 : f32
    %16 = vector.broadcast %cst_8 : f32 to vector<6x1xf32>
    %17 = arith.addf %13, %16 : vector<6x1xf32>
    %18 = math.rsqrt %17 : vector<6x1xf32>
    %19 = vector.broadcast %18 : vector<6x1xf32> to vector<6x10xf32>
    %20 = arith.mulf %15, %19 : vector<6x10xf32>
    %21 = vector.broadcast %1 : vector<1x10xf32> to vector<6x10xf32>
    %22 = arith.mulf %20, %21 : vector<6x10xf32>
    %23 = vector.broadcast %2 : vector<1x10xf32> to vector<6x10xf32>
    %24 = arith.addf %22, %23 : vector<6x10xf32>
    %25 = arith.truncf %24 : vector<6x10xf32> to vector<6x10xbf16>
    %c0_9 = arith.constant 0 : index
    %c0_10 = arith.constant 0 : index
    %26 = vector.load %arg3[%c0_9, %c0_10] : memref<10x32xbf16, #tpu.memory_space<vmem>>, vector<10x32xbf16>
    %cst_11 = arith.constant dense<0.000000e+00> : vector<6x32xf32>
    %27 = tpu.matmul %25, %26, %cst_11 {dimension_numbers = #tpu.dot_dimension_numbers<[1], [0], [0], [1], [0, 0, 1, 1], [], []>} : vector<6x10xbf16>, vector<10x32xbf16>, vector<6x32xf32> -> vector<6x32xf32>
    %c0_12 = arith.constant 0 : index
    %c0_13 = arith.constant 0 : index
    %28 = vector.load %arg4[%c0_12, %c0_13] : memref<1x32xf32, #tpu.memory_space<vmem>>, vector<1x32xf32>
    %29 = vector.broadcast %28 : vector<1x32xf32> to vector<6x32xf32>
    %30 = arith.addf %27, %29 : vector<6x32xf32>
    %cst_14 = arith.constant 0.000000e+00 : f32
    %31 = vector.broadcast %cst_14 : f32 to vector<6x32xf32>
    %32 = arith.maximumf %30, %31 : vector<6x32xf32>
    %c0_15 = arith.constant 0 : index
    %c0_16 = arith.constant 0 : index
    %33 = vector.load %arg5[%c0_15, %c0_16] : memref<1x32xf32, #tpu.memory_space<vmem>>, vector<1x32xf32>
    %c0_17 = arith.constant 0 : index
    %c0_18 = arith.constant 0 : index
    %34 = vector.load %arg6[%c0_17, %c0_18] : memref<1x32xf32, #tpu.memory_space<vmem>>, vector<1x32xf32>
    %cst_19 = arith.constant dense<0.000000e+00> : vector<6xf32>
    %35 = vector.multi_reduction <add>, %32, %cst_19 [1] : vector<6x32xf32> to vector<6xf32>
    %36 = vector.shape_cast %35 : vector<6xf32> to vector<6x1xf32>
    %cst_20 = arith.constant 3.200000e+01 : f32
    %37 = vector.broadcast %cst_20 : f32 to vector<6x1xf32>
    %38 = arith.divf %36, %37 : vector<6x1xf32>
    %39 = vector.broadcast %38 : vector<6x1xf32> to vector<6x32xf32>
    %40 = arith.subf %32, %39 : vector<6x32xf32>
    %41 = arith.mulf %40, %40 : vector<6x32xf32>
    %cst_21 = arith.constant dense<0.000000e+00> : vector<6xf32>
    %42 = vector.multi_reduction <add>, %41, %cst_21 [1] : vector<6x32xf32> to vector<6xf32>
    %43 = vector.shape_cast %42 : vector<6xf32> to vector<6x1xf32>
    %cst_22 = arith.constant 3.200000e+01 : f32
    %44 = vector.broadcast %cst_22 : f32 to vector<6x1xf32>
    %45 = arith.divf %43, %44 : vector<6x1xf32>
    %46 = vector.broadcast %38 : vector<6x1xf32> to vector<6x32xf32>
    %47 = arith.subf %32, %46 : vector<6x32xf32>
    %cst_23 = arith.constant 9.99999974E-6 : f32
    %48 = vector.broadcast %cst_23 : f32 to vector<6x1xf32>
    %49 = arith.addf %45, %48 : vector<6x1xf32>
    %50 = math.rsqrt %49 : vector<6x1xf32>
    %51 = vector.broadcast %50 : vector<6x1xf32> to vector<6x32xf32>
    %52 = arith.mulf %47, %51 : vector<6x32xf32>
    %53 = vector.broadcast %33 : vector<1x32xf32> to vector<6x32xf32>
    %54 = arith.mulf %52, %53 : vector<6x32xf32>
    %55 = vector.broadcast %34 : vector<1x32xf32> to vector<6x32xf32>
    %56 = arith.addf %54, %55 : vector<6x32xf32>
    %57 = arith.truncf %56 : vector<6x32xf32> to vector<6x32xbf16>
    %c0_24 = arith.constant 0 : index
    %c0_25 = arith.constant 0 : index
    %58 = vector.load %arg7[%c0_24, %c0_25] : memref<32x32xbf16, #tpu.memory_space<vmem>>, vector<32x32xbf16>
    %cst_26 = arith.constant dense<0.000000e+00> : vector<6x32xf32>
    %59 = tpu.matmul %57, %58, %cst_26 {dimension_numbers = #tpu.dot_dimension_numbers<[1], [0], [0], [1], [0, 0, 1, 1], [], []>} : vector<6x32xbf16>, vector<32x32xbf16>, vector<6x32xf32> -> vector<6x32xf32>
    %c0_27 = arith.constant 0 : index
    %c0_28 = arith.constant 0 : index
    %60 = vector.load %arg8[%c0_27, %c0_28] : memref<1x32xf32, #tpu.memory_space<vmem>>, vector<1x32xf32>
    %61 = vector.broadcast %60 : vector<1x32xf32> to vector<6x32xf32>
    %62 = arith.addf %59, %61 : vector<6x32xf32>
    %cst_29 = arith.constant 0.000000e+00 : f32
    %63 = vector.broadcast %cst_29 : f32 to vector<6x32xf32>
    %64 = arith.maximumf %62, %63 : vector<6x32xf32>
    %c0_30 = arith.constant 0 : index
    %c0_31 = arith.constant 0 : index
    %65 = vector.load %arg9[%c0_30, %c0_31] : memref<1x32xf32, #tpu.memory_space<vmem>>, vector<1x32xf32>
    %c0_32 = arith.constant 0 : index
    %c0_33 = arith.constant 0 : index
    %66 = vector.load %arg10[%c0_32, %c0_33] : memref<1x32xf32, #tpu.memory_space<vmem>>, vector<1x32xf32>
    %cst_34 = arith.constant dense<0.000000e+00> : vector<6xf32>
    %67 = vector.multi_reduction <add>, %64, %cst_34 [1] : vector<6x32xf32> to vector<6xf32>
    %68 = vector.shape_cast %67 : vector<6xf32> to vector<6x1xf32>
    %cst_35 = arith.constant 3.200000e+01 : f32
    %69 = vector.broadcast %cst_35 : f32 to vector<6x1xf32>
    %70 = arith.divf %68, %69 : vector<6x1xf32>
    %71 = vector.broadcast %70 : vector<6x1xf32> to vector<6x32xf32>
    %72 = arith.subf %64, %71 : vector<6x32xf32>
    %73 = arith.mulf %72, %72 : vector<6x32xf32>
    %cst_36 = arith.constant dense<0.000000e+00> : vector<6xf32>
    %74 = vector.multi_reduction <add>, %73, %cst_36 [1] : vector<6x32xf32> to vector<6xf32>
    %75 = vector.shape_cast %74 : vector<6xf32> to vector<6x1xf32>
    %cst_37 = arith.constant 3.200000e+01 : f32
    %76 = vector.broadcast %cst_37 : f32 to vector<6x1xf32>
    %77 = arith.divf %75, %76 : vector<6x1xf32>
    %78 = vector.broadcast %70 : vector<6x1xf32> to vector<6x32xf32>
    %79 = arith.subf %64, %78 : vector<6x32xf32>
    %cst_38 = arith.constant 9.99999974E-6 : f32
    %80 = vector.broadcast %cst_38 : f32 to vector<6x1xf32>
    %81 = arith.addf %77, %80 : vector<6x1xf32>
    %82 = math.rsqrt %81 : vector<6x1xf32>
    %83 = vector.broadcast %82 : vector<6x1xf32> to vector<6x32xf32>
    %84 = arith.mulf %79, %83 : vector<6x32xf32>
    %85 = vector.broadcast %65 : vector<1x32xf32> to vector<6x32xf32>
    %86 = arith.mulf %84, %85 : vector<6x32xf32>
    %87 = vector.broadcast %66 : vector<1x32xf32> to vector<6x32xf32>
    %88 = arith.addf %86, %87 : vector<6x32xf32>
    %89 = arith.truncf %88 : vector<6x32xf32> to vector<6x32xbf16>
    %c0_39 = arith.constant 0 : index
    %c0_40 = arith.constant 0 : index
    %90 = vector.load %arg11[%c0_39, %c0_40] : memref<32x96xbf16, #tpu.memory_space<vmem>>, vector<32x96xbf16>
    %cst_41 = arith.constant dense<0.000000e+00> : vector<6x96xf32>
    %91 = tpu.matmul %89, %90, %cst_41 {dimension_numbers = #tpu.dot_dimension_numbers<[1], [0], [0], [1], [0, 0, 1, 1], [], []>} : vector<6x32xbf16>, vector<32x96xbf16>, vector<6x96xf32> -> vector<6x96xf32>
    %c0_42 = arith.constant 0 : index
    %c0_43 = arith.constant 0 : index
    %92 = vector.load %arg12[%c0_42, %c0_43] : memref<1x96xf32, #tpu.memory_space<vmem>>, vector<1x96xf32>
    %93 = vector.broadcast %92 : vector<1x96xf32> to vector<6x96xf32>
    %94 = arith.addf %91, %93 : vector<6x96xf32>
    %95 = vector.extract_strided_slice %94 {offsets = [0, 0], sizes = [6, 32], strides = [1, 1]} : vector<6x96xf32> to vector<6x32xf32>
    %96 = vector.shape_cast %95 : vector<6x32xf32> to vector<2x3x32xf32>
    %97 = vector.extract_strided_slice %94 {offsets = [0, 32], sizes = [6, 32], strides = [1, 1]} : vector<6x96xf32> to vector<6x32xf32>
    %98 = vector.shape_cast %97 : vector<6x32xf32> to vector<2x3x32xf32>
    %99 = vector.extract_strided_slice %94 {offsets = [0, 64], sizes = [6, 32], strides = [1, 1]} : vector<6x96xf32> to vector<6x32xf32>
    %100 = vector.shape_cast %99 : vector<6x32xf32> to vector<2x3x32xf32>
    %c0_44 = arith.constant 0 : index
    %c0_45 = arith.constant 0 : index
    %101 = vector.load %arg13[%c0_44, %c0_45] : memref<32x32xf32, #tpu.memory_space<vmem>>, vector<32x32xf32>
    %cst_46 = arith.constant 0.000000e+00 : f32
    %102 = vector.broadcast %cst_46 : f32 to vector<6x32xf32>
    %103 = vector.extract_strided_slice %96 {offsets = [0, 0, 0], sizes = [2, 3, 8], strides = [1, 1, 1]} : vector<2x3x32xf32> to vector<2x3x8xf32>
    %104 = vector.extract_strided_slice %98 {offsets = [0, 0, 0], sizes = [2, 3, 8], strides = [1, 1, 1]} : vector<2x3x32xf32> to vector<2x3x8xf32>
    "tpu.trace_start"() <{level = 10 : i32, message = "bqd,bkd->bqk"}> : () -> ()
    %cst_47 = arith.constant dense<0.000000e+00> : vector<2x3x3xf32>
    %105 = tpu.matmul %103, %104, %cst_47 {dimension_numbers = #tpu.dot_dimension_numbers<[2], [2], [1], [1], [0, 0, 0, 1, 1, 1], [0], [0]>} : vector<2x3x8xf32>, vector<2x3x8xf32>, vector<2x3x3xf32> -> vector<2x3x3xf32>
    "tpu.trace_stop"() : () -> ()
    %cst_48 = arith.constant dense<0xFF800000> : vector<2x3xf32>
    %106 = vector.multi_reduction <maximumf>, %105, %cst_48 [2] : vector<2x3x3xf32> to vector<2x3xf32>
    %107 = vector.shape_cast %106 : vector<2x3xf32> to vector<2x3x1xf32>
    %108 = vector.broadcast %107 : vector<2x3x1xf32> to vector<2x3x3xf32>
    %109 = arith.subf %105, %108 : vector<2x3x3xf32>
    %110 = math.exp %109 : vector<2x3x3xf32>
    %cst_49 = arith.constant dense<0.000000e+00> : vector<2x3xf32>
    %111 = vector.multi_reduction <add>, %110, %cst_49 [2] : vector<2x3x3xf32> to vector<2x3xf32>
    %112 = vector.shape_cast %111 : vector<2x3xf32> to vector<2x3x1xf32>
    %113 = tpu.reciprocal %112 {approx = true} : vector<2x3x1xf32> -> vector<2x3x1xf32>
    %114 = vector.broadcast %113 : vector<2x3x1xf32> to vector<2x3x3xf32>
    %115 = arith.mulf %110, %114 : vector<2x3x3xf32>
    %116 = vector.extract_strided_slice %100 {offsets = [0, 0, 0], sizes = [2, 3, 8], strides = [1, 1, 1]} : vector<2x3x32xf32> to vector<2x3x8xf32>
    "tpu.trace_start"() <{level = 10 : i32, message = "bqk,bkd->bqd"}> : () -> ()
    %cst_50 = arith.constant dense<0.000000e+00> : vector<2x3x8xf32>
    %117 = tpu.matmul %115, %116, %cst_50 {dimension_numbers = #tpu.dot_dimension_numbers<[2], [1], [1], [2], [0, 0, 0, 1, 1, 2], [0], [0]>} : vector<2x3x3xf32>, vector<2x3x8xf32>, vector<2x3x8xf32> -> vector<2x3x8xf32>
    "tpu.trace_stop"() : () -> ()
    %118 = vector.shape_cast %117 : vector<2x3x8xf32> to vector<6x8xf32>
    %119 = vector.extract_strided_slice %101 {offsets = [0, 0], sizes = [8, 32], strides = [1, 1]} : vector<32x32xf32> to vector<8x32xf32>
    %cst_51 = arith.constant dense<0.000000e+00> : vector<6x32xf32>
    %120 = tpu.matmul %118, %119, %cst_51 {dimension_numbers = #tpu.dot_dimension_numbers<[1], [0], [0], [1], [0, 0, 1, 1], [], []>} : vector<6x8xf32>, vector<8x32xf32>, vector<6x32xf32> -> vector<6x32xf32>
    %121 = arith.addf %102, %120 : vector<6x32xf32>
    %122 = vector.extract_strided_slice %96 {offsets = [0, 0, 8], sizes = [2, 3, 8], strides = [1, 1, 1]} : vector<2x3x32xf32> to vector<2x3x8xf32>
    %123 = vector.extract_strided_slice %98 {offsets = [0, 0, 8], sizes = [2, 3, 8], strides = [1, 1, 1]} : vector<2x3x32xf32> to vector<2x3x8xf32>
    "tpu.trace_start"() <{level = 10 : i32, message = "bqd,bkd->bqk"}> : () -> ()
    %cst_52 = arith.constant dense<0.000000e+00> : vector<2x3x3xf32>
    %124 = tpu.matmul %122, %123, %cst_52 {dimension_numbers = #tpu.dot_dimension_numbers<[2], [2], [1], [1], [0, 0, 0, 1, 1, 1], [0], [0]>} : vector<2x3x8xf32>, vector<2x3x8xf32>, vector<2x3x3xf32> -> vector<2x3x3xf32>
    "tpu.trace_stop"() : () -> ()
    %cst_53 = arith.constant dense<0xFF800000> : vector<2x3xf32>
    %125 = vector.multi_reduction <maximumf>, %124, %cst_53 [2] : vector<2x3x3xf32> to vector<2x3xf32>
    %126 = vector.shape_cast %125 : vector<2x3xf32> to vector<2x3x1xf32>
    %127 = vector.broadcast %126 : vector<2x3x1xf32> to vector<2x3x3xf32>
    %128 = arith.subf %124, %127 : vector<2x3x3xf32>
    %129 = math.exp %128 : vector<2x3x3xf32>
    %cst_54 = arith.constant dense<0.000000e+00> : vector<2x3xf32>
    %130 = vector.multi_reduction <add>, %129, %cst_54 [2] : vector<2x3x3xf32> to vector<2x3xf32>
    %131 = vector.shape_cast %130 : vector<2x3xf32> to vector<2x3x1xf32>
    %132 = tpu.reciprocal %131 {approx = true} : vector<2x3x1xf32> -> vector<2x3x1xf32>
    %133 = vector.broadcast %132 : vector<2x3x1xf32> to vector<2x3x3xf32>
    %134 = arith.mulf %129, %133 : vector<2x3x3xf32>
    %135 = vector.extract_strided_slice %100 {offsets = [0, 0, 8], sizes = [2, 3, 8], strides = [1, 1, 1]} : vector<2x3x32xf32> to vector<2x3x8xf32>
    "tpu.trace_start"() <{level = 10 : i32, message = "bqk,bkd->bqd"}> : () -> ()
    %cst_55 = arith.constant dense<0.000000e+00> : vector<2x3x8xf32>
    %136 = tpu.matmul %134, %135, %cst_55 {dimension_numbers = #tpu.dot_dimension_numbers<[2], [1], [1], [2], [0, 0, 0, 1, 1, 2], [0], [0]>} : vector<2x3x3xf32>, vector<2x3x8xf32>, vector<2x3x8xf32> -> vector<2x3x8xf32>
    "tpu.trace_stop"() : () -> ()
    %137 = vector.shape_cast %136 : vector<2x3x8xf32> to vector<6x8xf32>
    %138 = vector.extract_strided_slice %101 {offsets = [8, 0], sizes = [8, 32], strides = [1, 1]} : vector<32x32xf32> to vector<8x32xf32>
    %cst_56 = arith.constant dense<0.000000e+00> : vector<6x32xf32>
    %139 = tpu.matmul %137, %138, %cst_56 {dimension_numbers = #tpu.dot_dimension_numbers<[1], [0], [0], [1], [0, 0, 1, 1], [], []>} : vector<6x8xf32>, vector<8x32xf32>, vector<6x32xf32> -> vector<6x32xf32>
    %140 = arith.addf %121, %139 : vector<6x32xf32>
    %141 = vector.extract_strided_slice %96 {offsets = [0, 0, 16], sizes = [2, 3, 8], strides = [1, 1, 1]} : vector<2x3x32xf32> to vector<2x3x8xf32>
    %142 = vector.extract_strided_slice %98 {offsets = [0, 0, 16], sizes = [2, 3, 8], strides = [1, 1, 1]} : vector<2x3x32xf32> to vector<2x3x8xf32>
    "tpu.trace_start"() <{level = 10 : i32, message = "bqd,bkd->bqk"}> : () -> ()
    %cst_57 = arith.constant dense<0.000000e+00> : vector<2x3x3xf32>
    %143 = tpu.matmul %141, %142, %cst_57 {dimension_numbers = #tpu.dot_dimension_numbers<[2], [2], [1], [1], [0, 0, 0, 1, 1, 1], [0], [0]>} : vector<2x3x8xf32>, vector<2x3x8xf32>, vector<2x3x3xf32> -> vector<2x3x3xf32>
    "tpu.trace_stop"() : () -> ()
    %cst_58 = arith.constant dense<0xFF800000> : vector<2x3xf32>
    %144 = vector.multi_reduction <maximumf>, %143, %cst_58 [2] : vector<2x3x3xf32> to vector<2x3xf32>
    %145 = vector.shape_cast %144 : vector<2x3xf32> to vector<2x3x1xf32>
    %146 = vector.broadcast %145 : vector<2x3x1xf32> to vector<2x3x3xf32>
    %147 = arith.subf %143, %146 : vector<2x3x3xf32>
    %148 = math.exp %147 : vector<2x3x3xf32>
    %cst_59 = arith.constant dense<0.000000e+00> : vector<2x3xf32>
    %149 = vector.multi_reduction <add>, %148, %cst_59 [2] : vector<2x3x3xf32> to vector<2x3xf32>
    %150 = vector.shape_cast %149 : vector<2x3xf32> to vector<2x3x1xf32>
    %151 = tpu.reciprocal %150 {approx = true} : vector<2x3x1xf32> -> vector<2x3x1xf32>
    %152 = vector.broadcast %151 : vector<2x3x1xf32> to vector<2x3x3xf32>
    %153 = arith.mulf %148, %152 : vector<2x3x3xf32>
    %154 = vector.extract_strided_slice %100 {offsets = [0, 0, 16], sizes = [2, 3, 8], strides = [1, 1, 1]} : vector<2x3x32xf32> to vector<2x3x8xf32>
    "tpu.trace_start"() <{level = 10 : i32, message = "bqk,bkd->bqd"}> : () -> ()
    %cst_60 = arith.constant dense<0.000000e+00> : vector<2x3x8xf32>
    %155 = tpu.matmul %153, %154, %cst_60 {dimension_numbers = #tpu.dot_dimension_numbers<[2], [1], [1], [2], [0, 0, 0, 1, 1, 2], [0], [0]>} : vector<2x3x3xf32>, vector<2x3x8xf32>, vector<2x3x8xf32> -> vector<2x3x8xf32>
    "tpu.trace_stop"() : () -> ()
    %156 = vector.shape_cast %155 : vector<2x3x8xf32> to vector<6x8xf32>
    %157 = vector.extract_strided_slice %101 {offsets = [16, 0], sizes = [8, 32], strides = [1, 1]} : vector<32x32xf32> to vector<8x32xf32>
    %cst_61 = arith.constant dense<0.000000e+00> : vector<6x32xf32>
    %158 = tpu.matmul %156, %157, %cst_61 {dimension_numbers = #tpu.dot_dimension_numbers<[1], [0], [0], [1], [0, 0, 1, 1], [], []>} : vector<6x8xf32>, vector<8x32xf32>, vector<6x32xf32> -> vector<6x32xf32>
    %159 = arith.addf %140, %158 : vector<6x32xf32>
    %160 = vector.extract_strided_slice %96 {offsets = [0, 0, 24], sizes = [2, 3, 8], strides = [1, 1, 1]} : vector<2x3x32xf32> to vector<2x3x8xf32>
    %161 = vector.extract_strided_slice %98 {offsets = [0, 0, 24], sizes = [2, 3, 8], strides = [1, 1, 1]} : vector<2x3x32xf32> to vector<2x3x8xf32>
    "tpu.trace_start"() <{level = 10 : i32, message = "bqd,bkd->bqk"}> : () -> ()
    %cst_62 = arith.constant dense<0.000000e+00> : vector<2x3x3xf32>
    %162 = tpu.matmul %160, %161, %cst_62 {dimension_numbers = #tpu.dot_dimension_numbers<[2], [2], [1], [1], [0, 0, 0, 1, 1, 1], [0], [0]>} : vector<2x3x8xf32>, vector<2x3x8xf32>, vector<2x3x3xf32> -> vector<2x3x3xf32>
    "tpu.trace_stop"() : () -> ()
    %cst_63 = arith.constant dense<0xFF800000> : vector<2x3xf32>
    %163 = vector.multi_reduction <maximumf>, %162, %cst_63 [2] : vector<2x3x3xf32> to vector<2x3xf32>
    %164 = vector.shape_cast %163 : vector<2x3xf32> to vector<2x3x1xf32>
    %165 = vector.broadcast %164 : vector<2x3x1xf32> to vector<2x3x3xf32>
    %166 = arith.subf %162, %165 : vector<2x3x3xf32>
    %167 = math.exp %166 : vector<2x3x3xf32>
    %cst_64 = arith.constant dense<0.000000e+00> : vector<2x3xf32>
    %168 = vector.multi_reduction <add>, %167, %cst_64 [2] : vector<2x3x3xf32> to vector<2x3xf32>
    %169 = vector.shape_cast %168 : vector<2x3xf32> to vector<2x3x1xf32>
    %170 = tpu.reciprocal %169 {approx = true} : vector<2x3x1xf32> -> vector<2x3x1xf32>
    %171 = vector.broadcast %170 : vector<2x3x1xf32> to vector<2x3x3xf32>
    %172 = arith.mulf %167, %171 : vector<2x3x3xf32>
    %173 = vector.extract_strided_slice %100 {offsets = [0, 0, 24], sizes = [2, 3, 8], strides = [1, 1, 1]} : vector<2x3x32xf32> to vector<2x3x8xf32>
    "tpu.trace_start"() <{level = 10 : i32, message = "bqk,bkd->bqd"}> : () -> ()
    %cst_65 = arith.constant dense<0.000000e+00> : vector<2x3x8xf32>
    %174 = tpu.matmul %172, %173, %cst_65 {dimension_numbers = #tpu.dot_dimension_numbers<[2], [1], [1], [2], [0, 0, 0, 1, 1, 2], [0], [0]>} : vector<2x3x3xf32>, vector<2x3x8xf32>, vector<2x3x8xf32> -> vector<2x3x8xf32>
    "tpu.trace_stop"() : () -> ()
    %175 = vector.shape_cast %174 : vector<2x3x8xf32> to vector<6x8xf32>
    %176 = vector.extract_strided_slice %101 {offsets = [24, 0], sizes = [8, 32], strides = [1, 1]} : vector<32x32xf32> to vector<8x32xf32>
    %cst_66 = arith.constant dense<0.000000e+00> : vector<6x32xf32>
    %177 = tpu.matmul %175, %176, %cst_66 {dimension_numbers = #tpu.dot_dimension_numbers<[1], [0], [0], [1], [0, 0, 1, 1], [], []>} : vector<6x8xf32>, vector<8x32xf32>, vector<6x32xf32> -> vector<6x32xf32>
    %178 = arith.addf %159, %177 : vector<6x32xf32>
    %c0_67 = arith.constant 0 : index
    %c0_68 = arith.constant 0 : index
    %179 = vector.load %arg14[%c0_67, %c0_68] : memref<1x32xf32, #tpu.memory_space<vmem>>, vector<1x32xf32>
    %180 = vector.broadcast %179 : vector<1x32xf32> to vector<6x32xf32>
    %181 = arith.addf %178, %180 : vector<6x32xf32>
    %182 = vector.shape_cast %181 : vector<6x32xf32> to vector<2x3x32xf32>
    %cst_69 = arith.constant dense<0.000000e+00> : vector<2x32xf32>
    %183 = vector.multi_reduction <add>, %182, %cst_69 [1] : vector<2x3x32xf32> to vector<2x32xf32>
    %cst_70 = arith.constant 3.000000e+00 : f32
    %184 = vector.broadcast %cst_70 : f32 to vector<2x32xf32>
    %185 = arith.divf %183, %184 : vector<2x32xf32>
    %186 = arith.truncf %185 : vector<2x32xf32> to vector<2x32xbf16>
    %c0_71 = arith.constant 0 : index
    %c0_72 = arith.constant 0 : index
    %187 = vector.load %arg15[%c0_71, %c0_72] : memref<32x1152xbf16, #tpu.memory_space<vmem>>, vector<32x1152xbf16>
    %cst_73 = arith.constant dense<0.000000e+00> : vector<2x1152xf32>
    %188 = tpu.matmul %186, %187, %cst_73 {dimension_numbers = #tpu.dot_dimension_numbers<[1], [0], [0], [1], [0, 0, 1, 1], [], []>} : vector<2x32xbf16>, vector<32x1152xbf16>, vector<2x1152xf32> -> vector<2x1152xf32>
    %c0_74 = arith.constant 0 : index
    %c0_75 = arith.constant 0 : index
    %189 = vector.load %arg16[%c0_74, %c0_75] : memref<1x1152xf32, #tpu.memory_space<vmem>>, vector<1x1152xf32>
    %190 = vector.broadcast %189 : vector<1x1152xf32> to vector<2x1152xf32>
    %191 = arith.addf %188, %190 : vector<2x1152xf32>
    %c0_76 = arith.constant 0 : index
    %c0_77 = arith.constant 0 : index
    %192 = vector.load %arg17[%c0_76, %c0_77] : memref<2x1152xf32, #tpu.memory_space<vmem>>, vector<2x1152xf32>
    tpu.vector_store %arg17[%c0_76, %c0_77], %191 {strides = array<i32>} : memref<2x1152xf32, #tpu.memory_space<vmem>>, vector<2x1152xf32>,
    return
  }
}

</mosaic_0001>

<llo_original>
// kernel: hypernetwork_forward.1
$region0: #{hypernetwork_forward.1}
  #allocation0 [shape = 'u32[]', space=smem, size = 0x4, offset = 0x4, fixed_abs, tag = 'smem constant byte address 0x4 - core index']
  #allocation1 [shape = 'u32[144,128]{1,0:T(1,128)}', space=vmem, size = 0x12000, scoped, tag = 'internal scratch']
  %s0 = inlined_call_operand.vmem [shape: f32[6,10], index: 0, kind: input, shape index: {}]
  %s1 = inlined_call_operand.hbm [shape: f32[1,10], index: 1, kind: input, shape index: {}]
  %s2 = inlined_call_operand.hbm [shape: f32[1,10], index: 2, kind: input, shape index: {}]
  %s3 = inlined_call_operand.vmem [shape: bf16[10,32], index: 3, kind: input, shape index: {}]
  %s4 = inlined_call_operand.vmem [shape: f32[1,32], index: 4, kind: input, shape index: {}]
  %s5 = inlined_call_operand.hbm [shape: f32[1,32], index: 5, kind: input, shape index: {}]
  %s6 = inlined_call_operand.hbm [shape: f32[1,32], index: 6, kind: input, shape index: {}]
  %s7 = inlined_call_operand.vmem [shape: bf16[32,32], index: 7, kind: input, shape index: {}]
  %s8 = inlined_call_operand.hbm [shape: f32[1,32], index: 8, kind: input, shape index: {}]
  %s9 = inlined_call_operand.hbm [shape: f32[1,32], index: 9, kind: input, shape index: {}]
  %s10 = inlined_call_operand.hbm [shape: f32[1,32], index: 10, kind: input, shape index: {}]
  %s11 = inlined_call_operand.hbm [shape: bf16[32,96], index: 11, kind: input, shape index: {}]
  %s12 = inlined_call_operand.vmem [shape: f32[1,96], index: 12, kind: input, shape index: {}]
  %s13 = inlined_call_operand.vmem [shape: f32[32,32], index: 13, kind: input, shape index: {}]
  %s14 = inlined_call_operand.vmem [shape: f32[1,32], index: 14, kind: input, shape index: {}]
  %s15 = inlined_call_operand.hbm [shape: bf16[32,1152], index: 15, kind: input, shape index: {}]
  %s16 = inlined_call_operand.vmem [shape: f32[1,1152], index: 16, kind: input, shape index: {}]
  %s17 = inlined_call_operand.vmem [shape: f32[2,1152], index: 17, kind: output, shape index: {}]
  %s18 = sld [smem:[#allocation0]]
  $region114: #{hypernetwork_forward.1} parent=0
    _
  %s20 = ssub.s32 1, %s18
  %s21 = scalar_select 0, %s20, %s18
  $region1: #{hypernetwork_forward.1} parent=0
    #allocation2 [shape = 'u8[512]{0}', space=vmem, size = 0x400, scoped, tag = 'input window, operand 1, single buffered']
    #allocation3 [shape = 's32[1]{0}', space=sflag, size = 0x4, scoped, tag = 'scoped memory for hypernetwork_forward.1']
    #allocation4 [shape = 'u8[512]{0}', space=vmem, size = 0x400, scoped, tag = 'input window, operand 2, single buffered']
    #allocation5 [shape = 's32[1]{0}', space=sflag, size = 0x4, scoped, tag = 'scoped memory for hypernetwork_forward.1']
    #allocation6 [shape = 'u8[512]{0}', space=vmem, size = 0x400, scoped, tag = 'input window, operand 5, single buffered']
    #allocation7 [shape = 'u8[512]{0}', space=vmem, size = 0x400, scoped, tag = 'input window, operand 6, single buffered']
    #allocation8 [shape = 's32[1]{0}', space=sflag, size = 0x4, scoped, tag = 'scoped memory for hypernetwork_forward.1']
    #allocation9 [shape = 'u8[512]{0}', space=vmem, size = 0x400, scoped, tag = 'input window, operand 8, single buffered']
    #allocation10 [shape = 'u8[512]{0}', space=vmem, size = 0x400, scoped, tag = 'input window, operand 9, single buffered']
    #allocation11 [shape = 's32[1]{0}', space=sflag, size = 0x4, scoped, tag = 'scoped memory for hypernetwork_forward.1']
    #allocation12 [shape = 'u8[512]{0}', space=vmem, size = 0x400, scoped, tag = 'input window, operand 10, single buffered']
    #allocation13 [shape = 'u8[8192]{0}', space=vmem, size = 0x2000, scoped, tag = 'input window, operand 11, single buffered']
    #allocation14 [shape = 's32[1]{0}', space=sflag, size = 0x4, scoped, tag = 'scoped memory for hypernetwork_forward.1']
    #allocation15 [shape = 'u8[73728]{0}', space=vmem, size = 0x12000, scoped, tag = 'input window, operand 15, single buffered']
    %22 = vsyncpa [#allocation3], 0
    %23 = vsyncpa [#allocation5], 0
    %24 = vsyncpa [#allocation8], 0
    %25 = vsyncpa [#allocation11], 0
    %26 = vsyncpa [#allocation14], 0
    // Predicated region
    $region2: #{hypernetwork_forward.1} parent=1 // pred_check
      _
    $region3: #{hypernetwork_forward.1} parent=1 // pred_check_branch
      %28 = sbr.rel (0) target = $region5
    $region4: #{hypernetwork_forward.1} parent=1 // pred_region
      _
    $region5: #{hypernetwork_forward.1} parent=1 // pred_fallthru
      _
    // Predicated region
    $region6: #{hypernetwork_forward.1} parent=1 // pred_check
      _
    $region7: #{hypernetwork_forward.1} parent=1 // pred_check_branch
      %30 = sbr.rel (0) target = $region9
    $region8: #{hypernetwork_forward.1} parent=1 // pred_region
      %s32 = ssub.s32 16, 16
      %33 = vsyncadd [#allocation3], %s32
      %s35 = sshll.u32 [#allocation2], 4
      %s36 = int_to_ptr.vmem [resolvable:$true] %s35
      %38 = dma.hbm_to_vmem [thread:$0]  %s1, 16, %s36, [#allocation3]
    $region9: #{hypernetwork_forward.1} parent=1 // pred_fallthru
      _
    // Predicated region
    $region10: #{hypernetwork_forward.1} parent=1 // pred_check
      _
    $region11: #{hypernetwork_forward.1} parent=1 // pred_check_branch
      %40 = sbr.rel (0) target = $region13
    $region12: #{hypernetwork_forward.1} parent=1 // pred_region
      %s42 = ssub.s32 16, 16
      %43 = vsyncadd [#allocation5], %s42
      %s45 = sshll.u32 [#allocation4], 4
      %s46 = int_to_ptr.vmem [resolvable:$true] %s45
      %48 = dma.hbm_to_vmem [thread:$0]  %s2, 16, %s46, [#allocation5]
    $region13: #{hypernetwork_forward.1} parent=1 // pred_fallthru
      _
    // Predicated region
    $region14: #{hypernetwork_forward.1} parent=1 // pred_check
      _
    $region15: #{hypernetwork_forward.1} parent=1 // pred_check_branch
      %50 = sbr.rel (0) target = $region17
    $region16: #{hypernetwork_forward.1} parent=1 // pred_region
      _
    $region17: #{hypernetwork_forward.1} parent=1 // pred_fallthru
      _
    // Predicated region
    $region18: #{hypernetwork_forward.1} parent=1 // pred_check
      _
    $region19: #{hypernetwork_forward.1} parent=1 // pred_check_branch
      %52 = sbr.rel (0) target = $region21
    $region20: #{hypernetwork_forward.1} parent=1 // pred_region
      _
    $region21: #{hypernetwork_forward.1} parent=1 // pred_fallthru
      _
    // Predicated region
    $region22: #{hypernetwork_forward.1} parent=1 // pred_check
      _
    $region23: #{hypernetwork_forward.1} parent=1 // pred_check_branch
      %54 = sbr.rel (0) target = $region25
    $region24: #{hypernetwork_forward.1} parent=1 // pred_region
      %s56 = ssub.s32 16, 16
      %57 = vsyncadd [#allocation5], %s56
      %s59 = sshll.u32 [#allocation6], 4
      %s60 = int_to_ptr.vmem [resolvable:$true] %s59
      %62 = dma.hbm_to_vmem [thread:$0]  %s5, 16, %s60, [#allocation5]
    $region25: #{hypernetwork_forward.1} parent=1 // pred_fallthru
      _
    // Predicated region
    $region26: #{hypernetwork_forward.1} parent=1 // pred_check
      _
    $region27: #{hypernetwork_forward.1} parent=1 // pred_check_branch
      %64 = sbr.rel (0) target = $region29
    $region28: #{hypernetwork_forward.1} parent=1 // pred_region
      %s66 = ssub.s32 16, 16
      %67 = vsyncadd [#allocation8], %s66
      %s69 = sshll.u32 [#allocation7], 4
      %s70 = int_to_ptr.vmem [resolvable:$true] %s69
      %72 = dma.hbm_to_vmem [thread:$0]  %s6, 16, %s70, [#allocation8]
    $region29: #{hypernetwork_forward.1} parent=1 // pred_fallthru
      _
    // Predicated region
    $region30: #{hypernetwork_forward.1} parent=1 // pred_check
      _
    $region31: #{hypernetwork_forward.1} parent=1 // pred_check_branch
      %74 = sbr.rel (0) target = $region33
    $region32: #{hypernetwork_forward.1} parent=1 // pred_region
      _
    $region33: #{hypernetwork_forward.1} parent=1 // pred_fallthru
      _
    // Predicated region
    $region34: #{hypernetwork_forward.1} parent=1 // pred_check
      _
    $region35: #{hypernetwork_forward.1} parent=1 // pred_check_branch
      %76 = sbr.rel (0) target = $region37
    $region36: #{hypernetwork_forward.1} parent=1 // pred_region
      %s78 = ssub.s32 16, 16
      %79 = vsyncadd [#allocation8], %s78
      %s81 = sshll.u32 [#allocation9], 4
      %s82 = int_to_ptr.vmem [resolvable:$true] %s81
      %84 = dma.hbm_to_vmem [thread:$0]  %s8, 16, %s82, [#allocation8]
    $region37: #{hypernetwork_forward.1} parent=1 // pred_fallthru
      _
    // Predicated region
    $region38: #{hypernetwork_forward.1} parent=1 // pred_check
      _
    $region39: #{hypernetwork_forward.1} parent=1 // pred_check_branch
      %86 = sbr.rel (0) target = $region41
    $region40: #{hypernetwork_forward.1} parent=1 // pred_region
      %s88 = ssub.s32 16, 16
      %89 = vsyncadd [#allocation11], %s88
      %s91 = sshll.u32 [#allocation10], 4
      %s92 = int_to_ptr.vmem [resolvable:$true] %s91
      %94 = dma.hbm_to_vmem [thread:$0]  %s9, 16, %s92, [#allocation11]
    $region41: #{hypernetwork_forward.1} parent=1 // pred_fallthru
      _
    // Predicated region
    $region42: #{hypernetwork_forward.1} parent=1 // pred_check
      _
    $region43: #{hypernetwork_forward.1} parent=1 // pred_check_branch
      %96 = sbr.rel (0) target = $region45
    $region44: #{hypernetwork_forward.1} parent=1 // pred_region
      %s98 = ssub.s32 16, 16
      %99 = vsyncadd [#allocation11], %s98
      %s101 = sshll.u32 [#allocation12], 4
      %s102 = int_to_ptr.vmem [resolvable:$true] %s101
      %104 = dma.hbm_to_vmem [thread:$0]  %s10, 16, %s102, [#allocation11]
    $region45: #{hypernetwork_forward.1} parent=1 // pred_fallthru
      _
    // Predicated region
    $region46: #{hypernetwork_forward.1} parent=1 // pred_check
      _
    $region47: #{hypernetwork_forward.1} parent=1 // pred_check_branch
      %106 = sbr.rel (0) target = $region49
    $region48: #{hypernetwork_forward.1} parent=1 // pred_region
      %s108 = ssub.s32 256, 256
      %109 = vsyncadd [#allocation14], %s108
      %s110 = sshll.u32 [#allocation13], 4
      %s111 = int_to_ptr.vmem [resolvable:$true] %s110
      %116 = dma.hbm_to_vmem [thread:$0]  %s11, 256, %s111, [#allocation14], 64, 64, 4
    $region49: #{hypernetwork_forward.1} parent=1 // pred_fallthru
      _
    // Predicated region
    $region50: #{hypernetwork_forward.1} parent=1 // pred_check
      _
    $region51: #{hypernetwork_forward.1} parent=1 // pred_check_branch
      %118 = sbr.rel (0) target = $region53
    $region52: #{hypernetwork_forward.1} parent=1 // pred_region
      _
    $region53: #{hypernetwork_forward.1} parent=1 // pred_fallthru
      _
    // Predicated region
    $region54: #{hypernetwork_forward.1} parent=1 // pred_check
      _
    $region55: #{hypernetwork_forward.1} parent=1 // pred_check_branch
      %120 = sbr.rel (0) target = $region57
    $region56: #{hypernetwork_forward.1} parent=1 // pred_region
      _
    $region57: #{hypernetwork_forward.1} parent=1 // pred_fallthru
      _
    // Predicated region
    $region58: #{hypernetwork_forward.1} parent=1 // pred_check
      _
    $region59: #{hypernetwork_forward.1} parent=1 // pred_check_branch
      %122 = sbr.rel (0) target = $region61
    $region60: #{hypernetwork_forward.1} parent=1 // pred_region
      _
    $region61: #{hypernetwork_forward.1} parent=1 // pred_fallthru
      _
    // Predicated region
    $region62: #{hypernetwork_forward.1} parent=1 // pred_check
      _
    $region63: #{hypernetwork_forward.1} parent=1 // pred_check_branch
      %124 = sbr.rel (0) target = $region65
    $region64: #{hypernetwork_forward.1} parent=1 // pred_region
      %s126 = ssub.s32 2304, 2304
      %127 = vsyncadd [#allocation14], %s126
      %s128 = sshll.u32 [#allocation15], 4
      %s129 = int_to_ptr.vmem [resolvable:$true] %s128
      %134 = dma.hbm_to_vmem [thread:$0]  %s15, 2304, %s129, [#allocation14], 576, 576, 36
    $region65: #{hypernetwork_forward.1} parent=1 // pred_fallthru
      _
    // Predicated region
    $region66: #{hypernetwork_forward.1} parent=1 // pred_check
      _
    $region67: #{hypernetwork_forward.1} parent=1 // pred_check_branch
      %136 = sbr.rel (0) target = $region69
    $region68: #{hypernetwork_forward.1} parent=1 // pred_region
      _
    $region69: #{hypernetwork_forward.1} parent=1 // pred_fallthru
      _
    // Predicated region
    $region70: #{hypernetwork_forward.1} parent=1 // pred_check
      _
    $region71: #{hypernetwork_forward.1} parent=1 // pred_check_branch
      %138 = sbr.rel (0) target = $region73
    $region72: #{hypernetwork_forward.1} parent=1 // pred_region
      %139 = dma.done [#allocation3], 16
    $region73: #{hypernetwork_forward.1} parent=1 // pred_fallthru
      _
    // Predicated region
    $region74: #{hypernetwork_forward.1} parent=1 // pred_check
      _
    $region75: #{hypernetwork_forward.1} parent=1 // pred_check_branch
      %141 = sbr.rel (0) target = $region77
    $region76: #{hypernetwork_forward.1} parent=1 // pred_region
      %142 = dma.done [#allocation5], 16
    $region77: #{hypernetwork_forward.1} parent=1 // pred_fallthru
      _
    // Predicated region
    $region78: #{hypernetwork_forward.1} parent=1 // pred_check
      _
    $region79: #{hypernetwork_forward.1} parent=1 // pred_check_branch
      %144 = sbr.rel (0) target = $region81
    $region80: #{hypernetwork_forward.1} parent=1 // pred_region
      %145 = dma.done [#allocation5], 16
    $region81: #{hypernetwork_forward.1} parent=1 // pred_fallthru
      _
    // Predicated region
    $region82: #{hypernetwork_forward.1} parent=1 // pred_check
      _
    $region83: #{hypernetwork_forward.1} parent=1 // pred_check_branch
      %147 = sbr.rel (0) target = $region85
    $region84: #{hypernetwork_forward.1} parent=1 // pred_region
      %148 = dma.done [#allocation8], 16
    $region85: #{hypernetwork_forward.1} parent=1 // pred_fallthru
      _
    // Predicated region
    $region86: #{hypernetwork_forward.1} parent=1 // pred_check
      _
    $region87: #{hypernetwork_forward.1} parent=1 // pred_check_branch
      %150 = sbr.rel (0) target = $region89
    $region88: #{hypernetwork_forward.1} parent=1 // pred_region
      %151 = dma.done [#allocation8], 16
    $region89: #{hypernetwork_forward.1} parent=1 // pred_fallthru
      _
    // Predicated region
    $region90: #{hypernetwork_forward.1} parent=1 // pred_check
      _
    $region91: #{hypernetwork_forward.1} parent=1 // pred_check_branch
      %153 = sbr.rel (0) target = $region93
    $region92: #{hypernetwork_forward.1} parent=1 // pred_region
      %154 = dma.done [#allocation11], 16
    $region93: #{hypernetwork_forward.1} parent=1 // pred_fallthru
      _
    // Predicated region
    $region94: #{hypernetwork_forward.1} parent=1 // pred_check
      _
    $region95: #{hypernetwork_forward.1} parent=1 // pred_check_branch
      %156 = sbr.rel (0) target = $region97
    $region96: #{hypernetwork_forward.1} parent=1 // pred_region
      %157 = dma.done [#allocation11], 16
    $region97: #{hypernetwork_forward.1} parent=1 // pred_fallthru
      _
    // Predicated region
    $region98: #{hypernetwork_forward.1} parent=1 // pred_check
      _
    $region99: #{hypernetwork_forward.1} parent=1 // pred_check_branch
      %159 = sbr.rel (0) target = $region101
    $region100: #{hypernetwork_forward.1} parent=1 // pred_region
      %160 = dma.done [#allocation14], 256
    $region101: #{hypernetwork_forward.1} parent=1 // pred_fallthru
      _
    // Predicated region
    $region102: #{hypernetwork_forward.1} parent=1 // pred_check
      _
    $region103: #{hypernetwork_forward.1} parent=1 // pred_check_branch
      %162 = sbr.rel (0) target = $region105
    $region104: #{hypernetwork_forward.1} parent=1 // pred_region
      %163 = dma.done [#allocation14], 2304
    $region105: #{hypernetwork_forward.1} parent=1 // pred_fallthru
      _
    %v165 = vld [vmem:[%s0] sm:$0x3f]
    %v166 = vld [vmem:[#allocation2] sm:$0x1]
    %v167 = vld [vmem:[#allocation4] sm:$0x1]
    %vm168 = vcmask 78848
    %v169 = vsel %vm168, %v165, 0.0
    %170 = vadd.xlane.f32.xlu0 %v169
    %v171 = vpop.xlane.xlu0 %170
    %v172 = vrcp.pop 10.0
    %v173 = vmul.f32 %v171, %v172
    %v174 = vsub.f32 %v165, %v173
    %v175 = vmul.f32 %v174, %v174
    %v176 = vsel %vm168, %v175, 0.0
    %177 = vadd.xlane.f32.xlu0 %v176
    %v178 = vpop.xlane.xlu0 %177
    %v179 = vmul.f32 %v178, %v172
    %v180 = vadd.f32 %v179, 1e-05
    %v181 = vrsqrt.pop %v180
    %v182 = vmul.f32 %v174, %v181
    %v184 = vlaneseq
    %v185 = vshrl.u32 %v184, 7
    %v186 = vsub.s32 0, %v185
    %v187 = vrot.slane %v166, %v186
    %v189 = vmul.f32 %v182, %v187
    %v191 = vlaneseq
    %v192 = vshrl.u32 %v191, 7
    %v193 = vsub.s32 0, %v192
    %v194 = vrot.slane %v167, %v193
    %v196 = vadd.f32 %v189, %v194
    %v197 = vpack.c.bf16 %v196, %v196
    %v198 = vld [vmem:[%s3] sm:$0xf]
    %v199 = vld [vmem:[%s3 + $0x4] sm:$0x1]
    %v200 = vld [vmem:[%s4] sm:$0x1]
    %v202 = vlaneseq
    %v203 = vshrl.u32 %v202, 7
    %v204 = vsub.s32 0, %v203
    %v205 = vrot.slane %v200, %v204
    %v209 = vunpack.c.l.b16 %v198
    %v210 = vunpack.c.l.b16 %v199
    %v211 = vpack.c.b16 %v210, %v209
    %vm212 = vcmask 80896
    %v214 = vsel %vm212, %v197, 0
    %vm216 = vcmask 1044480
    %v218 = vsel %vm216, %v211, 0
    %220 = vmatprep.subr.bf16.mxu0 0
    %221 = vmatpush1.bf16.msra.mxu0 %v218
    %222 = vmatprep.subr.bf16.mxu0 0
    %223 = vmatpush1.bf16.msra.mxu0 0
    %224 = vmatprep.subr.bf16.mxu0 0
    %225 = vmatpush1.bf16.msra.mxu0 0
    %226 = vmatprep.subr.bf16.mxu0 0
    %227 = vmatpush1.bf16.msra.mxu0 0
    %228 = vmatprep.subr.bf16.mxu0 0
    %229 = vmatpush1.bf16.msra.mxu0 0
    %230 = vmatprep.subr.bf16.mxu0 0
    %231 = vmatpush1.bf16.msra.mxu0 0
    %232 = vmatprep.subr.bf16.mxu0 0
    %233 = vmatpush1.bf16.msra.mxu0 0
    %234 = vmatprep.subr.bf16.mxu0 0
    %235 = vmatpush1.bf16.msra.mxu0 0
    %236 = vmatprep.subr.bf16.mxu0 0
    %237 = vmatpush1.bf16.msra.mxu0 0
    %238 = vmatprep.subr.bf16.mxu0 0
    %239 = vmatpush1.bf16.msra.mxu0 0
    %240 = vmatprep.subr.bf16.mxu0 0
    %241 = vmatpush1.bf16.msra.mxu0 0
    %242 = vmatprep.subr.bf16.mxu0 0
    %243 = vmatpush1.bf16.msra.mxu0 0
    %244 = vmatprep.subr.bf16.mxu0 0
    %245 = vmatpush1.bf16.msra.mxu0 0
    %246 = vmatprep.subr.bf16.mxu0 0
    %247 = vmatpush1.bf16.msra.mxu0 0
    %248 = vmatprep.subr.bf16.mxu0 0
    %249 = vmatpush1.bf16.msra.mxu0 0
    %250 = vmatprep.subr.bf16.mxu0 0
    %251 = vmatpush1.bf16.msra.mxu0 0
    %252 = vmatprep.mubr.bf16.mxu0 0
    %253 = vmatmul.mubr.bf16.gmra.mrb[0].mxu0 %v214
    %v254 = vpop.f32.mrb[0].mxu0
    %v255 = vadd.f32 %v205, %v254
    %v256 = vpop.f32.mrb[0].mxu0
    %v257 = vpop.f32.mrb[0].mxu0
    %v258 = vpop.f32.mrb[0].mxu0
    %259 = vdwg.mxu0
    %v260 = vmax.f32 %v255, 0.0
    %v261 = vld [vmem:[#allocation6] sm:$0x1]
    %v262 = vld [vmem:[#allocation7] sm:$0x1]
    %vm263 = vcmask 259072
    %v264 = vsel %vm263, %v260, 0.0
    %265 = vadd.xlane.f32.xlu0 %v264
    %v266 = vpop.xlane.xlu0 %265
    %v267 = vrcp.pop 32.0
    %v268 = vmul.f32 %v266, %v267
    %v269 = vsub.f32 %v260, %v268
    %v270 = vmul.f32 %v269, %v269
    %v271 = vsel %vm263, %v270, 0.0
    %272 = vadd.xlane.f32.xlu0 %v271
    %v273 = vpop.xlane.xlu0 %272
    %v274 = vmul.f32 %v273, %v267
    %v275 = vadd.f32 %v274, 1e-05
    %v276 = vrsqrt.pop %v275
    %v277 = vmul.f32 %v269, %v276
    %v279 = vlaneseq
    %v280 = vshrl.u32 %v279, 7
    %v281 = vsub.s32 0, %v280
    %v282 = vrot.slane %v261, %v281
    %v284 = vmul.f32 %v277, %v282
    %v286 = vlaneseq
    %v287 = vshrl.u32 %v286, 7
    %v288 = vsub.s32 0, %v287
    %v289 = vrot.slane %v262, %v288
    %v291 = vadd.f32 %v284, %v289
    %v292 = vpack.c.bf16 %v291, %v291
    %v293 = vld [vmem:[%s7] sm:$0xf]
    %v294 = vld [vmem:[%s7 + $0x4] sm:$0xf]
    %v295 = vld [vmem:[%s7 + $0x8] sm:$0xf]
    %v296 = vld [vmem:[%s7 + $0xc] sm:$0xf]
    %v297 = vld [vmem:[#allocation9] sm:$0x1]
    %v299 = vlaneseq
    %v300 = vshrl.u32 %v299, 7
    %v301 = vsub.s32 0, %v300
    %v302 = vrot.slane %v297, %v301
    %v308 = vunpack.c.l.b16 %v293
    %v309 = vunpack.c.l.b16 %v294
    %v310 = vunpack.c.l.b16 %v295
    %v311 = vunpack.c.l.b16 %v296
    %v312 = vpack.c.b16 %v309, %v308
    %v313 = vpack.c.b16 %v311, %v310
    %vm316 = vcmask 261120
    %v318 = vsel %vm316, %v292, 0
    %320 = vmatprep.subr.bf16.mxu0 0
    %321 = vmatpush1.bf16.msra.mxu0 %v312
    %322 = vmatprep.subr.bf16.mxu0 0
    %323 = vmatpush1.bf16.msra.mxu0 %v313
    %324 = vmatprep.subr.bf16.mxu0 0
    %325 = vmatpush1.bf16.msra.mxu0 0
    %326 = vmatprep.subr.bf16.mxu0 0
    %327 = vmatpush1.bf16.msra.mxu0 0
    %328 = vmatprep.subr.bf16.mxu0 0
    %329 = vmatpush1.bf16.msra.mxu0 0
    %330 = vmatprep.subr.bf16.mxu0 0
    %331 = vmatpush1.bf16.msra.mxu0 0
    %332 = vmatprep.subr.bf16.mxu0 0
    %333 = vmatpush1.bf16.msra.mxu0 0
    %334 = vmatprep.subr.bf16.mxu0 0
    %335 = vmatpush1.bf16.msra.mxu0 0
    %336 = vmatprep.subr.bf16.mxu0 0
    %337 = vmatpush1.bf16.msra.mxu0 0
    %338 = vmatprep.subr.bf16.mxu0 0
    %339 = vmatpush1.bf16.msra.mxu0 0
    %340 = vmatprep.subr.bf16.mxu0 0
    %341 = vmatpush1.bf16.msra.mxu0 0
    %342 = vmatprep.subr.bf16.mxu0 0
    %343 = vmatpush1.bf16.msra.mxu0 0
    %344 = vmatprep.subr.bf16.mxu0 0
    %345 = vmatpush1.bf16.msra.mxu0 0
    %346 = vmatprep.subr.bf16.mxu0 0
    %347 = vmatpush1.bf16.msra.mxu0 0
    %348 = vmatprep.subr.bf16.mxu0 0
    %349 = vmatpush1.bf16.msra.mxu0 0
    %350 = vmatprep.subr.bf16.mxu0 0
    %351 = vmatpush1.bf16.msra.mxu0 0
    %352 = vmatprep.mubr.bf16.mxu0 0
    %353 = vmatmul.mubr.bf16.gmra.mrb[0].mxu0 %v318
    %v354 = vpop.f32.mrb[0].mxu0
    %v355 = vadd.f32 %v302, %v354
    %v356 = vpop.f32.mrb[0].mxu0
    %v357 = vpop.f32.mrb[0].mxu0
    %v358 = vpop.f32.mrb[0].mxu0
    %359 = vdwg.mxu0
    %v360 = vmax.f32 %v355, 0.0
    %v361 = vld [vmem:[#allocation10] sm:$0x1]
    %v362 = vld [vmem:[#allocation12] sm:$0x1]
    %v363 = vsel %vm263, %v360, 0.0
    %364 = vadd.xlane.f32.xlu0 %v363
    %v365 = vpop.xlane.xlu0 %364
    %v366 = vmul.f32 %v365, %v267
    %v367 = vsub.f32 %v360, %v366
    %v368 = vmul.f32 %v367, %v367
    %v369 = vsel %vm263, %v368, 0.0
    %370 = vadd.xlane.f32.xlu0 %v369
    %v371 = vpop.xlane.xlu0 %370
    %v372 = vmul.f32 %v371, %v267
    %v373 = vadd.f32 %v372, 1e-05
    %v374 = vrsqrt.pop %v373
    %v375 = vmul.f32 %v367, %v374
    %v377 = vlaneseq
    %v378 = vshrl.u32 %v377, 7
    %v379 = vsub.s32 0, %v378
    %v380 = vrot.slane %v361, %v379
    %v382 = vmul.f32 %v375, %v380
    %v384 = vlaneseq
    %v385 = vshrl.u32 %v384, 7
    %v386 = vsub.s32 0, %v385
    %v387 = vrot.slane %v362, %v386
    %v389 = vadd.f32 %v382, %v387
    %v390 = vpack.c.bf16 %v389, %v389
    %v391 = vld [vmem:[#allocation13] sm:$0xf]
    %v392 = vld [vmem:[#allocation13 + $0x4] sm:$0xf]
    %v393 = vld [vmem:[#allocation13 + $0x8] sm:$0xf]
    %v394 = vld [vmem:[#allocation13 + $0xc] sm:$0xf]
    %v395 = vld [vmem:[%s12] sm:$0x1]
    %v397 = vlaneseq
    %v398 = vshrl.u32 %v397, 7
    %v399 = vsub.s32 0, %v398
    %v400 = vrot.slane %v395, %v399
    %v406 = vunpack.c.l.b16 %v391
    %v407 = vunpack.c.l.b16 %v392
    %v408 = vunpack.c.l.b16 %v393
    %v409 = vunpack.c.l.b16 %v394
    %v410 = vpack.c.b16 %v407, %v406
    %v411 = vpack.c.b16 %v409, %v408
    %v415 = vsel %vm316, %v390, 0
    %417 = vmatprep.subr.bf16.mxu0 0
    %418 = vmatpush1.bf16.msra.mxu0 %v410
    %419 = vmatprep.subr.bf16.mxu0 0
    %420 = vmatpush1.bf16.msra.mxu0 %v411
    %421 = vmatprep.subr.bf16.mxu0 0
    %422 = vmatpush1.bf16.msra.mxu0 0
    %423 = vmatprep.subr.bf16.mxu0 0
    %424 = vmatpush1.bf16.msra.mxu0 0
    %425 = vmatprep.subr.bf16.mxu0 0
    %426 = vmatpush1.bf16.msra.mxu0 0
    %427 = vmatprep.subr.bf16.mxu0 0
    %428 = vmatpush1.bf16.msra.mxu0 0
    %429 = vmatprep.subr.bf16.mxu0 0
    %430 = vmatpush1.bf16.msra.mxu0 0
    %431 = vmatprep.subr.bf16.mxu0 0
    %432 = vmatpush1.bf16.msra.mxu0 0
    %433 = vmatprep.subr.bf16.mxu0 0
    %434 = vmatpush1.bf16.msra.mxu0 0
    %435 = vmatprep.subr.bf16.mxu0 0
    %436 = vmatpush1.bf16.msra.mxu0 0
    %437 = vmatprep.subr.bf16.mxu0 0
    %438 = vmatpush1.bf16.msra.mxu0 0
    %439 = vmatprep.subr.bf16.mxu0 0
    %440 = vmatpush1.bf16.msra.mxu0 0
    %441 = vmatprep.subr.bf16.mxu0 0
    %442 = vmatpush1.bf16.msra.mxu0 0
    %443 = vmatprep.subr.bf16.mxu0 0
    %444 = vmatpush1.bf16.msra.mxu0 0
    %445 = vmatprep.subr.bf16.mxu0 0
    %446 = vmatpush1.bf16.msra.mxu0 0
    %447 = vmatprep.subr.bf16.mxu0 0
    %448 = vmatpush1.bf16.msra.mxu0 0
    %449 = vmatprep.mubr.bf16.mxu0 0
    %450 = vmatmul.mubr.bf16.gmra.mrb[0].mxu0 %v415
    %v451 = vpop.f32.mrb[0].mxu0
    %v452 = vadd.f32 %v400, %v451
    %v453 = vpop.f32.mrb[0].mxu0
    %v454 = vpop.f32.mrb[0].mxu0
    %v455 = vpop.f32.mrb[0].mxu0
    %456 = vdwg.mxu0
    %v458 = vcombine.high %v452, %v452
    %v460 = vunpack.c.l.s4 1966171168
    %v461 = vunpack.c.0.s8 %v460
    %v462 = vlaneseq
    %v463 = vshrl.u32 %v462, 7
    %v464 = vsub.s32 %v461, %v463
    %v465 = vrot.slane %v452, %v464
    %v467 = vunpack.c.l.s4 1966171168
    %v468 = vunpack.c.0.s8 %v467
    %v469 = vlaneseq
    %v470 = vshrl.u32 %v469, 7
    %v471 = vsub.s32 %v468, %v470
    %v472 = vrot.slane %v458, %v471
    %v473 = vcombine.high %v465, %v465
    %v474 = vcombine.high %v472, %v472
    %v476 = vunpack.c.l.s4 1966171168
    %v477 = vunpack.c.0.s8 %v476
    %v478 = vlaneseq
    %v479 = vshrl.u32 %v478, 7
    %v480 = vsub.s32 %v477, %v479
    %v481 = vrot.slane %v465, %v480
    %v483 = vunpack.c.l.s4 1966171168
    %v484 = vunpack.c.0.s8 %v483
    %v485 = vlaneseq
    %v486 = vshrl.u32 %v485, 7
    %v487 = vsub.s32 %v484, %v486
    %v488 = vrot.slane %v472, %v487
    %v490 = vunpack.c.l.s4 1966171168
    %v491 = vunpack.c.0.s8 %v490
    %v492 = vlaneseq
    %v493 = vshrl.u32 %v492, 7
    %v494 = vsub.s32 %v491, %v493
    %v495 = vrot.slane %v473, %v494
    %v497 = vunpack.c.l.s4 1966171168
    %v498 = vunpack.c.0.s8 %v497
    %v499 = vlaneseq
    %v500 = vshrl.u32 %v499, 7
    %v501 = vsub.s32 %v498, %v500
    %v502 = vrot.slane %v474, %v501
    %v503 = vcombine.high %v481, %v481
    %v504 = vcombine.high %v495, %v495
    %v505 = vld [vmem:[%s13] sm:$0xff]
    %v506 = vld [vmem:[%s13 + $0x8] sm:$0xff]
    %v507 = vld [vmem:[%s13 + $0x10] sm:$0xff]
    %v508 = vld [vmem:[%s13 + $0x18] sm:$0xff]
    %v509 = vcombine.low %v481, %v495
    %v511 = vunpack.c.l.s4 1966171168
    %v512 = vunpack.c.0.s8 %v511
    %v513 = vlaneseq
    %v514 = vshrl.u32 %v513, 7
    %v515 = vsub.s32 %v512, %v514
    %v516 = vrot.slane %v509, %v515
    %v518 = vunpack.c.l.s4 1966171168
    %v519 = vunpack.c.0.s8 %v518
    %v520 = vlaneseq
    %v521 = vshrl.u32 %v520, 7
    %v522 = vsub.s32 %v519, %v521
    %v523 = vrot.slane %v503, %v522
    %v524 = vcombine.low %v516, %v523
    %v526 = vunpack.c.l.s4 1966171168
    %v527 = vunpack.c.0.s8 %v526
    %v528 = vlaneseq
    %v529 = vshrl.u32 %v528, 7
    %v530 = vsub.s32 %v527, %v529
    %v531 = vrot.slane %v524, %v530
    %532 = vrot.lane.b32.xlu0 %v531, 96
    %v533 = vpop.permute.xlu0 %532
    %vm534 = vcmask 64512
    %v535 = vsel %vm534, %v531, 0
    %v537 = vsel %vm534, %v533, 0
    %539 = vmatprep.subr.mxu0 0.0
    %540 = vmatpush1.xpose.msra.mxu0 %v537
    %541 = vmatprep.subr.mxu0 0.0
    %542 = vmatpush1.xpose.msra.mxu0 0.0
    %543 = vmatprep.subr.mxu0 0.0
    %544 = vmatpush1.xpose.msra.mxu0 0.0
    %545 = vmatprep.subr.mxu0 0.0
    %546 = vmatpush1.xpose.msra.mxu0 0.0
    %547 = vmatprep.subr.mxu0 0.0
    %548 = vmatpush1.xpose.msra.mxu0 0.0
    %549 = vmatprep.subr.mxu0 0.0
    %550 = vmatpush1.xpose.msra.mxu0 0.0
    %551 = vmatprep.subr.mxu0 0.0
    %552 = vmatpush1.xpose.msra.mxu0 0.0
    %553 = vmatprep.subr.mxu0 0.0
    %554 = vmatpush1.xpose.msra.mxu0 0.0
    %555 = vmatprep.subr.mxu0 0.0
    %556 = vmatpush1.xpose.msra.mxu0 0.0
    %557 = vmatprep.subr.mxu0 0.0
    %558 = vmatpush1.xpose.msra.mxu0 0.0
    %559 = vmatprep.subr.mxu0 0.0
    %560 = vmatpush1.xpose.msra.mxu0 0.0
    %561 = vmatprep.subr.mxu0 0.0
    %562 = vmatpush1.xpose.msra.mxu0 0.0
    %563 = vmatprep.subr.mxu0 0.0
    %564 = vmatpush1.xpose.msra.mxu0 0.0
    %565 = vmatprep.subr.mxu0 0.0
    %566 = vmatpush1.xpose.msra.mxu0 0.0
    %567 = vmatprep.subr.mxu0 0.0
    %568 = vmatpush1.xpose.msra.mxu0 0.0
    %569 = vmatprep.subr.mxu0 0.0
    %570 = vmatpush1.xpose.msra.mxu0 0.0
    %571 = vmatprep.subr.mxu0 0.0
    %572 = vmatpush1.xpose.msra.mxu0 0.0
    %573 = vmatprep.subr.mxu0 0.0
    %574 = vmatpush1.xpose.msra.mxu0 0.0
    %575 = vmatprep.subr.mxu0 0.0
    %576 = vmatpush1.xpose.msra.mxu0 0.0
    %577 = vmatprep.subr.mxu0 0.0
    %578 = vmatpush1.xpose.msra.mxu0 0.0
    %579 = vmatprep.subr.mxu0 0.0
    %580 = vmatpush1.xpose.msra.mxu0 0.0
    %581 = vmatprep.subr.mxu0 0.0
    %582 = vmatpush1.xpose.msra.mxu0 0.0
    %583 = vmatprep.subr.mxu0 0.0
    %584 = vmatpush1.xpose.msra.mxu0 0.0
    %585 = vmatprep.subr.mxu0 0.0
    %586 = vmatpush1.xpose.msra.mxu0 0.0
    %587 = vmatprep.subr.mxu0 0.0
    %588 = vmatpush1.xpose.msra.mxu0 0.0
    %589 = vmatprep.subr.mxu0 0.0
    %590 = vmatpush1.xpose.msra.mxu0 0.0
    %591 = vmatprep.subr.mxu0 0.0
    %592 = vmatpush1.xpose.msra.mxu0 0.0
    %593 = vmatprep.subr.mxu0 0.0
    %594 = vmatpush1.xpose.msra.mxu0 0.0
    %595 = vmatprep.subr.mxu0 0.0
    %596 = vmatpush1.xpose.msra.mxu0 0.0
    %597 = vmatprep.subr.mxu0 0.0
    %598 = vmatpush1.xpose.msra.mxu0 0.0
    %599 = vmatprep.subr.mxu0 0.0
    %600 = vmatpush1.xpose.msra.mxu0 0.0
    %601 = vmatprep.subr.mxu0 0.0
    %602 = vmatpush1.xpose.msra.mxu0 0.0
    %603 = vmatprep.mubr.f32.mxu0 0.0
    %604 = vmatmul.mubr.f32.gmra.mrb[0].mxu0 %v535
    %v605 = vpop.f32.mrb[0].mxu0
    %v606 = vadd.f32 0.0, %v605
    %v607 = vpop.f32.mrb[0].mxu0
    %608 = vdwg.mxu0
    %v609 = vcombine.low %v504, %v488
    %v611 = vunpack.c.l.s4 1966171168
    %v612 = vunpack.c.0.s8 %v611
    %v613 = vlaneseq
    %v614 = vshrl.u32 %v613, 7
    %v615 = vsub.s32 %v612, %v614
    %v616 = vrot.slane %v609, %v615
    %v618 = vunpack.c.l.s4 1966171168
    %v619 = vunpack.c.0.s8 %v618
    %v620 = vlaneseq
    %v621 = vshrl.u32 %v620, 7
    %v622 = vsub.s32 %v619, %v621
    %v623 = vrot.slane %v502, %v622
    %v624 = vcombine.low %v616, %v623
    %v626 = vunpack.c.l.s4 1966171168
    %v627 = vunpack.c.0.s8 %v626
    %v628 = vlaneseq
    %v629 = vshrl.u32 %v628, 7
    %v630 = vsub.s32 %v627, %v629
    %v631 = vrot.slane %v624, %v630
    %632 = vrot.lane.b32.xlu0 %v631, 96
    %v633 = vpop.permute.xlu0 %632
    %v634 = vsel %vm534, %v631, 0
    %v636 = vsel %vm534, %v633, 0
    %638 = vmatprep.subr.mxu0 0.0
    %639 = vmatpush1.xpose.msra.mxu0 %v636
    %640 = vmatprep.subr.mxu0 0.0
    %641 = vmatpush1.xpose.msra.mxu0 0.0
    %642 = vmatprep.subr.mxu0 0.0
    %643 = vmatpush1.xpose.msra.mxu0 0.0
    %644 = vmatprep.subr.mxu0 0.0
    %645 = vmatpush1.xpose.msra.mxu0 0.0
    %646 = vmatprep.subr.mxu0 0.0
    %647 = vmatpush1.xpose.msra.mxu0 0.0
    %648 = vmatprep.subr.mxu0 0.0
    %649 = vmatpush1.xpose.msra.mxu0 0.0
    %650 = vmatprep.subr.mxu0 0.0
    %651 = vmatpush1.xpose.msra.mxu0 0.0
    %652 = vmatprep.subr.mxu0 0.0
    %653 = vmatpush1.xpose.msra.mxu0 0.0
    %654 = vmatprep.subr.mxu0 0.0
    %655 = vmatpush1.xpose.msra.mxu0 0.0
    %656 = vmatprep.subr.mxu0 0.0
    %657 = vmatpush1.xpose.msra.mxu0 0.0
    %658 = vmatprep.subr.mxu0 0.0
    %659 = vmatpush1.xpose.msra.mxu0 0.0
    %660 = vmatprep.subr.mxu0 0.0
    %661 = vmatpush1.xpose.msra.mxu0 0.0
    %662 = vmatprep.subr.mxu0 0.0
    %663 = vmatpush1.xpose.msra.mxu0 0.0
    %664 = vmatprep.subr.mxu0 0.0
    %665 = vmatpush1.xpose.msra.mxu0 0.0
    %666 = vmatprep.subr.mxu0 0.0
    %667 = vmatpush1.xpose.msra.mxu0 0.0
    %668 = vmatprep.subr.mxu0 0.0
    %669 = vmatpush1.xpose.msra.mxu0 0.0
    %670 = vmatprep.subr.mxu0 0.0
    %671 = vmatpush1.xpose.msra.mxu0 0.0
    %672 = vmatprep.subr.mxu0 0.0
    %673 = vmatpush1.xpose.msra.mxu0 0.0
    %674 = vmatprep.subr.mxu0 0.0
    %675 = vmatpush1.xpose.msra.mxu0 0.0
    %676 = vmatprep.subr.mxu0 0.0
    %677 = vmatpush1.xpose.msra.mxu0 0.0
    %678 = vmatprep.subr.mxu0 0.0
    %679 = vmatpush1.xpose.msra.mxu0 0.0
    %680 = vmatprep.subr.mxu0 0.0
    %681 = vmatpush1.xpose.msra.mxu0 0.0
    %682 = vmatprep.subr.mxu0 0.0
    %683 = vmatpush1.xpose.msra.mxu0 0.0
    %684 = vmatprep.subr.mxu0 0.0
    %685 = vmatpush1.xpose.msra.mxu0 0.0
    %686 = vmatprep.subr.mxu0 0.0
    %687 = vmatpush1.xpose.msra.mxu0 0.0
    %688 = vmatprep.subr.mxu0 0.0
    %689 = vmatpush1.xpose.msra.mxu0 0.0
    %690 = vmatprep.subr.mxu0 0.0
    %691 = vmatpush1.xpose.msra.mxu0 0.0
    %692 = vmatprep.subr.mxu0 0.0
    %693 = vmatpush1.xpose.msra.mxu0 0.0
    %694 = vmatprep.subr.mxu0 0.0
    %695 = vmatpush1.xpose.msra.mxu0 0.0
    %696 = vmatprep.subr.mxu0 0.0
    %697 = vmatpush1.xpose.msra.mxu0 0.0
    %698 = vmatprep.subr.mxu0 0.0
    %699 = vmatpush1.xpose.msra.mxu0 0.0
    %700 = vmatprep.subr.mxu0 0.0
    %701 = vmatpush1.xpose.msra.mxu0 0.0
    %702 = vmatprep.mubr.f32.mxu0 0.0
    %703 = vmatmul.mubr.f32.gmra.mrb[0].mxu0 %v634
    %v704 = vpop.f32.mrb[0].mxu0
    %v705 = vadd.f32 0.0, %v704
    %v706 = vpop.f32.mrb[0].mxu0
    %707 = vdwg.mxu0
    %vm708 = vcmask 18432
    %v709 = vsel %vm708, %v606, -inf
    %710 = vmax.xlane.f32.xlu0 %v709
    %v711 = vpop.xlane.xlu0 %710
    %v712 = vsel %vm708, %v705, -inf
    %713 = vmax.xlane.f32.xlu0 %v712
    %v714 = vpop.xlane.xlu0 %713
    %v715 = vsub.f32 %v606, %v711
    %v716 = vsub.f32 %v705, %v714
    %v717 = vmul.f32 %v715, 1.442695
    %v718 = vpow.pop %v717
    %v719 = vmul.f32 %v716, 1.442695
    %v720 = vpow.pop %v719
    %v721 = vsel %vm708, %v718, 0.0
    %722 = vadd.xlane.f32.xlu0 %v721
    %v723 = vpop.xlane.xlu0 %722
    %v724 = vsel %vm708, %v720, 0.0
    %725 = vadd.xlane.f32.xlu0 %v724
    %v726 = vpop.xlane.xlu0 %725
    %v727 = vrcp.pop %v723
    %v728 = vrcp.pop %v726
    %v729 = vmul.f32 %v718, %v727
    %v730 = vmul.f32 %v720, %v728
    %731 = vrot.lane.b32.xlu0 %v531, 64
    %v732 = vpop.permute.xlu0 %731
    %vm733 = vcmask 23552
    %v735 = vsel %vm733, %v729, 0
    %vm737 = vcmask 1042432
    %v738 = vsel %vm737, %v732, 0
    %740 = vmatprep.subr.mxu0 0.0
    %741 = vmatpush1.msra.mxu0 %v738
    %742 = vmatprep.subr.mxu0 0.0
    %743 = vmatpush1.msra.mxu0 0.0
    %744 = vmatprep.subr.mxu0 0.0
    %745 = vmatpush1.msra.mxu0 0.0
    %746 = vmatprep.subr.mxu0 0.0
    %747 = vmatpush1.msra.mxu0 0.0
    %748 = vmatprep.subr.mxu0 0.0
    %749 = vmatpush1.msra.mxu0 0.0
    %750 = vmatprep.subr.mxu0 0.0
    %751 = vmatpush1.msra.mxu0 0.0
    %752 = vmatprep.subr.mxu0 0.0
    %753 = vmatpush1.msra.mxu0 0.0
    %754 = vmatprep.subr.mxu0 0.0
    %755 = vmatpush1.msra.mxu0 0.0
    %756 = vmatprep.subr.mxu0 0.0
    %757 = vmatpush1.msra.mxu0 0.0
    %758 = vmatprep.subr.mxu0 0.0
    %759 = vmatpush1.msra.mxu0 0.0
    %760 = vmatprep.subr.mxu0 0.0
    %761 = vmatpush1.msra.mxu0 0.0
    %762 = vmatprep.subr.mxu0 0.0
    %763 = vmatpush1.msra.mxu0 0.0
    %764 = vmatprep.subr.mxu0 0.0
    %765 = vmatpush1.msra.mxu0 0.0
    %766 = vmatprep.subr.mxu0 0.0
    %767 = vmatpush1.msra.mxu0 0.0
    %768 = vmatprep.subr.mxu0 0.0
    %769 = vmatpush1.msra.mxu0 0.0
    %770 = vmatprep.subr.mxu0 0.0
    %771 = vmatpush1.msra.mxu0 0.0
    %772 = vmatprep.subr.mxu0 0.0
    %773 = vmatpush1.msra.mxu0 0.0
    %774 = vmatprep.subr.mxu0 0.0
    %775 = vmatpush1.msra.mxu0 0.0
    %776 = vmatprep.subr.mxu0 0.0
    %777 = vmatpush1.msra.mxu0 0.0
    %778 = vmatprep.subr.mxu0 0.0
    %779 = vmatpush1.msra.mxu0 0.0
    %780 = vmatprep.subr.mxu0 0.0
    %781 = vmatpush1.msra.mxu0 0.0
    %782 = vmatprep.subr.mxu0 0.0
    %783 = vmatpush1.msra.mxu0 0.0
    %784 = vmatprep.subr.mxu0 0.0
    %785 = vmatpush1.msra.mxu0 0.0
    %786 = vmatprep.subr.mxu0 0.0
    %787 = vmatpush1.msra.mxu0 0.0
    %788 = vmatprep.subr.mxu0 0.0
    %789 = vmatpush1.msra.mxu0 0.0
    %790 = vmatprep.subr.mxu0 0.0
    %791 = vmatpush1.msra.mxu0 0.0
    %792 = vmatprep.subr.mxu0 0.0
    %793 = vmatpush1.msra.mxu0 0.0
    %794 = vmatprep.subr.mxu0 0.0
    %795 = vmatpush1.msra.mxu0 0.0
    %796 = vmatprep.subr.mxu0 0.0
    %797 = vmatpush1.msra.mxu0 0.0
    %798 = vmatprep.subr.mxu0 0.0
    %799 = vmatpush1.msra.mxu0 0.0
    %800 = vmatprep.subr.mxu0 0.0
    %801 = vmatpush1.msra.mxu0 0.0
    %802 = vmatprep.subr.mxu0 0.0
    %803 = vmatpush1.msra.mxu0 0.0
    %804 = vmatprep.mubr.f32.mxu0 0.0
    %805 = vmatmul.mubr.f32.gmra.mrb[0].mxu0 %v735
    %v806 = vpop.f32.mrb[0].mxu0
    %v807 = vadd.f32 0.0, %v806
    %v808 = vpop.f32.mrb[0].mxu0
    %809 = vdwg.mxu0
    %810 = vrot.lane.b32.xlu0 %v631, 64
    %v811 = vpop.permute.xlu0 %810
    %v813 = vsel %vm733, %v730, 0
    %v815 = vsel %vm737, %v811, 0
    %817 = vmatprep.subr.mxu0 0.0
    %818 = vmatpush1.msra.mxu0 %v815
    %819 = vmatprep.subr.mxu0 0.0
    %820 = vmatpush1.msra.mxu0 0.0
    %821 = vmatprep.subr.mxu0 0.0
    %822 = vmatpush1.msra.mxu0 0.0
    %823 = vmatprep.subr.mxu0 0.0
    %824 = vmatpush1.msra.mxu0 0.0
    %825 = vmatprep.subr.mxu0 0.0
    %826 = vmatpush1.msra.mxu0 0.0
    %827 = vmatprep.subr.mxu0 0.0
    %828 = vmatpush1.msra.mxu0 0.0
    %829 = vmatprep.subr.mxu0 0.0
    %830 = vmatpush1.msra.mxu0 0.0
    %831 = vmatprep.subr.mxu0 0.0
    %832 = vmatpush1.msra.mxu0 0.0
    %833 = vmatprep.subr.mxu0 0.0
    %834 = vmatpush1.msra.mxu0 0.0
    %835 = vmatprep.subr.mxu0 0.0
    %836 = vmatpush1.msra.mxu0 0.0
    %837 = vmatprep.subr.mxu0 0.0
    %838 = vmatpush1.msra.mxu0 0.0
    %839 = vmatprep.subr.mxu0 0.0
    %840 = vmatpush1.msra.mxu0 0.0
    %841 = vmatprep.subr.mxu0 0.0
    %842 = vmatpush1.msra.mxu0 0.0
    %843 = vmatprep.subr.mxu0 0.0
    %844 = vmatpush1.msra.mxu0 0.0
    %845 = vmatprep.subr.mxu0 0.0
    %846 = vmatpush1.msra.mxu0 0.0
    %847 = vmatprep.subr.mxu0 0.0
    %848 = vmatpush1.msra.mxu0 0.0
    %849 = vmatprep.subr.mxu0 0.0
    %850 = vmatpush1.msra.mxu0 0.0
    %851 = vmatprep.subr.mxu0 0.0
    %852 = vmatpush1.msra.mxu0 0.0
    %853 = vmatprep.subr.mxu0 0.0
    %854 = vmatpush1.msra.mxu0 0.0
    %855 = vmatprep.subr.mxu0 0.0
    %856 = vmatpush1.msra.mxu0 0.0
    %857 = vmatprep.subr.mxu0 0.0
    %858 = vmatpush1.msra.mxu0 0.0
    %859 = vmatprep.subr.mxu0 0.0
    %860 = vmatpush1.msra.mxu0 0.0
    %861 = vmatprep.subr.mxu0 0.0
    %862 = vmatpush1.msra.mxu0 0.0
    %863 = vmatprep.subr.mxu0 0.0
    %864 = vmatpush1.msra.mxu0 0.0
    %865 = vmatprep.subr.mxu0 0.0
    %866 = vmatpush1.msra.mxu0 0.0
    %867 = vmatprep.subr.mxu0 0.0
    %868 = vmatpush1.msra.mxu0 0.0
    %869 = vmatprep.subr.mxu0 0.0
    %870 = vmatpush1.msra.mxu0 0.0
    %871 = vmatprep.subr.mxu0 0.0
    %872 = vmatpush1.msra.mxu0 0.0
    %873 = vmatprep.subr.mxu0 0.0
    %874 = vmatpush1.msra.mxu0 0.0
    %875 = vmatprep.subr.mxu0 0.0
    %876 = vmatpush1.msra.mxu0 0.0
    %877 = vmatprep.subr.mxu0 0.0
    %878 = vmatpush1.msra.mxu0 0.0
    %879 = vmatprep.subr.mxu0 0.0
    %880 = vmatpush1.msra.mxu0 0.0
    %881 = vmatprep.mubr.f32.mxu0 0.0
    %882 = vmatmul.mubr.f32.gmra.mrb[0].mxu0 %v813
    %v883 = vpop.f32.mrb[0].mxu0
    %v884 = vadd.f32 0.0, %v883
    %v885 = vpop.f32.mrb[0].mxu0
    %886 = vdwg.mxu0
    %v890 = vunpack.c.l.s4 1966171168
    %v891 = vunpack.c.0.s8 %v890
    %v892 = vlaneseq
    %v893 = vshrl.u32 %v892, 7
    %v894 = vsub.s32 %v891, %v893
    %v895 = vrot.slane %v807, %v894
    %v896 = vcombine.high %v895, %v895
    %v898 = vunpack.c.l.s4 1966171168
    %v899 = vunpack.c.0.s8 %v898
    %v900 = vlaneseq
    %v901 = vshrl.u32 %v900, 7
    %v902 = vsub.s32 %v899, %v901
    %v903 = vrot.slane %v895, %v902
    %v905 = vunpack.c.l.s4 1966171168
    %v906 = vunpack.c.0.s8 %v905
    %v907 = vlaneseq
    %v908 = vshrl.u32 %v907, 7
    %v909 = vsub.s32 %v906, %v908
    %v910 = vrot.slane %v896, %v909
    %v911 = vcombine.high %v903, %v903
    %v913 = vunpack.c.l.s4 1966171168
    %v914 = vunpack.c.0.s8 %v913
    %v915 = vlaneseq
    %v916 = vshrl.u32 %v915, 7
    %v917 = vsub.s32 %v914, %v916
    %v918 = vrot.slane %v884, %v917
    %v919 = vcombine.high %v918, %v918
    %v921 = vunpack.c.l.s4 1966171168
    %v922 = vunpack.c.0.s8 %v921
    %v923 = vlaneseq
    %v924 = vshrl.u32 %v923, 7
    %v925 = vsub.s32 %v922, %v924
    %v926 = vrot.slane %v918, %v925
    %v928 = vunpack.c.l.s4 1966171168
    %v929 = vunpack.c.0.s8 %v928
    %v930 = vlaneseq
    %v931 = vshrl.u32 %v930, 7
    %v932 = vsub.s32 %v929, %v931
    %v933 = vrot.slane %v919, %v932
    %v934 = vcombine.high %v926, %v926
    %935 = vrot.lane.b32.xlu0 %v531, 120
    %v936 = vpop.permute.xlu0 %935
    %937 = vrot.lane.b32.xlu0 %v531, 88
    %v938 = vpop.permute.xlu0 %937
    %v939 = vsel %vm534, %v936, 0
    %v941 = vsel %vm534, %v938, 0
    %943 = vmatprep.subr.mxu0 0.0
    %944 = vmatpush1.xpose.msra.mxu0 %v941
    %945 = vmatprep.subr.mxu0 0.0
    %946 = vmatpush1.xpose.msra.mxu0 0.0
    %947 = vmatprep.subr.mxu0 0.0
    %948 = vmatpush1.xpose.msra.mxu0 0.0
    %949 = vmatprep.subr.mxu0 0.0
    %950 = vmatpush1.xpose.msra.mxu0 0.0
    %951 = vmatprep.subr.mxu0 0.0
    %952 = vmatpush1.xpose.msra.mxu0 0.0
    %953 = vmatprep.subr.mxu0 0.0
    %954 = vmatpush1.xpose.msra.mxu0 0.0
    %955 = vmatprep.subr.mxu0 0.0
    %956 = vmatpush1.xpose.msra.mxu0 0.0
    %957 = vmatprep.subr.mxu0 0.0
    %958 = vmatpush1.xpose.msra.mxu0 0.0
    %959 = vmatprep.subr.mxu0 0.0
    %960 = vmatpush1.xpose.msra.mxu0 0.0
    %961 = vmatprep.subr.mxu0 0.0
    %962 = vmatpush1.xpose.msra.mxu0 0.0
    %963 = vmatprep.subr.mxu0 0.0
    %964 = vmatpush1.xpose.msra.mxu0 0.0
    %965 = vmatprep.subr.mxu0 0.0
    %966 = vmatpush1.xpose.msra.mxu0 0.0
    %967 = vmatprep.subr.mxu0 0.0
    %968 = vmatpush1.xpose.msra.mxu0 0.0
    %969 = vmatprep.subr.mxu0 0.0
    %970 = vmatpush1.xpose.msra.mxu0 0.0
    %971 = vmatprep.subr.mxu0 0.0
    %972 = vmatpush1.xpose.msra.mxu0 0.0
    %973 = vmatprep.subr.mxu0 0.0
    %974 = vmatpush1.xpose.msra.mxu0 0.0
    %975 = vmatprep.subr.mxu0 0.0
    %976 = vmatpush1.xpose.msra.mxu0 0.0
    %977 = vmatprep.subr.mxu0 0.0
    %978 = vmatpush1.xpose.msra.mxu0 0.0
    %979 = vmatprep.subr.mxu0 0.0
    %980 = vmatpush1.xpose.msra.mxu0 0.0
    %981 = vmatprep.subr.mxu0 0.0
    %982 = vmatpush1.xpose.msra.mxu0 0.0
    %983 = vmatprep.subr.mxu0 0.0
    %984 = vmatpush1.xpose.msra.mxu0 0.0
    %985 = vmatprep.subr.mxu0 0.0
    %986 = vmatpush1.xpose.msra.mxu0 0.0
    %987 = vmatprep.subr.mxu0 0.0
    %988 = vmatpush1.xpose.msra.mxu0 0.0
    %989 = vmatprep.subr.mxu0 0.0
    %990 = vmatpush1.xpose.msra.mxu0 0.0
    %991 = vmatprep.subr.mxu0 0.0
    %992 = vmatpush1.xpose.msra.mxu0 0.0
    %993 = vmatprep.subr.mxu0 0.0
    %994 = vmatpush1.xpose.msra.mxu0 0.0
    %995 = vmatprep.subr.mxu0 0.0
    %996 = vmatpush1.xpose.msra.mxu0 0.0
    %997 = vmatprep.subr.mxu0 0.0
    %998 = vmatpush1.xpose.msra.mxu0 0.0
    %999 = vmatprep.subr.mxu0 0.0
    %1000 = vmatpush1.xpose.msra.mxu0 0.0
    %1001 = vmatprep.subr.mxu0 0.0
    %1002 = vmatpush1.xpose.msra.mxu0 0.0
    %1003 = vmatprep.subr.mxu0 0.0
    %1004 = vmatpush1.xpose.msra.mxu0 0.0
    %1005 = vmatprep.subr.mxu0 0.0
    %1006 = vmatpush1.xpose.msra.mxu0 0.0
    %1007 = vmatprep.mubr.f32.mxu0 0.0
    %1008 = vmatmul.mubr.f32.gmra.mrb[0].mxu0 %v939
    %v1009 = vpop.f32.mrb[0].mxu0
    %v1010 = vadd.f32 0.0, %v1009
    %v1011 = vpop.f32.mrb[0].mxu0
    %1012 = vdwg.mxu0
    %1013 = vrot.lane.b32.xlu0 %v631, 120
    %v1014 = vpop.permute.xlu0 %1013
    %1015 = vrot.lane.b32.xlu0 %v631, 88
    %v1016 = vpop.permute.xlu0 %1015
    %v1017 = vsel %vm534, %v1014, 0
    %v1019 = vsel %vm534, %v1016, 0
    %1021 = vmatprep.subr.mxu0 0.0
    %1022 = vmatpush1.xpose.msra.mxu0 %v1019
    %1023 = vmatprep.subr.mxu0 0.0
    %1024 = vmatpush1.xpose.msra.mxu0 0.0
    %1025 = vmatprep.subr.mxu0 0.0
    %1026 = vmatpush1.xpose.msra.mxu0 0.0
    %1027 = vmatprep.subr.mxu0 0.0
    %1028 = vmatpush1.xpose.msra.mxu0 0.0
    %1029 = vmatprep.subr.mxu0 0.0
    %1030 = vmatpush1.xpose.msra.mxu0 0.0
    %1031 = vmatprep.subr.mxu0 0.0
    %1032 = vmatpush1.xpose.msra.mxu0 0.0
    %1033 = vmatprep.subr.mxu0 0.0
    %1034 = vmatpush1.xpose.msra.mxu0 0.0
    %1035 = vmatprep.subr.mxu0 0.0
    %1036 = vmatpush1.xpose.msra.mxu0 0.0
    %1037 = vmatprep.subr.mxu0 0.0
    %1038 = vmatpush1.xpose.msra.mxu0 0.0
    %1039 = vmatprep.subr.mxu0 0.0
    %1040 = vmatpush1.xpose.msra.mxu0 0.0
    %1041 = vmatprep.subr.mxu0 0.0
    %1042 = vmatpush1.xpose.msra.mxu0 0.0
    %1043 = vmatprep.subr.mxu0 0.0
    %1044 = vmatpush1.xpose.msra.mxu0 0.0
    %1045 = vmatprep.subr.mxu0 0.0
    %1046 = vmatpush1.xpose.msra.mxu0 0.0
    %1047 = vmatprep.subr.mxu0 0.0
    %1048 = vmatpush1.xpose.msra.mxu0 0.0
    %1049 = vmatprep.subr.mxu0 0.0
    %1050 = vmatpush1.xpose.msra.mxu0 0.0
    %1051 = vmatprep.subr.mxu0 0.0
    %1052 = vmatpush1.xpose.msra.mxu0 0.0
    %1053 = vmatprep.subr.mxu0 0.0
    %1054 = vmatpush1.xpose.msra.mxu0 0.0
    %1055 = vmatprep.subr.mxu0 0.0
    %1056 = vmatpush1.xpose.msra.mxu0 0.0
    %1057 = vmatprep.subr.mxu0 0.0
    %1058 = vmatpush1.xpose.msra.mxu0 0.0
    %1059 = vmatprep.subr.mxu0 0.0
    %1060 = vmatpush1.xpose.msra.mxu0 0.0
    %1061 = vmatprep.subr.mxu0 0.0
    %1062 = vmatpush1.xpose.msra.mxu0 0.0
    %1063 = vmatprep.subr.mxu0 0.0
    %1064 = vmatpush1.xpose.msra.mxu0 0.0
    %1065 = vmatprep.subr.mxu0 0.0
    %1066 = vmatpush1.xpose.msra.mxu0 0.0
    %1067 = vmatprep.subr.mxu0 0.0
    %1068 = vmatpush1.xpose.msra.mxu0 0.0
    %1069 = vmatprep.subr.mxu0 0.0
    %1070 = vmatpush1.xpose.msra.mxu0 0.0
    %1071 = vmatprep.subr.mxu0 0.0
    %1072 = vmatpush1.xpose.msra.mxu0 0.0
    %1073 = vmatprep.subr.mxu0 0.0
    %1074 = vmatpush1.xpose.msra.mxu0 0.0
    %1075 = vmatprep.subr.mxu0 0.0
    %1076 = vmatpush1.xpose.msra.mxu0 0.0
    %1077 = vmatprep.subr.mxu0 0.0
    %1078 = vmatpush1.xpose.msra.mxu0 0.0
    %1079 = vmatprep.subr.mxu0 0.0
    %1080 = vmatpush1.xpose.msra.mxu0 0.0
    %1081 = vmatprep.subr.mxu0 0.0
    %1082 = vmatpush1.xpose.msra.mxu0 0.0
    %1083 = vmatprep.subr.mxu0 0.0
    %1084 = vmatpush1.xpose.msra.mxu0 0.0
    %1085 = vmatprep.mubr.f32.mxu0 0.0
    %1086 = vmatmul.mubr.f32.gmra.mrb[0].mxu0 %v1017
    %v1087 = vpop.f32.mrb[0].mxu0
    %v1088 = vadd.f32 0.0, %v1087
    %v1089 = vpop.f32.mrb[0].mxu0
    %1090 = vdwg.mxu0
    %v1091 = vsel %vm708, %v1010, -inf
    %1092 = vmax.xlane.f32.xlu0 %v1091
    %v1093 = vpop.xlane.xlu0 %1092
    %v1094 = vsel %vm708, %v1088, -inf
    %1095 = vmax.xlane.f32.xlu0 %v1094
    %v1096 = vpop.xlane.xlu0 %1095
    %v1097 = vsub.f32 %v1010, %v1093
    %v1098 = vsub.f32 %v1088, %v1096
    %v1099 = vmul.f32 %v1097, 1.442695
    %v1100 = vpow.pop %v1099
    %v1101 = vmul.f32 %v1098, 1.442695
    %v1102 = vpow.pop %v1101
    %v1103 = vsel %vm708, %v1100, 0.0
    %1104 = vadd.xlane.f32.xlu0 %v1103
    %v1105 = vpop.xlane.xlu0 %1104
    %v1106 = vsel %vm708, %v1102, 0.0
    %1107 = vadd.xlane.f32.xlu0 %v1106
    %v1108 = vpop.xlane.xlu0 %1107
    %v1109 = vrcp.pop %v1105
    %v1110 = vrcp.pop %v1108
    %v1111 = vmul.f32 %v1100, %v1109
    %v1112 = vmul.f32 %v1102, %v1110
    %1113 = vrot.lane.b32.xlu0 %v531, 56
    %v1114 = vpop.permute.xlu0 %1113
    %v1116 = vsel %vm733, %v1111, 0
    %v1118 = vsel %vm737, %v1114, 0
    %1120 = vmatprep.subr.mxu0 0.0
    %1121 = vmatpush1.msra.mxu0 %v1118
    %1122 = vmatprep.subr.mxu0 0.0
    %1123 = vmatpush1.msra.mxu0 0.0
    %1124 = vmatprep.subr.mxu0 0.0
    %1125 = vmatpush1.msra.mxu0 0.0
    %1126 = vmatprep.subr.mxu0 0.0
    %1127 = vmatpush1.msra.mxu0 0.0
    %1128 = vmatprep.subr.mxu0 0.0
    %1129 = vmatpush1.msra.mxu0 0.0
    %1130 = vmatprep.subr.mxu0 0.0
    %1131 = vmatpush1.msra.mxu0 0.0
    %1132 = vmatprep.subr.mxu0 0.0
    %1133 = vmatpush1.msra.mxu0 0.0
    %1134 = vmatprep.subr.mxu0 0.0
    %1135 = vmatpush1.msra.mxu0 0.0
    %1136 = vmatprep.subr.mxu0 0.0
    %1137 = vmatpush1.msra.mxu0 0.0
    %1138 = vmatprep.subr.mxu0 0.0
    %1139 = vmatpush1.msra.mxu0 0.0
    %1140 = vmatprep.subr.mxu0 0.0
    %1141 = vmatpush1.msra.mxu0 0.0
    %1142 = vmatprep.subr.mxu0 0.0
    %1143 = vmatpush1.msra.mxu0 0.0
    %1144 = vmatprep.subr.mxu0 0.0
    %1145 = vmatpush1.msra.mxu0 0.0
    %1146 = vmatprep.subr.mxu0 0.0
    %1147 = vmatpush1.msra.mxu0 0.0
    %1148 = vmatprep.subr.mxu0 0.0
    %1149 = vmatpush1.msra.mxu0 0.0
    %1150 = vmatprep.subr.mxu0 0.0
    %1151 = vmatpush1.msra.mxu0 0.0
    %1152 = vmatprep.subr.mxu0 0.0
    %1153 = vmatpush1.msra.mxu0 0.0
    %1154 = vmatprep.subr.mxu0 0.0
    %1155 = vmatpush1.msra.mxu0 0.0
    %1156 = vmatprep.subr.mxu0 0.0
    %1157 = vmatpush1.msra.mxu0 0.0
    %1158 = vmatprep.subr.mxu0 0.0
    %1159 = vmatpush1.msra.mxu0 0.0
    %1160 = vmatprep.subr.mxu0 0.0
    %1161 = vmatpush1.msra.mxu0 0.0
    %1162 = vmatprep.subr.mxu0 0.0
    %1163 = vmatpush1.msra.mxu0 0.0
    %1164 = vmatprep.subr.mxu0 0.0
    %1165 = vmatpush1.msra.mxu0 0.0
    %1166 = vmatprep.subr.mxu0 0.0
    %1167 = vmatpush1.msra.mxu0 0.0
    %1168 = vmatprep.subr.mxu0 0.0
    %1169 = vmatpush1.msra.mxu0 0.0
    %1170 = vmatprep.subr.mxu0 0.0
    %1171 = vmatpush1.msra.mxu0 0.0
    %1172 = vmatprep.subr.mxu0 0.0
    %1173 = vmatpush1.msra.mxu0 0.0
    %1174 = vmatprep.subr.mxu0 0.0
    %1175 = vmatpush1.msra.mxu0 0.0
    %1176 = vmatprep.subr.mxu0 0.0
    %1177 = vmatpush1.msra.mxu0 0.0
    %1178 = vmatprep.subr.mxu0 0.0
    %1179 = vmatpush1.msra.mxu0 0.0
    %1180 = vmatprep.subr.mxu0 0.0
    %1181 = vmatpush1.msra.mxu0 0.0
    %1182 = vmatprep.subr.mxu0 0.0
    %1183 = vmatpush1.msra.mxu0 0.0
    %1184 = vmatprep.mubr.f32.mxu0 0.0
    %1185 = vmatmul.mubr.f32.gmra.mrb[0].mxu0 %v1116
    %v1186 = vpop.f32.mrb[0].mxu0
    %v1187 = vadd.f32 0.0, %v1186
    %v1188 = vpop.f32.mrb[0].mxu0
    %1189 = vdwg.mxu0
    %1190 = vrot.lane.b32.xlu0 %v631, 56
    %v1191 = vpop.permute.xlu0 %1190
    %v1193 = vsel %vm733, %v1112, 0
    %v1195 = vsel %vm737, %v1191, 0
    %1197 = vmatprep.subr.mxu0 0.0
    %1198 = vmatpush1.msra.mxu0 %v1195
    %1199 = vmatprep.subr.mxu0 0.0
    %1200 = vmatpush1.msra.mxu0 0.0
    %1201 = vmatprep.subr.mxu0 0.0
    %1202 = vmatpush1.msra.mxu0 0.0
    %1203 = vmatprep.subr.mxu0 0.0
    %1204 = vmatpush1.msra.mxu0 0.0
    %1205 = vmatprep.subr.mxu0 0.0
    %1206 = vmatpush1.msra.mxu0 0.0
    %1207 = vmatprep.subr.mxu0 0.0
    %1208 = vmatpush1.msra.mxu0 0.0
    %1209 = vmatprep.subr.mxu0 0.0
    %1210 = vmatpush1.msra.mxu0 0.0
    %1211 = vmatprep.subr.mxu0 0.0
    %1212 = vmatpush1.msra.mxu0 0.0
    %1213 = vmatprep.subr.mxu0 0.0
    %1214 = vmatpush1.msra.mxu0 0.0
    %1215 = vmatprep.subr.mxu0 0.0
    %1216 = vmatpush1.msra.mxu0 0.0
    %1217 = vmatprep.subr.mxu0 0.0
    %1218 = vmatpush1.msra.mxu0 0.0
    %1219 = vmatprep.subr.mxu0 0.0
    %1220 = vmatpush1.msra.mxu0 0.0
    %1221 = vmatprep.subr.mxu0 0.0
    %1222 = vmatpush1.msra.mxu0 0.0
    %1223 = vmatprep.subr.mxu0 0.0
    %1224 = vmatpush1.msra.mxu0 0.0
    %1225 = vmatprep.subr.mxu0 0.0
    %1226 = vmatpush1.msra.mxu0 0.0
    %1227 = vmatprep.subr.mxu0 0.0
    %1228 = vmatpush1.msra.mxu0 0.0
    %1229 = vmatprep.subr.mxu0 0.0
    %1230 = vmatpush1.msra.mxu0 0.0
    %1231 = vmatprep.subr.mxu0 0.0
    %1232 = vmatpush1.msra.mxu0 0.0
    %1233 = vmatprep.subr.mxu0 0.0
    %1234 = vmatpush1.msra.mxu0 0.0
    %1235 = vmatprep.subr.mxu0 0.0
    %1236 = vmatpush1.msra.mxu0 0.0
    %1237 = vmatprep.subr.mxu0 0.0
    %1238 = vmatpush1.msra.mxu0 0.0
    %1239 = vmatprep.subr.mxu0 0.0
    %1240 = vmatpush1.msra.mxu0 0.0
    %1241 = vmatprep.subr.mxu0 0.0
    %1242 = vmatpush1.msra.mxu0 0.0
    %1243 = vmatprep.subr.mxu0 0.0
    %1244 = vmatpush1.msra.mxu0 0.0
    %1245 = vmatprep.subr.mxu0 0.0
    %1246 = vmatpush1.msra.mxu0 0.0
    %1247 = vmatprep.subr.mxu0 0.0
    %1248 = vmatpush1.msra.mxu0 0.0
    %1249 = vmatprep.subr.mxu0 0.0
    %1250 = vmatpush1.msra.mxu0 0.0
    %1251 = vmatprep.subr.mxu0 0.0
    %1252 = vmatpush1.msra.mxu0 0.0
    %1253 = vmatprep.subr.mxu0 0.0
    %1254 = vmatpush1.msra.mxu0 0.0
    %1255 = vmatprep.subr.mxu0 0.0
    %1256 = vmatpush1.msra.mxu0 0.0
    %1257 = vmatprep.subr.mxu0 0.0
    %1258 = vmatpush1.msra.mxu0 0.0
    %1259 = vmatprep.subr.mxu0 0.0
    %1260 = vmatpush1.msra.mxu0 0.0
    %1261 = vmatprep.mubr.f32.mxu0 0.0
    %1262 = vmatmul.mubr.f32.gmra.mrb[0].mxu0 %v1193
    %v1263 = vpop.f32.mrb[0].mxu0
    %v1264 = vadd.f32 0.0, %v1263
    %v1265 = vpop.f32.mrb[0].mxu0
    %1266 = vdwg.mxu0
    %v1270 = vunpack.c.l.s4 1966171168
    %v1271 = vunpack.c.0.s8 %v1270
    %v1272 = vlaneseq
    %v1273 = vshrl.u32 %v1272, 7
    %v1274 = vsub.s32 %v1271, %v1273
    %v1275 = vrot.slane %v1187, %v1274
    %v1276 = vcombine.high %v1275, %v1275
    %v1278 = vunpack.c.l.s4 1966171168
    %v1279 = vunpack.c.0.s8 %v1278
    %v1280 = vlaneseq
    %v1281 = vshrl.u32 %v1280, 7
    %v1282 = vsub.s32 %v1279, %v1281
    %v1283 = vrot.slane %v1275, %v1282
    %v1285 = vunpack.c.l.s4 1966171168
    %v1286 = vunpack.c.0.s8 %v1285
    %v1287 = vlaneseq
    %v1288 = vshrl.u32 %v1287, 7
    %v1289 = vsub.s32 %v1286, %v1288
    %v1290 = vrot.slane %v1276, %v1289
    %v1291 = vcombine.high %v1283, %v1283
    %v1293 = vunpack.c.l.s4 1966171168
    %v1294 = vunpack.c.0.s8 %v1293
    %v1295 = vlaneseq
    %v1296 = vshrl.u32 %v1295, 7
    %v1297 = vsub.s32 %v1294, %v1296
    %v1298 = vrot.slane %v1264, %v1297
    %v1299 = vcombine.high %v1298, %v1298
    %v1301 = vunpack.c.l.s4 1966171168
    %v1302 = vunpack.c.0.s8 %v1301
    %v1303 = vlaneseq
    %v1304 = vshrl.u32 %v1303, 7
    %v1305 = vsub.s32 %v1302, %v1304
    %v1306 = vrot.slane %v1298, %v1305
    %v1308 = vunpack.c.l.s4 1966171168
    %v1309 = vunpack.c.0.s8 %v1308
    %v1310 = vlaneseq
    %v1311 = vshrl.u32 %v1310, 7
    %v1312 = vsub.s32 %v1309, %v1311
    %v1313 = vrot.slane %v1299, %v1312
    %v1314 = vcombine.high %v1306, %v1306
    %v1315 = vcombine.low %v1283, %v1290
    %v1316 = vcombine.low %v1291, %v1306
    %v1317 = vcombine.low %v1313, %v1314
    %v1319 = vunpack.c.l.s4 1966171168
    %v1320 = vunpack.c.0.s8 %v1319
    %v1321 = vlaneseq
    %v1322 = vshrl.u32 %v1321, 7
    %v1323 = vsub.s32 %v1320, %v1322
    %v1324 = vrot.slane %v1315, %v1323
    %v1326 = vunpack.c.l.s4 1966171168
    %v1327 = vunpack.c.0.s8 %v1326
    %v1328 = vlaneseq
    %v1329 = vshrl.u32 %v1328, 7
    %v1330 = vsub.s32 %v1327, %v1329
    %v1331 = vrot.slane %v1316, %v1330
    %v1333 = vunpack.c.l.s4 1966171168
    %v1334 = vunpack.c.0.s8 %v1333
    %v1335 = vlaneseq
    %v1336 = vshrl.u32 %v1335, 7
    %v1337 = vsub.s32 %v1334, %v1336
    %v1338 = vrot.slane %v1317, %v1337
    %v1339 = vcombine.low %v1324, %v1331
    %v1341 = vunpack.c.l.s4 1966171168
    %v1342 = vunpack.c.0.s8 %v1341
    %v1343 = vlaneseq
    %v1344 = vshrl.u32 %v1343, 7
    %v1345 = vsub.s32 %v1342, %v1344
    %v1346 = vrot.slane %v1339, %v1345
    %v1348 = vunpack.c.l.s4 1966171168
    %v1349 = vunpack.c.0.s8 %v1348
    %v1350 = vlaneseq
    %v1351 = vshrl.u32 %v1350, 7
    %v1352 = vsub.s32 %v1349, %v1351
    %v1353 = vrot.slane %v1338, %v1352
    %v1354 = vcombine.low %v1346, %v1353
    %v1355 = vsel %vm534, %v1354, 0
    %1357 = vmatprep.subr.mxu0 0.0
    %1358 = vmatpush1.msra.mxu0 %v506
    %1359 = vmatprep.subr.mxu0 0.0
    %1360 = vmatpush1.msra.mxu0 0.0
    %1361 = vmatprep.subr.mxu0 0.0
    %1362 = vmatpush1.msra.mxu0 0.0
    %1363 = vmatprep.subr.mxu0 0.0
    %1364 = vmatpush1.msra.mxu0 0.0
    %1365 = vmatprep.subr.mxu0 0.0
    %1366 = vmatpush1.msra.mxu0 0.0
    %1367 = vmatprep.subr.mxu0 0.0
    %1368 = vmatpush1.msra.mxu0 0.0
    %1369 = vmatprep.subr.mxu0 0.0
    %1370 = vmatpush1.msra.mxu0 0.0
    %1371 = vmatprep.subr.mxu0 0.0
    %1372 = vmatpush1.msra.mxu0 0.0
    %1373 = vmatprep.subr.mxu0 0.0
    %1374 = vmatpush1.msra.mxu0 0.0
    %1375 = vmatprep.subr.mxu0 0.0
    %1376 = vmatpush1.msra.mxu0 0.0
    %1377 = vmatprep.subr.mxu0 0.0
    %1378 = vmatpush1.msra.mxu0 0.0
    %1379 = vmatprep.subr.mxu0 0.0
    %1380 = vmatpush1.msra.mxu0 0.0
    %1381 = vmatprep.subr.mxu0 0.0
    %1382 = vmatpush1.msra.mxu0 0.0
    %1383 = vmatprep.subr.mxu0 0.0
    %1384 = vmatpush1.msra.mxu0 0.0
    %1385 = vmatprep.subr.mxu0 0.0
    %1386 = vmatpush1.msra.mxu0 0.0
    %1387 = vmatprep.subr.mxu0 0.0
    %1388 = vmatpush1.msra.mxu0 0.0
    %1389 = vmatprep.subr.mxu0 0.0
    %1390 = vmatpush1.msra.mxu0 0.0
    %1391 = vmatprep.subr.mxu0 0.0
    %1392 = vmatpush1.msra.mxu0 0.0
    %1393 = vmatprep.subr.mxu0 0.0
    %1394 = vmatpush1.msra.mxu0 0.0
    %1395 = vmatprep.subr.mxu0 0.0
    %1396 = vmatpush1.msra.mxu0 0.0
    %1397 = vmatprep.subr.mxu0 0.0
    %1398 = vmatpush1.msra.mxu0 0.0
    %1399 = vmatprep.subr.mxu0 0.0
    %1400 = vmatpush1.msra.mxu0 0.0
    %1401 = vmatprep.subr.mxu0 0.0
    %1402 = vmatpush1.msra.mxu0 0.0
    %1403 = vmatprep.subr.mxu0 0.0
    %1404 = vmatpush1.msra.mxu0 0.0
    %1405 = vmatprep.subr.mxu0 0.0
    %1406 = vmatpush1.msra.mxu0 0.0
    %1407 = vmatprep.subr.mxu0 0.0
    %1408 = vmatpush1.msra.mxu0 0.0
    %1409 = vmatprep.subr.mxu0 0.0
    %1410 = vmatpush1.msra.mxu0 0.0
    %1411 = vmatprep.subr.mxu0 0.0
    %1412 = vmatpush1.msra.mxu0 0.0
    %1413 = vmatprep.subr.mxu0 0.0
    %1414 = vmatpush1.msra.mxu0 0.0
    %1415 = vmatprep.subr.mxu0 0.0
    %1416 = vmatpush1.msra.mxu0 0.0
    %1417 = vmatprep.subr.mxu0 0.0
    %1418 = vmatpush1.msra.mxu0 0.0
    %1419 = vmatprep.subr.mxu0 0.0
    %1420 = vmatpush1.msra.mxu0 0.0
    %1421 = vmatprep.mubr.f32.mxu0 0.0
    %1422 = vmatmul.mubr.f32.gmra.mrb[0].mxu0 %v1355
    %v1423 = vpop.f32.mrb[0].mxu0
    %v1424 = vadd.f32 0.0, %v1423
    %v1425 = vpop.f32.mrb[0].mxu0
    %1426 = vdwg.mxu0
    %v1427 = vcombine.low %v903, %v910
    %v1428 = vcombine.low %v911, %v926
    %v1429 = vcombine.low %v933, %v934
    %v1431 = vunpack.c.l.s4 1966171168
    %v1432 = vunpack.c.0.s8 %v1431
    %v1433 = vlaneseq
    %v1434 = vshrl.u32 %v1433, 7
    %v1435 = vsub.s32 %v1432, %v1434
    %v1436 = vrot.slane %v1427, %v1435
    %v1438 = vunpack.c.l.s4 1966171168
    %v1439 = vunpack.c.0.s8 %v1438
    %v1440 = vlaneseq
    %v1441 = vshrl.u32 %v1440, 7
    %v1442 = vsub.s32 %v1439, %v1441
    %v1443 = vrot.slane %v1428, %v1442
    %v1445 = vunpack.c.l.s4 1966171168
    %v1446 = vunpack.c.0.s8 %v1445
    %v1447 = vlaneseq
    %v1448 = vshrl.u32 %v1447, 7
    %v1449 = vsub.s32 %v1446, %v1448
    %v1450 = vrot.slane %v1429, %v1449
    %v1451 = vcombine.low %v1436, %v1443
    %v1453 = vunpack.c.l.s4 1966171168
    %v1454 = vunpack.c.0.s8 %v1453
    %v1455 = vlaneseq
    %v1456 = vshrl.u32 %v1455, 7
    %v1457 = vsub.s32 %v1454, %v1456
    %v1458 = vrot.slane %v1451, %v1457
    %v1460 = vunpack.c.l.s4 1966171168
    %v1461 = vunpack.c.0.s8 %v1460
    %v1462 = vlaneseq
    %v1463 = vshrl.u32 %v1462, 7
    %v1464 = vsub.s32 %v1461, %v1463
    %v1465 = vrot.slane %v1450, %v1464
    %v1466 = vcombine.low %v1458, %v1465
    %v1467 = vsel %vm534, %v1466, 0
    %1469 = vmatprep.subr.mxu0 0.0
    %1470 = vmatpush1.msra.mxu0 %v505
    %1471 = vmatprep.subr.mxu0 0.0
    %1472 = vmatpush1.msra.mxu0 0.0
    %1473 = vmatprep.subr.mxu0 0.0
    %1474 = vmatpush1.msra.mxu0 0.0
    %1475 = vmatprep.subr.mxu0 0.0
    %1476 = vmatpush1.msra.mxu0 0.0
    %1477 = vmatprep.subr.mxu0 0.0
    %1478 = vmatpush1.msra.mxu0 0.0
    %1479 = vmatprep.subr.mxu0 0.0
    %1480 = vmatpush1.msra.mxu0 0.0
    %1481 = vmatprep.subr.mxu0 0.0
    %1482 = vmatpush1.msra.mxu0 0.0
    %1483 = vmatprep.subr.mxu0 0.0
    %1484 = vmatpush1.msra.mxu0 0.0
    %1485 = vmatprep.subr.mxu0 0.0
    %1486 = vmatpush1.msra.mxu0 0.0
    %1487 = vmatprep.subr.mxu0 0.0
    %1488 = vmatpush1.msra.mxu0 0.0
    %1489 = vmatprep.subr.mxu0 0.0
    %1490 = vmatpush1.msra.mxu0 0.0
    %1491 = vmatprep.subr.mxu0 0.0
    %1492 = vmatpush1.msra.mxu0 0.0
    %1493 = vmatprep.subr.mxu0 0.0
    %1494 = vmatpush1.msra.mxu0 0.0
    %1495 = vmatprep.subr.mxu0 0.0
    %1496 = vmatpush1.msra.mxu0 0.0
    %1497 = vmatprep.subr.mxu0 0.0
    %1498 = vmatpush1.msra.mxu0 0.0
    %1499 = vmatprep.subr.mxu0 0.0
    %1500 = vmatpush1.msra.mxu0 0.0
    %1501 = vmatprep.subr.mxu0 0.0
    %1502 = vmatpush1.msra.mxu0 0.0
    %1503 = vmatprep.subr.mxu0 0.0
    %1504 = vmatpush1.msra.mxu0 0.0
    %1505 = vmatprep.subr.mxu0 0.0
    %1506 = vmatpush1.msra.mxu0 0.0
    %1507 = vmatprep.subr.mxu0 0.0
    %1508 = vmatpush1.msra.mxu0 0.0
    %1509 = vmatprep.subr.mxu0 0.0
    %1510 = vmatpush1.msra.mxu0 0.0
    %1511 = vmatprep.subr.mxu0 0.0
    %1512 = vmatpush1.msra.mxu0 0.0
    %1513 = vmatprep.subr.mxu0 0.0
    %1514 = vmatpush1.msra.mxu0 0.0
    %1515 = vmatprep.subr.mxu0 0.0
    %1516 = vmatpush1.msra.mxu0 0.0
    %1517 = vmatprep.subr.mxu0 0.0
    %1518 = vmatpush1.msra.mxu0 0.0
    %1519 = vmatprep.subr.mxu0 0.0
    %1520 = vmatpush1.msra.mxu0 0.0
    %1521 = vmatprep.subr.mxu0 0.0
    %1522 = vmatpush1.msra.mxu0 0.0
    %1523 = vmatprep.subr.mxu0 0.0
    %1524 = vmatpush1.msra.mxu0 0.0
    %1525 = vmatprep.subr.mxu0 0.0
    %1526 = vmatpush1.msra.mxu0 0.0
    %1527 = vmatprep.subr.mxu0 0.0
    %1528 = vmatpush1.msra.mxu0 0.0
    %1529 = vmatprep.subr.mxu0 0.0
    %1530 = vmatpush1.msra.mxu0 0.0
    %1531 = vmatprep.subr.mxu0 0.0
    %1532 = vmatpush1.msra.mxu0 0.0
    %1533 = vmatprep.mubr.f32.mxu0 0.0
    %1534 = vmatmul.mubr.f32.gmra.mrb[0].mxu0 %v1467
    %v1535 = vpop.f32.mrb[0].mxu0
    %v1536 = vadd.f32 %v1424, %v1535
    %v1537 = vpop.f32.mrb[0].mxu0
    %1538 = vdwg.mxu0
    %1539 = vrot.lane.b32.xlu0 %v531, 112
    %v1540 = vpop.permute.xlu0 %1539
    %1541 = vrot.lane.b32.xlu0 %v531, 80
    %v1542 = vpop.permute.xlu0 %1541
    %v1543 = vsel %vm534, %v1540, 0
    %v1545 = vsel %vm534, %v1542, 0
    %1547 = vmatprep.subr.mxu0 0.0
    %1548 = vmatpush1.xpose.msra.mxu0 %v1545
    %1549 = vmatprep.subr.mxu0 0.0
    %1550 = vmatpush1.xpose.msra.mxu0 0.0
    %1551 = vmatprep.subr.mxu0 0.0
    %1552 = vmatpush1.xpose.msra.mxu0 0.0
    %1553 = vmatprep.subr.mxu0 0.0
    %1554 = vmatpush1.xpose.msra.mxu0 0.0
    %1555 = vmatprep.subr.mxu0 0.0
    %1556 = vmatpush1.xpose.msra.mxu0 0.0
    %1557 = vmatprep.subr.mxu0 0.0
    %1558 = vmatpush1.xpose.msra.mxu0 0.0
    %1559 = vmatprep.subr.mxu0 0.0
    %1560 = vmatpush1.xpose.msra.mxu0 0.0
    %1561 = vmatprep.subr.mxu0 0.0
    %1562 = vmatpush1.xpose.msra.mxu0 0.0
    %1563 = vmatprep.subr.mxu0 0.0
    %1564 = vmatpush1.xpose.msra.mxu0 0.0
    %1565 = vmatprep.subr.mxu0 0.0
    %1566 = vmatpush1.xpose.msra.mxu0 0.0
    %1567 = vmatprep.subr.mxu0 0.0
    %1568 = vmatpush1.xpose.msra.mxu0 0.0
    %1569 = vmatprep.subr.mxu0 0.0
    %1570 = vmatpush1.xpose.msra.mxu0 0.0
    %1571 = vmatprep.subr.mxu0 0.0
    %1572 = vmatpush1.xpose.msra.mxu0 0.0
    %1573 = vmatprep.subr.mxu0 0.0
    %1574 = vmatpush1.xpose.msra.mxu0 0.0
    %1575 = vmatprep.subr.mxu0 0.0
    %1576 = vmatpush1.xpose.msra.mxu0 0.0
    %1577 = vmatprep.subr.mxu0 0.0
    %1578 = vmatpush1.xpose.msra.mxu0 0.0
    %1579 = vmatprep.subr.mxu0 0.0
    %1580 = vmatpush1.xpose.msra.mxu0 0.0
    %1581 = vmatprep.subr.mxu0 0.0
    %1582 = vmatpush1.xpose.msra.mxu0 0.0
    %1583 = vmatprep.subr.mxu0 0.0
    %1584 = vmatpush1.xpose.msra.mxu0 0.0
    %1585 = vmatprep.subr.mxu0 0.0
    %1586 = vmatpush1.xpose.msra.mxu0 0.0
    %1587 = vmatprep.subr.mxu0 0.0
    %1588 = vmatpush1.xpose.msra.mxu0 0.0
    %1589 = vmatprep.subr.mxu0 0.0
    %1590 = vmatpush1.xpose.msra.mxu0 0.0
    %1591 = vmatprep.subr.mxu0 0.0
    %1592 = vmatpush1.xpose.msra.mxu0 0.0
    %1593 = vmatprep.subr.mxu0 0.0
    %1594 = vmatpush1.xpose.msra.mxu0 0.0
    %1595 = vmatprep.subr.mxu0 0.0
    %1596 = vmatpush1.xpose.msra.mxu0 0.0
    %1597 = vmatprep.subr.mxu0 0.0
    %1598 = vmatpush1.xpose.msra.mxu0 0.0
    %1599 = vmatprep.subr.mxu0 0.0
    %1600 = vmatpush1.xpose.msra.mxu0 0.0
    %1601 = vmatprep.subr.mxu0 0.0
    %1602 = vmatpush1.xpose.msra.mxu0 0.0
    %1603 = vmatprep.subr.mxu0 0.0
    %1604 = vmatpush1.xpose.msra.mxu0 0.0
    %1605 = vmatprep.subr.mxu0 0.0
    %1606 = vmatpush1.xpose.msra.mxu0 0.0
    %1607 = vmatprep.subr.mxu0 0.0
    %1608 = vmatpush1.xpose.msra.mxu0 0.0
    %1609 = vmatprep.subr.mxu0 0.0
    %1610 = vmatpush1.xpose.msra.mxu0 0.0
    %1611 = vmatprep.mubr.f32.mxu0 0.0
    %1612 = vmatmul.mubr.f32.gmra.mrb[0].mxu0 %v1543
    %v1613 = vpop.f32.mrb[0].mxu0
    %v1614 = vadd.f32 0.0, %v1613
    %v1615 = vpop.f32.mrb[0].mxu0
    %1616 = vdwg.mxu0
    %1617 = vrot.lane.b32.xlu0 %v631, 112
    %v1618 = vpop.permute.xlu0 %1617
    %1619 = vrot.lane.b32.xlu0 %v631, 80
    %v1620 = vpop.permute.xlu0 %1619
    %v1621 = vsel %vm534, %v1618, 0
    %v1623 = vsel %vm534, %v1620, 0
    %1625 = vmatprep.subr.mxu0 0.0
    %1626 = vmatpush1.xpose.msra.mxu0 %v1623
    %1627 = vmatprep.subr.mxu0 0.0
    %1628 = vmatpush1.xpose.msra.mxu0 0.0
    %1629 = vmatprep.subr.mxu0 0.0
    %1630 = vmatpush1.xpose.msra.mxu0 0.0
    %1631 = vmatprep.subr.mxu0 0.0
    %1632 = vmatpush1.xpose.msra.mxu0 0.0
    %1633 = vmatprep.subr.mxu0 0.0
    %1634 = vmatpush1.xpose.msra.mxu0 0.0
    %1635 = vmatprep.subr.mxu0 0.0
    %1636 = vmatpush1.xpose.msra.mxu0 0.0
    %1637 = vmatprep.subr.mxu0 0.0
    %1638 = vmatpush1.xpose.msra.mxu0 0.0
    %1639 = vmatprep.subr.mxu0 0.0
    %1640 = vmatpush1.xpose.msra.mxu0 0.0
    %1641 = vmatprep.subr.mxu0 0.0
    %1642 = vmatpush1.xpose.msra.mxu0 0.0
    %1643 = vmatprep.subr.mxu0 0.0
    %1644 = vmatpush1.xpose.msra.mxu0 0.0
    %1645 = vmatprep.subr.mxu0 0.0
    %1646 = vmatpush1.xpose.msra.mxu0 0.0
    %1647 = vmatprep.subr.mxu0 0.0
    %1648 = vmatpush1.xpose.msra.mxu0 0.0
    %1649 = vmatprep.subr.mxu0 0.0
    %1650 = vmatpush1.xpose.msra.mxu0 0.0
    %1651 = vmatprep.subr.mxu0 0.0
    %1652 = vmatpush1.xpose.msra.mxu0 0.0
    %1653 = vmatprep.subr.mxu0 0.0
    %1654 = vmatpush1.xpose.msra.mxu0 0.0
    %1655 = vmatprep.subr.mxu0 0.0
    %1656 = vmatpush1.xpose.msra.mxu0 0.0
    %1657 = vmatprep.subr.mxu0 0.0
    %1658 = vmatpush1.xpose.msra.mxu0 0.0
    %1659 = vmatprep.subr.mxu0 0.0
    %1660 = vmatpush1.xpose.msra.mxu0 0.0
    %1661 = vmatprep.subr.mxu0 0.0
    %1662 = vmatpush1.xpose.msra.mxu0 0.0
    %1663 = vmatprep.subr.mxu0 0.0
    %1664 = vmatpush1.xpose.msra.mxu0 0.0
    %1665 = vmatprep.subr.mxu0 0.0
    %1666 = vmatpush1.xpose.msra.mxu0 0.0
    %1667 = vmatprep.subr.mxu0 0.0
    %1668 = vmatpush1.xpose.msra.mxu0 0.0
    %1669 = vmatprep.subr.mxu0 0.0
    %1670 = vmatpush1.xpose.msra.mxu0 0.0
    %1671 = vmatprep.subr.mxu0 0.0
    %1672 = vmatpush1.xpose.msra.mxu0 0.0
    %1673 = vmatprep.subr.mxu0 0.0
    %1674 = vmatpush1.xpose.msra.mxu0 0.0
    %1675 = vmatprep.subr.mxu0 0.0
    %1676 = vmatpush1.xpose.msra.mxu0 0.0
    %1677 = vmatprep.subr.mxu0 0.0
    %1678 = vmatpush1.xpose.msra.mxu0 0.0
    %1679 = vmatprep.subr.mxu0 0.0
    %1680 = vmatpush1.xpose.msra.mxu0 0.0
    %1681 = vmatprep.subr.mxu0 0.0
    %1682 = vmatpush1.xpose.msra.mxu0 0.0
    %1683 = vmatprep.subr.mxu0 0.0
    %1684 = vmatpush1.xpose.msra.mxu0 0.0
    %1685 = vmatprep.subr.mxu0 0.0
    %1686 = vmatpush1.xpose.msra.mxu0 0.0
    %1687 = vmatprep.subr.mxu0 0.0
    %1688 = vmatpush1.xpose.msra.mxu0 0.0
    %1689 = vmatprep.mubr.f32.mxu0 0.0
    %1690 = vmatmul.mubr.f32.gmra.mrb[0].mxu0 %v1621
    %v1691 = vpop.f32.mrb[0].mxu0
    %v1692 = vadd.f32 0.0, %v1691
    %v1693 = vpop.f32.mrb[0].mxu0
    %1694 = vdwg.mxu0
    %v1695 = vsel %vm708, %v1614, -inf
    %1696 = vmax.xlane.f32.xlu0 %v1695
    %v1697 = vpop.xlane.xlu0 %1696
    %v1698 = vsel %vm708, %v1692, -inf
    %1699 = vmax.xlane.f32.xlu0 %v1698
    %v1700 = vpop.xlane.xlu0 %1699
    %v1701 = vsub.f32 %v1614, %v1697
    %v1702 = vsub.f32 %v1692, %v1700
    %v1703 = vmul.f32 %v1701, 1.442695
    %v1704 = vpow.pop %v1703
    %v1705 = vmul.f32 %v1702, 1.442695
    %v1706 = vpow.pop %v1705
    %v1707 = vsel %vm708, %v1704, 0.0
    %1708 = vadd.xlane.f32.xlu0 %v1707
    %v1709 = vpop.xlane.xlu0 %1708
    %v1710 = vsel %vm708, %v1706, 0.0
    %1711 = vadd.xlane.f32.xlu0 %v1710
    %v1712 = vpop.xlane.xlu0 %1711
    %v1713 = vrcp.pop %v1709
    %v1714 = vrcp.pop %v1712
    %v1715 = vmul.f32 %v1704, %v1713
    %v1716 = vmul.f32 %v1706, %v1714
    %1717 = vrot.lane.b32.xlu0 %v531, 48
    %v1718 = vpop.permute.xlu0 %1717
    %v1720 = vsel %vm733, %v1715, 0
    %v1722 = vsel %vm737, %v1718, 0
    %1724 = vmatprep.subr.mxu0 0.0
    %1725 = vmatpush1.msra.mxu0 %v1722
    %1726 = vmatprep.subr.mxu0 0.0
    %1727 = vmatpush1.msra.mxu0 0.0
    %1728 = vmatprep.subr.mxu0 0.0
    %1729 = vmatpush1.msra.mxu0 0.0
    %1730 = vmatprep.subr.mxu0 0.0
    %1731 = vmatpush1.msra.mxu0 0.0
    %1732 = vmatprep.subr.mxu0 0.0
    %1733 = vmatpush1.msra.mxu0 0.0
    %1734 = vmatprep.subr.mxu0 0.0
    %1735 = vmatpush1.msra.mxu0 0.0
    %1736 = vmatprep.subr.mxu0 0.0
    %1737 = vmatpush1.msra.mxu0 0.0
    %1738 = vmatprep.subr.mxu0 0.0
    %1739 = vmatpush1.msra.mxu0 0.0
    %1740 = vmatprep.subr.mxu0 0.0
    %1741 = vmatpush1.msra.mxu0 0.0
    %1742 = vmatprep.subr.mxu0 0.0
    %1743 = vmatpush1.msra.mxu0 0.0
    %1744 = vmatprep.subr.mxu0 0.0
    %1745 = vmatpush1.msra.mxu0 0.0
    %1746 = vmatprep.subr.mxu0 0.0
    %1747 = vmatpush1.msra.mxu0 0.0
    %1748 = vmatprep.subr.mxu0 0.0
    %1749 = vmatpush1.msra.mxu0 0.0
    %1750 = vmatprep.subr.mxu0 0.0
    %1751 = vmatpush1.msra.mxu0 0.0
    %1752 = vmatprep.subr.mxu0 0.0
    %1753 = vmatpush1.msra.mxu0 0.0
    %1754 = vmatprep.subr.mxu0 0.0
    %1755 = vmatpush1.msra.mxu0 0.0
    %1756 = vmatprep.subr.mxu0 0.0
    %1757 = vmatpush1.msra.mxu0 0.0
    %1758 = vmatprep.subr.mxu0 0.0
    %1759 = vmatpush1.msra.mxu0 0.0
    %1760 = vmatprep.subr.mxu0 0.0
    %1761 = vmatpush1.msra.mxu0 0.0
    %1762 = vmatprep.subr.mxu0 0.0
    %1763 = vmatpush1.msra.mxu0 0.0
    %1764 = vmatprep.subr.mxu0 0.0
    %1765 = vmatpush1.msra.mxu0 0.0
    %1766 = vmatprep.subr.mxu0 0.0
    %1767 = vmatpush1.msra.mxu0 0.0
    %1768 = vmatprep.subr.mxu0 0.0
    %1769 = vmatpush1.msra.mxu0 0.0
    %1770 = vmatprep.subr.mxu0 0.0
    %1771 = vmatpush1.msra.mxu0 0.0
    %1772 = vmatprep.subr.mxu0 0.0
    %1773 = vmatpush1.msra.mxu0 0.0
    %1774 = vmatprep.subr.mxu0 0.0
    %1775 = vmatpush1.msra.mxu0 0.0
    %1776 = vmatprep.subr.mxu0 0.0
    %1777 = vmatpush1.msra.mxu0 0.0
    %1778 = vmatprep.subr.mxu0 0.0
    %1779 = vmatpush1.msra.mxu0 0.0
    %1780 = vmatprep.subr.mxu0 0.0
    %1781 = vmatpush1.msra.mxu0 0.0
    %1782 = vmatprep.subr.mxu0 0.0
    %1783 = vmatpush1.msra.mxu0 0.0
    %1784 = vmatprep.subr.mxu0 0.0
    %1785 = vmatpush1.msra.mxu0 0.0
    %1786 = vmatprep.subr.mxu0 0.0
    %1787 = vmatpush1.msra.mxu0 0.0
    %1788 = vmatprep.mubr.f32.mxu0 0.0
    %1789 = vmatmul.mubr.f32.gmra.mrb[0].mxu0 %v1720
    %v1790 = vpop.f32.mrb[0].mxu0
    %v1791 = vadd.f32 0.0, %v1790
    %v1792 = vpop.f32.mrb[0].mxu0
    %1793 = vdwg.mxu0
    %1794 = vrot.lane.b32.xlu0 %v631, 48
    %v1795 = vpop.permute.xlu0 %1794
    %v1797 = vsel %vm733, %v1716, 0
    %v1799 = vsel %vm737, %v1795, 0
    %1801 = vmatprep.subr.mxu0 0.0
    %1802 = vmatpush1.msra.mxu0 %v1799
    %1803 = vmatprep.subr.mxu0 0.0
    %1804 = vmatpush1.msra.mxu0 0.0
    %1805 = vmatprep.subr.mxu0 0.0
    %1806 = vmatpush1.msra.mxu0 0.0
    %1807 = vmatprep.subr.mxu0 0.0
    %1808 = vmatpush1.msra.mxu0 0.0
    %1809 = vmatprep.subr.mxu0 0.0
    %1810 = vmatpush1.msra.mxu0 0.0
    %1811 = vmatprep.subr.mxu0 0.0
    %1812 = vmatpush1.msra.mxu0 0.0
    %1813 = vmatprep.subr.mxu0 0.0
    %1814 = vmatpush1.msra.mxu0 0.0
    %1815 = vmatprep.subr.mxu0 0.0
    %1816 = vmatpush1.msra.mxu0 0.0
    %1817 = vmatprep.subr.mxu0 0.0
    %1818 = vmatpush1.msra.mxu0 0.0
    %1819 = vmatprep.subr.mxu0 0.0
    %1820 = vmatpush1.msra.mxu0 0.0
    %1821 = vmatprep.subr.mxu0 0.0
    %1822 = vmatpush1.msra.mxu0 0.0
    %1823 = vmatprep.subr.mxu0 0.0
    %1824 = vmatpush1.msra.mxu0 0.0
    %1825 = vmatprep.subr.mxu0 0.0
    %1826 = vmatpush1.msra.mxu0 0.0
    %1827 = vmatprep.subr.mxu0 0.0
    %1828 = vmatpush1.msra.mxu0 0.0
    %1829 = vmatprep.subr.mxu0 0.0
    %1830 = vmatpush1.msra.mxu0 0.0
    %1831 = vmatprep.subr.mxu0 0.0
    %1832 = vmatpush1.msra.mxu0 0.0
    %1833 = vmatprep.subr.mxu0 0.0
    %1834 = vmatpush1.msra.mxu0 0.0
    %1835 = vmatprep.subr.mxu0 0.0
    %1836 = vmatpush1.msra.mxu0 0.0
    %1837 = vmatprep.subr.mxu0 0.0
    %1838 = vmatpush1.msra.mxu0 0.0
    %1839 = vmatprep.subr.mxu0 0.0
    %1840 = vmatpush1.msra.mxu0 0.0
    %1841 = vmatprep.subr.mxu0 0.0
    %1842 = vmatpush1.msra.mxu0 0.0
    %1843 = vmatprep.subr.mxu0 0.0
    %1844 = vmatpush1.msra.mxu0 0.0
    %1845 = vmatprep.subr.mxu0 0.0
    %1846 = vmatpush1.msra.mxu0 0.0
    %1847 = vmatprep.subr.mxu0 0.0
    %1848 = vmatpush1.msra.mxu0 0.0
    %1849 = vmatprep.subr.mxu0 0.0
    %1850 = vmatpush1.msra.mxu0 0.0
    %1851 = vmatprep.subr.mxu0 0.0
    %1852 = vmatpush1.msra.mxu0 0.0
    %1853 = vmatprep.subr.mxu0 0.0
    %1854 = vmatpush1.msra.mxu0 0.0
    %1855 = vmatprep.subr.mxu0 0.0
    %1856 = vmatpush1.msra.mxu0 0.0
    %1857 = vmatprep.subr.mxu0 0.0
    %1858 = vmatpush1.msra.mxu0 0.0
    %1859 = vmatprep.subr.mxu0 0.0
    %1860 = vmatpush1.msra.mxu0 0.0
    %1861 = vmatprep.subr.mxu0 0.0
    %1862 = vmatpush1.msra.mxu0 0.0
    %1863 = vmatprep.subr.mxu0 0.0
    %1864 = vmatpush1.msra.mxu0 0.0
    %1865 = vmatprep.mubr.f32.mxu0 0.0
    %1866 = vmatmul.mubr.f32.gmra.mrb[0].mxu0 %v1797
    %v1867 = vpop.f32.mrb[0].mxu0
    %v1868 = vadd.f32 0.0, %v1867
    %v1869 = vpop.f32.mrb[0].mxu0
    %1870 = vdwg.mxu0
    %v1874 = vunpack.c.l.s4 1966171168
    %v1875 = vunpack.c.0.s8 %v1874
    %v1876 = vlaneseq
    %v1877 = vshrl.u32 %v1876, 7
    %v1878 = vsub.s32 %v1875, %v1877
    %v1879 = vrot.slane %v1791, %v1878
    %v1880 = vcombine.high %v1879, %v1879
    %v1882 = vunpack.c.l.s4 1966171168
    %v1883 = vunpack.c.0.s8 %v1882
    %v1884 = vlaneseq
    %v1885 = vshrl.u32 %v1884, 7
    %v1886 = vsub.s32 %v1883, %v1885
    %v1887 = vrot.slane %v1879, %v1886
    %v1889 = vunpack.c.l.s4 1966171168
    %v1890 = vunpack.c.0.s8 %v1889
    %v1891 = vlaneseq
    %v1892 = vshrl.u32 %v1891, 7
    %v1893 = vsub.s32 %v1890, %v1892
    %v1894 = vrot.slane %v1880, %v1893
    %v1895 = vcombine.high %v1887, %v1887
    %v1897 = vunpack.c.l.s4 1966171168
    %v1898 = vunpack.c.0.s8 %v1897
    %v1899 = vlaneseq
    %v1900 = vshrl.u32 %v1899, 7
    %v1901 = vsub.s32 %v1898, %v1900
    %v1902 = vrot.slane %v1868, %v1901
    %v1903 = vcombine.high %v1902, %v1902
    %v1905 = vunpack.c.l.s4 1966171168
    %v1906 = vunpack.c.0.s8 %v1905
    %v1907 = vlaneseq
    %v1908 = vshrl.u32 %v1907, 7
    %v1909 = vsub.s32 %v1906, %v1908
    %v1910 = vrot.slane %v1902, %v1909
    %v1912 = vunpack.c.l.s4 1966171168
    %v1913 = vunpack.c.0.s8 %v1912
    %v1914 = vlaneseq
    %v1915 = vshrl.u32 %v1914, 7
    %v1916 = vsub.s32 %v1913, %v1915
    %v1917 = vrot.slane %v1903, %v1916
    %v1918 = vcombine.high %v1910, %v1910
    %v1919 = vcombine.low %v1887, %v1894
    %v1920 = vcombine.low %v1895, %v1910
    %v1921 = vcombine.low %v1917, %v1918
    %v1923 = vunpack.c.l.s4 1966171168
    %v1924 = vunpack.c.0.s8 %v1923
    %v1925 = vlaneseq
    %v1926 = vshrl.u32 %v1925, 7
    %v1927 = vsub.s32 %v1924, %v1926
    %v1928 = vrot.slane %v1919, %v1927
    %v1930 = vunpack.c.l.s4 1966171168
    %v1931 = vunpack.c.0.s8 %v1930
    %v1932 = vlaneseq
    %v1933 = vshrl.u32 %v1932, 7
    %v1934 = vsub.s32 %v1931, %v1933
    %v1935 = vrot.slane %v1920, %v1934
    %v1937 = vunpack.c.l.s4 1966171168
    %v1938 = vunpack.c.0.s8 %v1937
    %v1939 = vlaneseq
    %v1940 = vshrl.u32 %v1939, 7
    %v1941 = vsub.s32 %v1938, %v1940
    %v1942 = vrot.slane %v1921, %v1941
    %v1943 = vcombine.low %v1928, %v1935
    %v1945 = vunpack.c.l.s4 1966171168
    %v1946 = vunpack.c.0.s8 %v1945
    %v1947 = vlaneseq
    %v1948 = vshrl.u32 %v1947, 7
    %v1949 = vsub.s32 %v1946, %v1948
    %v1950 = vrot.slane %v1943, %v1949
    %v1952 = vunpack.c.l.s4 1966171168
    %v1953 = vunpack.c.0.s8 %v1952
    %v1954 = vlaneseq
    %v1955 = vshrl.u32 %v1954, 7
    %v1956 = vsub.s32 %v1953, %v1955
    %v1957 = vrot.slane %v1942, %v1956
    %v1958 = vcombine.low %v1950, %v1957
    %v1959 = vsel %vm534, %v1958, 0
    %1961 = vmatprep.subr.mxu0 0.0
    %1962 = vmatpush1.msra.mxu0 %v507
    %1963 = vmatprep.subr.mxu0 0.0
    %1964 = vmatpush1.msra.mxu0 0.0
    %1965 = vmatprep.subr.mxu0 0.0
    %1966 = vmatpush1.msra.mxu0 0.0
    %1967 = vmatprep.subr.mxu0 0.0
    %1968 = vmatpush1.msra.mxu0 0.0
    %1969 = vmatprep.subr.mxu0 0.0
    %1970 = vmatpush1.msra.mxu0 0.0
    %1971 = vmatprep.subr.mxu0 0.0
    %1972 = vmatpush1.msra.mxu0 0.0
    %1973 = vmatprep.subr.mxu0 0.0
    %1974 = vmatpush1.msra.mxu0 0.0
    %1975 = vmatprep.subr.mxu0 0.0
    %1976 = vmatpush1.msra.mxu0 0.0
    %1977 = vmatprep.subr.mxu0 0.0
    %1978 = vmatpush1.msra.mxu0 0.0
    %1979 = vmatprep.subr.mxu0 0.0
    %1980 = vmatpush1.msra.mxu0 0.0
    %1981 = vmatprep.subr.mxu0 0.0
    %1982 = vmatpush1.msra.mxu0 0.0
    %1983 = vmatprep.subr.mxu0 0.0
    %1984 = vmatpush1.msra.mxu0 0.0
    %1985 = vmatprep.subr.mxu0 0.0
    %1986 = vmatpush1.msra.mxu0 0.0
    %1987 = vmatprep.subr.mxu0 0.0
    %1988 = vmatpush1.msra.mxu0 0.0
    %1989 = vmatprep.subr.mxu0 0.0
    %1990 = vmatpush1.msra.mxu0 0.0
    %1991 = vmatprep.subr.mxu0 0.0
    %1992 = vmatpush1.msra.mxu0 0.0
    %1993 = vmatprep.subr.mxu0 0.0
    %1994 = vmatpush1.msra.mxu0 0.0
    %1995 = vmatprep.subr.mxu0 0.0
    %1996 = vmatpush1.msra.mxu0 0.0
    %1997 = vmatprep.subr.mxu0 0.0
    %1998 = vmatpush1.msra.mxu0 0.0
    %1999 = vmatprep.subr.mxu0 0.0
    %2000 = vmatpush1.msra.mxu0 0.0
    %2001 = vmatprep.subr.mxu0 0.0
    %2002 = vmatpush1.msra.mxu0 0.0
    %2003 = vmatprep.subr.mxu0 0.0
    %2004 = vmatpush1.msra.mxu0 0.0
    %2005 = vmatprep.subr.mxu0 0.0
    %2006 = vmatpush1.msra.mxu0 0.0
    %2007 = vmatprep.subr.mxu0 0.0
    %2008 = vmatpush1.msra.mxu0 0.0
    %2009 = vmatprep.subr.mxu0 0.0
    %2010 = vmatpush1.msra.mxu0 0.0
    %2011 = vmatprep.subr.mxu0 0.0
    %2012 = vmatpush1.msra.mxu0 0.0
    %2013 = vmatprep.subr.mxu0 0.0
    %2014 = vmatpush1.msra.mxu0 0.0
    %2015 = vmatprep.subr.mxu0 0.0
    %2016 = vmatpush1.msra.mxu0 0.0
    %2017 = vmatprep.subr.mxu0 0.0
    %2018 = vmatpush1.msra.mxu0 0.0
    %2019 = vmatprep.subr.mxu0 0.0
    %2020 = vmatpush1.msra.mxu0 0.0
    %2021 = vmatprep.subr.mxu0 0.0
    %2022 = vmatpush1.msra.mxu0 0.0
    %2023 = vmatprep.subr.mxu0 0.0
    %2024 = vmatpush1.msra.mxu0 0.0
    %2025 = vmatprep.mubr.f32.mxu0 0.0
    %2026 = vmatmul.mubr.f32.gmra.mrb[0].mxu0 %v1959
    %v2027 = vpop.f32.mrb[0].mxu0
    %v2028 = vadd.f32 0.0, %v2027
    %v2029 = vpop.f32.mrb[0].mxu0
    %2030 = vdwg.mxu0
    %v2031 = vadd.f32 %v1536, %v2028
    %2032 = vrot.lane.b32.xlu0 %v531, 104
    %v2033 = vpop.permute.xlu0 %2032
    %2034 = vrot.lane.b32.xlu0 %v531, 72
    %v2035 = vpop.permute.xlu0 %2034
    %v2036 = vsel %vm534, %v2033, 0
    %v2038 = vsel %vm534, %v2035, 0
    %2040 = vmatprep.subr.mxu0 0.0
    %2041 = vmatpush1.xpose.msra.mxu0 %v2038
    %2042 = vmatprep.subr.mxu0 0.0
    %2043 = vmatpush1.xpose.msra.mxu0 0.0
    %2044 = vmatprep.subr.mxu0 0.0
    %2045 = vmatpush1.xpose.msra.mxu0 0.0
    %2046 = vmatprep.subr.mxu0 0.0
    %2047 = vmatpush1.xpose.msra.mxu0 0.0
    %2048 = vmatprep.subr.mxu0 0.0
    %2049 = vmatpush1.xpose.msra.mxu0 0.0
    %2050 = vmatprep.subr.mxu0 0.0
    %2051 = vmatpush1.xpose.msra.mxu0 0.0
    %2052 = vmatprep.subr.mxu0 0.0
    %2053 = vmatpush1.xpose.msra.mxu0 0.0
    %2054 = vmatprep.subr.mxu0 0.0
    %2055 = vmatpush1.xpose.msra.mxu0 0.0
    %2056 = vmatprep.subr.mxu0 0.0
    %2057 = vmatpush1.xpose.msra.mxu0 0.0
    %2058 = vmatprep.subr.mxu0 0.0
    %2059 = vmatpush1.xpose.msra.mxu0 0.0
    %2060 = vmatprep.subr.mxu0 0.0
    %2061 = vmatpush1.xpose.msra.mxu0 0.0
    %2062 = vmatprep.subr.mxu0 0.0
    %2063 = vmatpush1.xpose.msra.mxu0 0.0
    %2064 = vmatprep.subr.mxu0 0.0
    %2065 = vmatpush1.xpose.msra.mxu0 0.0
    %2066 = vmatprep.subr.mxu0 0.0
    %2067 = vmatpush1.xpose.msra.mxu0 0.0
    %2068 = vmatprep.subr.mxu0 0.0
    %2069 = vmatpush1.xpose.msra.mxu0 0.0
    %2070 = vmatprep.subr.mxu0 0.0
    %2071 = vmatpush1.xpose.msra.mxu0 0.0
    %2072 = vmatprep.subr.mxu0 0.0
    %2073 = vmatpush1.xpose.msra.mxu0 0.0
    %2074 = vmatprep.subr.mxu0 0.0
    %2075 = vmatpush1.xpose.msra.mxu0 0.0
    %2076 = vmatprep.subr.mxu0 0.0
    %2077 = vmatpush1.xpose.msra.mxu0 0.0
    %2078 = vmatprep.subr.mxu0 0.0
    %2079 = vmatpush1.xpose.msra.mxu0 0.0
    %2080 = vmatprep.subr.mxu0 0.0
    %2081 = vmatpush1.xpose.msra.mxu0 0.0
    %2082 = vmatprep.subr.mxu0 0.0
    %2083 = vmatpush1.xpose.msra.mxu0 0.0
    %2084 = vmatprep.subr.mxu0 0.0
    %2085 = vmatpush1.xpose.msra.mxu0 0.0
    %2086 = vmatprep.subr.mxu0 0.0
    %2087 = vmatpush1.xpose.msra.mxu0 0.0
    %2088 = vmatprep.subr.mxu0 0.0
    %2089 = vmatpush1.xpose.msra.mxu0 0.0
    %2090 = vmatprep.subr.mxu0 0.0
    %2091 = vmatpush1.xpose.msra.mxu0 0.0
    %2092 = vmatprep.subr.mxu0 0.0
    %2093 = vmatpush1.xpose.msra.mxu0 0.0
    %2094 = vmatprep.subr.mxu0 0.0
    %2095 = vmatpush1.xpose.msra.mxu0 0.0
    %2096 = vmatprep.subr.mxu0 0.0
    %2097 = vmatpush1.xpose.msra.mxu0 0.0
    %2098 = vmatprep.subr.mxu0 0.0
    %2099 = vmatpush1.xpose.msra.mxu0 0.0
    %2100 = vmatprep.subr.mxu0 0.0
    %2101 = vmatpush1.xpose.msra.mxu0 0.0
    %2102 = vmatprep.subr.mxu0 0.0
    %2103 = vmatpush1.xpose.msra.mxu0 0.0
    %2104 = vmatprep.mubr.f32.mxu0 0.0
    %2105 = vmatmul.mubr.f32.gmra.mrb[0].mxu0 %v2036
    %v2106 = vpop.f32.mrb[0].mxu0
    %v2107 = vadd.f32 0.0, %v2106
    %v2108 = vpop.f32.mrb[0].mxu0
    %2109 = vdwg.mxu0
    %2110 = vrot.lane.b32.xlu0 %v631, 104
    %v2111 = vpop.permute.xlu0 %2110
    %2112 = vrot.lane.b32.xlu0 %v631, 72
    %v2113 = vpop.permute.xlu0 %2112
    %v2114 = vsel %vm534, %v2111, 0
    %v2116 = vsel %vm534, %v2113, 0
    %2118 = vmatprep.subr.mxu0 0.0
    %2119 = vmatpush1.xpose.msra.mxu0 %v2116
    %2120 = vmatprep.subr.mxu0 0.0
    %2121 = vmatpush1.xpose.msra.mxu0 0.0
    %2122 = vmatprep.subr.mxu0 0.0
    %2123 = vmatpush1.xpose.msra.mxu0 0.0
    %2124 = vmatprep.subr.mxu0 0.0
    %2125 = vmatpush1.xpose.msra.mxu0 0.0
    %2126 = vmatprep.subr.mxu0 0.0
    %2127 = vmatpush1.xpose.msra.mxu0 0.0
    %2128 = vmatprep.subr.mxu0 0.0
    %2129 = vmatpush1.xpose.msra.mxu0 0.0
    %2130 = vmatprep.subr.mxu0 0.0
    %2131 = vmatpush1.xpose.msra.mxu0 0.0
    %2132 = vmatprep.subr.mxu0 0.0
    %2133 = vmatpush1.xpose.msra.mxu0 0.0
    %2134 = vmatprep.subr.mxu0 0.0
    %2135 = vmatpush1.xpose.msra.mxu0 0.0
    %2136 = vmatprep.subr.mxu0 0.0
    %2137 = vmatpush1.xpose.msra.mxu0 0.0
    %2138 = vmatprep.subr.mxu0 0.0
    %2139 = vmatpush1.xpose.msra.mxu0 0.0
    %2140 = vmatprep.subr.mxu0 0.0
    %2141 = vmatpush1.xpose.msra.mxu0 0.0
    %2142 = vmatprep.subr.mxu0 0.0
    %2143 = vmatpush1.xpose.msra.mxu0 0.0
    %2144 = vmatprep.subr.mxu0 0.0
    %2145 = vmatpush1.xpose.msra.mxu0 0.0
    %2146 = vmatprep.subr.mxu0 0.0
    %2147 = vmatpush1.xpose.msra.mxu0 0.0
    %2148 = vmatprep.subr.mxu0 0.0
    %2149 = vmatpush1.xpose.msra.mxu0 0.0
    %2150 = vmatprep.subr.mxu0 0.0
    %2151 = vmatpush1.xpose.msra.mxu0 0.0
    %2152 = vmatprep.subr.mxu0 0.0
    %2153 = vmatpush1.xpose.msra.mxu0 0.0
    %2154 = vmatprep.subr.mxu0 0.0
    %2155 = vmatpush1.xpose.msra.mxu0 0.0
    %2156 = vmatprep.subr.mxu0 0.0
    %2157 = vmatpush1.xpose.msra.mxu0 0.0
    %2158 = vmatprep.subr.mxu0 0.0
    %2159 = vmatpush1.xpose.msra.mxu0 0.0
    %2160 = vmatprep.subr.mxu0 0.0
    %2161 = vmatpush1.xpose.msra.mxu0 0.0
    %2162 = vmatprep.subr.mxu0 0.0
    %2163 = vmatpush1.xpose.msra.mxu0 0.0
    %2164 = vmatprep.subr.mxu0 0.0
    %2165 = vmatpush1.xpose.msra.mxu0 0.0
    %2166 = vmatprep.subr.mxu0 0.0
    %2167 = vmatpush1.xpose.msra.mxu0 0.0
    %2168 = vmatprep.subr.mxu0 0.0
    %2169 = vmatpush1.xpose.msra.mxu0 0.0
    %2170 = vmatprep.subr.mxu0 0.0
    %2171 = vmatpush1.xpose.msra.mxu0 0.0
    %2172 = vmatprep.subr.mxu0 0.0
    %2173 = vmatpush1.xpose.msra.mxu0 0.0
    %2174 = vmatprep.subr.mxu0 0.0
    %2175 = vmatpush1.xpose.msra.mxu0 0.0
    %2176 = vmatprep.subr.mxu0 0.0
    %2177 = vmatpush1.xpose.msra.mxu0 0.0
    %2178 = vmatprep.subr.mxu0 0.0
    %2179 = vmatpush1.xpose.msra.mxu0 0.0
    %2180 = vmatprep.subr.mxu0 0.0
    %2181 = vmatpush1.xpose.msra.mxu0 0.0
    %2182 = vmatprep.mubr.f32.mxu0 0.0
    %2183 = vmatmul.mubr.f32.gmra.mrb[0].mxu0 %v2114
    %v2184 = vpop.f32.mrb[0].mxu0
    %v2185 = vadd.f32 0.0, %v2184
    %v2186 = vpop.f32.mrb[0].mxu0
    %2187 = vdwg.mxu0
    %v2188 = vsel %vm708, %v2107, -inf
    %2189 = vmax.xlane.f32.xlu0 %v2188
    %v2190 = vpop.xlane.xlu0 %2189
    %v2191 = vsel %vm708, %v2185, -inf
    %2192 = vmax.xlane.f32.xlu0 %v2191
    %v2193 = vpop.xlane.xlu0 %2192
    %v2194 = vsub.f32 %v2107, %v2190
    %v2195 = vsub.f32 %v2185, %v2193
    %v2196 = vmul.f32 %v2194, 1.442695
    %v2197 = vpow.pop %v2196
    %v2198 = vmul.f32 %v2195, 1.442695
    %v2199 = vpow.pop %v2198
    %v2200 = vsel %vm708, %v2197, 0.0
    %2201 = vadd.xlane.f32.xlu0 %v2200
    %v2202 = vpop.xlane.xlu0 %2201
    %v2203 = vsel %vm708, %v2199, 0.0
    %2204 = vadd.xlane.f32.xlu0 %v2203
    %v2205 = vpop.xlane.xlu0 %2204
    %v2206 = vrcp.pop %v2202
    %v2207 = vrcp.pop %v2205
    %v2208 = vmul.f32 %v2197, %v2206
    %v2209 = vmul.f32 %v2199, %v2207
    %2210 = vrot.lane.b32.xlu0 %v531, 40
    %v2211 = vpop.permute.xlu0 %2210
    %v2213 = vsel %vm733, %v2208, 0
    %v2215 = vsel %vm737, %v2211, 0
    %2217 = vmatprep.subr.mxu0 0.0
    %2218 = vmatpush1.msra.mxu0 %v2215
    %2219 = vmatprep.subr.mxu0 0.0
    %2220 = vmatpush1.msra.mxu0 0.0
    %2221 = vmatprep.subr.mxu0 0.0
    %2222 = vmatpush1.msra.mxu0 0.0
    %2223 = vmatprep.subr.mxu0 0.0
    %2224 = vmatpush1.msra.mxu0 0.0
    %2225 = vmatprep.subr.mxu0 0.0
    %2226 = vmatpush1.msra.mxu0 0.0
    %2227 = vmatprep.subr.mxu0 0.0
    %2228 = vmatpush1.msra.mxu0 0.0
    %2229 = vmatprep.subr.mxu0 0.0
    %2230 = vmatpush1.msra.mxu0 0.0
    %2231 = vmatprep.subr.mxu0 0.0
    %2232 = vmatpush1.msra.mxu0 0.0
    %2233 = vmatprep.subr.mxu0 0.0
    %2234 = vmatpush1.msra.mxu0 0.0
    %2235 = vmatprep.subr.mxu0 0.0
    %2236 = vmatpush1.msra.mxu0 0.0
    %2237 = vmatprep.subr.mxu0 0.0
    %2238 = vmatpush1.msra.mxu0 0.0
    %2239 = vmatprep.subr.mxu0 0.0
    %2240 = vmatpush1.msra.mxu0 0.0
    %2241 = vmatprep.subr.mxu0 0.0
    %2242 = vmatpush1.msra.mxu0 0.0
    %2243 = vmatprep.subr.mxu0 0.0
    %2244 = vmatpush1.msra.mxu0 0.0
    %2245 = vmatprep.subr.mxu0 0.0
    %2246 = vmatpush1.msra.mxu0 0.0
    %2247 = vmatprep.subr.mxu0 0.0
    %2248 = vmatpush1.msra.mxu0 0.0
    %2249 = vmatprep.subr.mxu0 0.0
    %2250 = vmatpush1.msra.mxu0 0.0
    %2251 = vmatprep.subr.mxu0 0.0
    %2252 = vmatpush1.msra.mxu0 0.0
    %2253 = vmatprep.subr.mxu0 0.0
    %2254 = vmatpush1.msra.mxu0 0.0
    %2255 = vmatprep.subr.mxu0 0.0
    %2256 = vmatpush1.msra.mxu0 0.0
    %2257 = vmatprep.subr.mxu0 0.0
    %2258 = vmatpush1.msra.mxu0 0.0
    %2259 = vmatprep.subr.mxu0 0.0
    %2260 = vmatpush1.msra.mxu0 0.0
    %2261 = vmatprep.subr.mxu0 0.0
    %2262 = vmatpush1.msra.mxu0 0.0
    %2263 = vmatprep.subr.mxu0 0.0
    %2264 = vmatpush1.msra.mxu0 0.0
    %2265 = vmatprep.subr.mxu0 0.0
    %2266 = vmatpush1.msra.mxu0 0.0
    %2267 = vmatprep.subr.mxu0 0.0
    %2268 = vmatpush1.msra.mxu0 0.0
    %2269 = vmatprep.subr.mxu0 0.0
    %2270 = vmatpush1.msra.mxu0 0.0
    %2271 = vmatprep.subr.mxu0 0.0
    %2272 = vmatpush1.msra.mxu0 0.0
    %2273 = vmatprep.subr.mxu0 0.0
    %2274 = vmatpush1.msra.mxu0 0.0
    %2275 = vmatprep.subr.mxu0 0.0
    %2276 = vmatpush1.msra.mxu0 0.0
    %2277 = vmatprep.subr.mxu0 0.0
    %2278 = vmatpush1.msra.mxu0 0.0
    %2279 = vmatprep.subr.mxu0 0.0
    %2280 = vmatpush1.msra.mxu0 0.0
    %2281 = vmatprep.mubr.f32.mxu0 0.0
    %2282 = vmatmul.mubr.f32.gmra.mrb[0].mxu0 %v2213
    %v2283 = vpop.f32.mrb[0].mxu0
    %v2284 = vadd.f32 0.0, %v2283
    %v2285 = vpop.f32.mrb[0].mxu0
    %2286 = vdwg.mxu0
    %2287 = vrot.lane.b32.xlu0 %v631, 40
    %v2288 = vpop.permute.xlu0 %2287
    %v2290 = vsel %vm733, %v2209, 0
    %v2292 = vsel %vm737, %v2288, 0
    %2294 = vmatprep.subr.mxu0 0.0
    %2295 = vmatpush1.msra.mxu0 %v2292
    %2296 = vmatprep.subr.mxu0 0.0
    %2297 = vmatpush1.msra.mxu0 0.0
    %2298 = vmatprep.subr.mxu0 0.0
    %2299 = vmatpush1.msra.mxu0 0.0
    %2300 = vmatprep.subr.mxu0 0.0
    %2301 = vmatpush1.msra.mxu0 0.0
    %2302 = vmatprep.subr.mxu0 0.0
    %2303 = vmatpush1.msra.mxu0 0.0
    %2304 = vmatprep.subr.mxu0 0.0
    %2305 = vmatpush1.msra.mxu0 0.0
    %2306 = vmatprep.subr.mxu0 0.0
    %2307 = vmatpush1.msra.mxu0 0.0
    %2308 = vmatprep.subr.mxu0 0.0
    %2309 = vmatpush1.msra.mxu0 0.0
    %2310 = vmatprep.subr.mxu0 0.0
    %2311 = vmatpush1.msra.mxu0 0.0
    %2312 = vmatprep.subr.mxu0 0.0
    %2313 = vmatpush1.msra.mxu0 0.0
    %2314 = vmatprep.subr.mxu0 0.0
    %2315 = vmatpush1.msra.mxu0 0.0
    %2316 = vmatprep.subr.mxu0 0.0
    %2317 = vmatpush1.msra.mxu0 0.0
    %2318 = vmatprep.subr.mxu0 0.0
    %2319 = vmatpush1.msra.mxu0 0.0
    %2320 = vmatprep.subr.mxu0 0.0
    %2321 = vmatpush1.msra.mxu0 0.0
    %2322 = vmatprep.subr.mxu0 0.0
    %2323 = vmatpush1.msra.mxu0 0.0
    %2324 = vmatprep.subr.mxu0 0.0
    %2325 = vmatpush1.msra.mxu0 0.0
    %2326 = vmatprep.subr.mxu0 0.0
    %2327 = vmatpush1.msra.mxu0 0.0
    %2328 = vmatprep.subr.mxu0 0.0
    %2329 = vmatpush1.msra.mxu0 0.0
    %2330 = vmatprep.subr.mxu0 0.0
    %2331 = vmatpush1.msra.mxu0 0.0
    %2332 = vmatprep.subr.mxu0 0.0
    %2333 = vmatpush1.msra.mxu0 0.0
    %2334 = vmatprep.subr.mxu0 0.0
    %2335 = vmatpush1.msra.mxu0 0.0
    %2336 = vmatprep.subr.mxu0 0.0
    %2337 = vmatpush1.msra.mxu0 0.0
    %2338 = vmatprep.subr.mxu0 0.0
    %2339 = vmatpush1.msra.mxu0 0.0
    %2340 = vmatprep.subr.mxu0 0.0
    %2341 = vmatpush1.msra.mxu0 0.0
    %2342 = vmatprep.subr.mxu0 0.0
    %2343 = vmatpush1.msra.mxu0 0.0
    %2344 = vmatprep.subr.mxu0 0.0
    %2345 = vmatpush1.msra.mxu0 0.0
    %2346 = vmatprep.subr.mxu0 0.0
    %2347 = vmatpush1.msra.mxu0 0.0
    %2348 = vmatprep.subr.mxu0 0.0
    %2349 = vmatpush1.msra.mxu0 0.0
    %2350 = vmatprep.subr.mxu0 0.0
    %2351 = vmatpush1.msra.mxu0 0.0
    %2352 = vmatprep.subr.mxu0 0.0
    %2353 = vmatpush1.msra.mxu0 0.0
    %2354 = vmatprep.subr.mxu0 0.0
    %2355 = vmatpush1.msra.mxu0 0.0
    %2356 = vmatprep.subr.mxu0 0.0
    %2357 = vmatpush1.msra.mxu0 0.0
    %2358 = vmatprep.mubr.f32.mxu0 0.0
    %2359 = vmatmul.mubr.f32.gmra.mrb[0].mxu0 %v2290
    %v2360 = vpop.f32.mrb[0].mxu0
    %v2361 = vadd.f32 0.0, %v2360
    %v2362 = vpop.f32.mrb[0].mxu0
    %2363 = vdwg.mxu0
    %v2367 = vunpack.c.l.s4 1966171168
    %v2368 = vunpack.c.0.s8 %v2367
    %v2369 = vlaneseq
    %v2370 = vshrl.u32 %v2369, 7
    %v2371 = vsub.s32 %v2368, %v2370
    %v2372 = vrot.slane %v2284, %v2371
    %v2373 = vcombine.high %v2372, %v2372
    %v2375 = vunpack.c.l.s4 1966171168
    %v2376 = vunpack.c.0.s8 %v2375
    %v2377 = vlaneseq
    %v2378 = vshrl.u32 %v2377, 7
    %v2379 = vsub.s32 %v2376, %v2378
    %v2380 = vrot.slane %v2372, %v2379
    %v2382 = vunpack.c.l.s4 1966171168
    %v2383 = vunpack.c.0.s8 %v2382
    %v2384 = vlaneseq
    %v2385 = vshrl.u32 %v2384, 7
    %v2386 = vsub.s32 %v2383, %v2385
    %v2387 = vrot.slane %v2373, %v2386
    %v2388 = vcombine.high %v2380, %v2380
    %v2390 = vunpack.c.l.s4 1966171168
    %v2391 = vunpack.c.0.s8 %v2390
    %v2392 = vlaneseq
    %v2393 = vshrl.u32 %v2392, 7
    %v2394 = vsub.s32 %v2391, %v2393
    %v2395 = vrot.slane %v2361, %v2394
    %v2396 = vcombine.high %v2395, %v2395
    %v2398 = vunpack.c.l.s4 1966171168
    %v2399 = vunpack.c.0.s8 %v2398
    %v2400 = vlaneseq
    %v2401 = vshrl.u32 %v2400, 7
    %v2402 = vsub.s32 %v2399, %v2401
    %v2403 = vrot.slane %v2395, %v2402
    %v2405 = vunpack.c.l.s4 1966171168
    %v2406 = vunpack.c.0.s8 %v2405
    %v2407 = vlaneseq
    %v2408 = vshrl.u32 %v2407, 7
    %v2409 = vsub.s32 %v2406, %v2408
    %v2410 = vrot.slane %v2396, %v2409
    %v2411 = vcombine.high %v2403, %v2403
    %v2412 = vcombine.low %v2380, %v2387
    %v2413 = vcombine.low %v2388, %v2403
    %v2414 = vcombine.low %v2410, %v2411
    %v2416 = vunpack.c.l.s4 1966171168
    %v2417 = vunpack.c.0.s8 %v2416
    %v2418 = vlaneseq
    %v2419 = vshrl.u32 %v2418, 7
    %v2420 = vsub.s32 %v2417, %v2419
    %v2421 = vrot.slane %v2412, %v2420
    %v2423 = vunpack.c.l.s4 1966171168
    %v2424 = vunpack.c.0.s8 %v2423
    %v2425 = vlaneseq
    %v2426 = vshrl.u32 %v2425, 7
    %v2427 = vsub.s32 %v2424, %v2426
    %v2428 = vrot.slane %v2413, %v2427
    %v2430 = vunpack.c.l.s4 1966171168
    %v2431 = vunpack.c.0.s8 %v2430
    %v2432 = vlaneseq
    %v2433 = vshrl.u32 %v2432, 7
    %v2434 = vsub.s32 %v2431, %v2433
    %v2435 = vrot.slane %v2414, %v2434
    %v2436 = vcombine.low %v2421, %v2428
    %v2438 = vunpack.c.l.s4 1966171168
    %v2439 = vunpack.c.0.s8 %v2438
    %v2440 = vlaneseq
    %v2441 = vshrl.u32 %v2440, 7
    %v2442 = vsub.s32 %v2439, %v2441
    %v2443 = vrot.slane %v2436, %v2442
    %v2445 = vunpack.c.l.s4 1966171168
    %v2446 = vunpack.c.0.s8 %v2445
    %v2447 = vlaneseq
    %v2448 = vshrl.u32 %v2447, 7
    %v2449 = vsub.s32 %v2446, %v2448
    %v2450 = vrot.slane %v2435, %v2449
    %v2451 = vcombine.low %v2443, %v2450
    %v2452 = vsel %vm534, %v2451, 0
    %2454 = vmatprep.subr.mxu0 0.0
    %2455 = vmatpush1.msra.mxu0 %v508
    %2456 = vmatprep.subr.mxu0 0.0
    %2457 = vmatpush1.msra.mxu0 0.0
    %2458 = vmatprep.subr.mxu0 0.0
    %2459 = vmatpush1.msra.mxu0 0.0
    %2460 = vmatprep.subr.mxu0 0.0
    %2461 = vmatpush1.msra.mxu0 0.0
    %2462 = vmatprep.subr.mxu0 0.0
    %2463 = vmatpush1.msra.mxu0 0.0
    %2464 = vmatprep.subr.mxu0 0.0
    %2465 = vmatpush1.msra.mxu0 0.0
    %2466 = vmatprep.subr.mxu0 0.0
    %2467 = vmatpush1.msra.mxu0 0.0
    %2468 = vmatprep.subr.mxu0 0.0
    %2469 = vmatpush1.msra.mxu0 0.0
    %2470 = vmatprep.subr.mxu0 0.0
    %2471 = vmatpush1.msra.mxu0 0.0
    %2472 = vmatprep.subr.mxu0 0.0
    %2473 = vmatpush1.msra.mxu0 0.0
    %2474 = vmatprep.subr.mxu0 0.0
    %2475 = vmatpush1.msra.mxu0 0.0
    %2476 = vmatprep.subr.mxu0 0.0
    %2477 = vmatpush1.msra.mxu0 0.0
    %2478 = vmatprep.subr.mxu0 0.0
    %2479 = vmatpush1.msra.mxu0 0.0
    %2480 = vmatprep.subr.mxu0 0.0
    %2481 = vmatpush1.msra.mxu0 0.0
    %2482 = vmatprep.subr.mxu0 0.0
    %2483 = vmatpush1.msra.mxu0 0.0
    %2484 = vmatprep.subr.mxu0 0.0
    %2485 = vmatpush1.msra.mxu0 0.0
    %2486 = vmatprep.subr.mxu0 0.0
    %2487 = vmatpush1.msra.mxu0 0.0
    %2488 = vmatprep.subr.mxu0 0.0
    %2489 = vmatpush1.msra.mxu0 0.0
    %2490 = vmatprep.subr.mxu0 0.0
    %2491 = vmatpush1.msra.mxu0 0.0
    %2492 = vmatprep.subr.mxu0 0.0
    %2493 = vmatpush1.msra.mxu0 0.0
    %2494 = vmatprep.subr.mxu0 0.0
    %2495 = vmatpush1.msra.mxu0 0.0
    %2496 = vmatprep.subr.mxu0 0.0
    %2497 = vmatpush1.msra.mxu0 0.0
    %2498 = vmatprep.subr.mxu0 0.0
    %2499 = vmatpush1.msra.mxu0 0.0
    %2500 = vmatprep.subr.mxu0 0.0
    %2501 = vmatpush1.msra.mxu0 0.0
    %2502 = vmatprep.subr.mxu0 0.0
    %2503 = vmatpush1.msra.mxu0 0.0
    %2504 = vmatprep.subr.mxu0 0.0
    %2505 = vmatpush1.msra.mxu0 0.0
    %2506 = vmatprep.subr.mxu0 0.0
    %2507 = vmatpush1.msra.mxu0 0.0
    %2508 = vmatprep.subr.mxu0 0.0
    %2509 = vmatpush1.msra.mxu0 0.0
    %2510 = vmatprep.subr.mxu0 0.0
    %2511 = vmatpush1.msra.mxu0 0.0
    %2512 = vmatprep.subr.mxu0 0.0
    %2513 = vmatpush1.msra.mxu0 0.0
    %2514 = vmatprep.subr.mxu0 0.0
    %2515 = vmatpush1.msra.mxu0 0.0
    %2516 = vmatprep.subr.mxu0 0.0
    %2517 = vmatpush1.msra.mxu0 0.0
    %2518 = vmatprep.mubr.f32.mxu0 0.0
    %2519 = vmatmul.mubr.f32.gmra.mrb[0].mxu0 %v2452
    %v2520 = vpop.f32.mrb[0].mxu0
    %v2521 = vadd.f32 0.0, %v2520
    %v2522 = vpop.f32.mrb[0].mxu0
    %2523 = vdwg.mxu0
    %v2524 = vadd.f32 %v2031, %v2521
    %v2525 = vld [vmem:[%s14] sm:$0x1]
    %v2527 = vlaneseq
    %v2528 = vshrl.u32 %v2527, 7
    %v2529 = vsub.s32 0, %v2528
    %v2530 = vrot.slane %v2525, %v2529
    %v2532 = vadd.f32 %v2524, %v2530
    %v2534 = vcombine.high %v2532, %v2532
    %v2536 = vunpack.c.l.s4 1966171168
    %v2537 = vunpack.c.0.s8 %v2536
    %v2538 = vlaneseq
    %v2539 = vshrl.u32 %v2538, 7
    %v2540 = vsub.s32 %v2537, %v2539
    %v2541 = vrot.slane %v2532, %v2540
    %v2543 = vunpack.c.l.s4 1966171168
    %v2544 = vunpack.c.0.s8 %v2543
    %v2545 = vlaneseq
    %v2546 = vshrl.u32 %v2545, 7
    %v2547 = vsub.s32 %v2544, %v2546
    %v2548 = vrot.slane %v2534, %v2547
    %v2549 = vcombine.high %v2541, %v2541
    %v2550 = vcombine.high %v2548, %v2548
    %v2552 = vunpack.c.l.s4 1966171168
    %v2553 = vunpack.c.0.s8 %v2552
    %v2554 = vlaneseq
    %v2555 = vshrl.u32 %v2554, 7
    %v2556 = vsub.s32 %v2553, %v2555
    %v2557 = vrot.slane %v2541, %v2556
    %v2559 = vunpack.c.l.s4 1966171168
    %v2560 = vunpack.c.0.s8 %v2559
    %v2561 = vlaneseq
    %v2562 = vshrl.u32 %v2561, 7
    %v2563 = vsub.s32 %v2560, %v2562
    %v2564 = vrot.slane %v2548, %v2563
    %v2566 = vunpack.c.l.s4 1966171168
    %v2567 = vunpack.c.0.s8 %v2566
    %v2568 = vlaneseq
    %v2569 = vshrl.u32 %v2568, 7
    %v2570 = vsub.s32 %v2567, %v2569
    %v2571 = vrot.slane %v2549, %v2570
    %v2573 = vunpack.c.l.s4 1966171168
    %v2574 = vunpack.c.0.s8 %v2573
    %v2575 = vlaneseq
    %v2576 = vshrl.u32 %v2575, 7
    %v2577 = vsub.s32 %v2574, %v2576
    %v2578 = vrot.slane %v2550, %v2577
    %v2579 = vcombine.high %v2557, %v2557
    %v2580 = vcombine.high %v2571, %v2571
    %v2581 = vcombine.low %v2557, %v2571
    %v2583 = vunpack.c.l.s4 1966171168
    %v2584 = vunpack.c.0.s8 %v2583
    %v2585 = vlaneseq
    %v2586 = vshrl.u32 %v2585, 7
    %v2587 = vsub.s32 %v2584, %v2586
    %v2588 = vrot.slane %v2581, %v2587
    %v2590 = vunpack.c.l.s4 1966171168
    %v2591 = vunpack.c.0.s8 %v2590
    %v2592 = vlaneseq
    %v2593 = vshrl.u32 %v2592, 7
    %v2594 = vsub.s32 %v2591, %v2593
    %v2595 = vrot.slane %v2579, %v2594
    %v2596 = vcombine.low %v2588, %v2595
    %v2598 = vunpack.c.l.s4 1966171168
    %v2599 = vunpack.c.0.s8 %v2598
    %v2600 = vlaneseq
    %v2601 = vshrl.u32 %v2600, 7
    %v2602 = vsub.s32 %v2599, %v2601
    %v2603 = vrot.slane %v2596, %v2602
    %v2604 = vcombine.low %v2580, %v2564
    %v2606 = vunpack.c.l.s4 1966171168
    %v2607 = vunpack.c.0.s8 %v2606
    %v2608 = vlaneseq
    %v2609 = vshrl.u32 %v2608, 7
    %v2610 = vsub.s32 %v2607, %v2609
    %v2611 = vrot.slane %v2604, %v2610
    %v2613 = vunpack.c.l.s4 1966171168
    %v2614 = vunpack.c.0.s8 %v2613
    %v2615 = vlaneseq
    %v2616 = vshrl.u32 %v2615, 7
    %v2617 = vsub.s32 %v2614, %v2616
    %v2618 = vrot.slane %v2578, %v2617
    %v2619 = vcombine.low %v2611, %v2618
    %v2621 = vunpack.c.l.s4 1966171168
    %v2622 = vunpack.c.0.s8 %v2621
    %v2623 = vlaneseq
    %v2624 = vshrl.u32 %v2623, 7
    %v2625 = vsub.s32 %v2622, %v2624
    %v2626 = vrot.slane %v2619, %v2625
    %vm2629 = vcmask 256000
    %v2630 = vsel %vm2629, %v2603, 0.0
    %v2631 = vrot.slane %v2630, 4
    %v2632 = vadd.f32 %v2630, %v2631
    %v2633 = vrot.slane %v2632, 2
    %v2634 = vadd.f32 %v2632, %v2633
    %v2635 = vrot.slane %v2634, 1
    %v2636 = vadd.f32 %v2634, %v2635
    %v2637 = vsel %vm2629, %v2626, 0.0
    %v2638 = vrot.slane %v2637, 4
    %v2639 = vadd.f32 %v2637, %v2638
    %v2640 = vrot.slane %v2639, 2
    %v2641 = vadd.f32 %v2639, %v2640
    %v2642 = vrot.slane %v2641, 1
    %v2643 = vadd.f32 %v2641, %v2642
    %v2644 = vrcp.pop 3.0
    %v2645 = vmul.f32 %v2636, %v2644
    %v2646 = vmul.f32 %v2643, %v2644
    %v2647 = vpack.c.bf16 %v2645, %v2645
    %v2648 = vpack.c.bf16 %v2646, %v2646
    %v2649 = vld [vmem:[#allocation15] sm:$0xff]
    %v2650 = vld [vmem:[#allocation15 + $0x8] sm:$0xff]
    %v2651 = vld [vmem:[#allocation15 + $0x10] sm:$0xff]
    %v2652 = vld [vmem:[#allocation15 + $0x18] sm:$0xff]
    %v2653 = vld [vmem:[#allocation15 + $0x20] sm:$0xf]
    %v2654 = vld [vmem:[#allocation15 + $0x24] sm:$0xff]
    %v2655 = vld [vmem:[#allocation15 + $0x2c] sm:$0xff]
    %v2656 = vld [vmem:[#allocation15 + $0x34] sm:$0xff]
    %v2657 = vld [vmem:[#allocation15 + $0x3c] sm:$0xff]
    %v2658 = vld [vmem:[#allocation15 + $0x44] sm:$0xf]
    %v2659 = vld [vmem:[#allocation15 + $0x48] sm:$0xff]
    %v2660 = vld [vmem:[#allocation15 + $0x50] sm:$0xff]
    %v2661 = vld [vmem:[#allocation15 + $0x58] sm:$0xff]
    %v2662 = vld [vmem:[#allocation15 + $0x60] sm:$0xff]
    %v2663 = vld [vmem:[#allocation15 + $0x68] sm:$0xf]
    %v2664 = vld [vmem:[#allocation15 + $0x6c] sm:$0xff]
    %v2665 = vld [vmem:[#allocation15 + $0x74] sm:$0xff]
    %v2666 = vld [vmem:[#allocation15 + $0x7c] sm:$0xff]
    %v2667 = vld [vmem:[#allocation15 + $0x84] sm:$0xff]
    %v2668 = vld [vmem:[#allocation15 + $0x8c] sm:$0xf]
    %v2669 = vld [vmem:[%s16] sm:$0xff]
    %v2670 = vld [vmem:[%s16 + $0x8] sm:$0x1]
    %v2673 = vlaneseq
    %v2674 = vshrl.u32 %v2673, 7
    %v2675 = vsub.s32 0, %v2674
    %v2676 = vrot.slane %v2669, %v2675
    %v2677 = vlaneseq
    %v2678 = vshrl.u32 %v2677, 7
    %v2679 = vsub.s32 1, %v2678
    %v2680 = vrot.slane %v2669, %v2679
    %v2681 = vlaneseq
    %v2682 = vshrl.u32 %v2681, 7
    %v2683 = vsub.s32 2, %v2682
    %v2684 = vrot.slane %v2669, %v2683
    %v2685 = vlaneseq
    %v2686 = vshrl.u32 %v2685, 7
    %v2687 = vsub.s32 3, %v2686
    %v2688 = vrot.slane %v2669, %v2687
    %v2689 = vlaneseq
    %v2690 = vshrl.u32 %v2689, 7
    %v2691 = vsub.s32 4, %v2690
    %v2692 = vrot.slane %v2669, %v2691
    %v2693 = vlaneseq
    %v2694 = vshrl.u32 %v2693, 7
    %v2695 = vsub.s32 5, %v2694
    %v2696 = vrot.slane %v2669, %v2695
    %v2697 = vlaneseq
    %v2698 = vshrl.u32 %v2697, 7
    %v2699 = vsub.s32 6, %v2698
    %v2700 = vrot.slane %v2669, %v2699
    %v2701 = vlaneseq
    %v2702 = vshrl.u32 %v2701, 7
    %v2703 = vsub.s32 7, %v2702
    %v2704 = vrot.slane %v2669, %v2703
    %v2705 = vlaneseq
    %v2706 = vshrl.u32 %v2705, 7
    %v2707 = vsub.s32 0, %v2706
    %v2708 = vrot.slane %v2670, %v2707
    %v2720 = vunpack.c.l.b16 %v2647
    %v2721 = vunpack.c.l.b16 %v2648
    %vm2722 = vcmask 1041409
    %v2723 = vsel %vm2722, %v2721, %v2720
    %v2724 = vpack.c.b16 %v2723, %v2723
    %v2745 = vunpack.c.l.b16 %v2649
    %v2746 = vunpack.c.h.b16 %v2649
    %v2747 = vunpack.c.l.b16 %v2650
    %v2748 = vunpack.c.h.b16 %v2650
    %v2749 = vunpack.c.l.b16 %v2651
    %v2750 = vunpack.c.h.b16 %v2651
    %v2751 = vunpack.c.l.b16 %v2652
    %v2752 = vunpack.c.h.b16 %v2652
    %v2753 = vunpack.c.l.b16 %v2653
    %v2754 = vunpack.c.l.b16 %v2654
    %v2755 = vunpack.c.h.b16 %v2654
    %v2756 = vunpack.c.l.b16 %v2655
    %v2757 = vunpack.c.h.b16 %v2655
    %v2758 = vunpack.c.l.b16 %v2656
    %v2759 = vunpack.c.h.b16 %v2656
    %v2760 = vunpack.c.l.b16 %v2657
    %v2761 = vunpack.c.h.b16 %v2657
    %v2762 = vunpack.c.l.b16 %v2658
    %v2763 = vunpack.c.l.b16 %v2659
    %v2764 = vunpack.c.h.b16 %v2659
    %v2765 = vunpack.c.l.b16 %v2660
    %v2766 = vunpack.c.h.b16 %v2660
    %v2767 = vunpack.c.l.b16 %v2661
    %v2768 = vunpack.c.h.b16 %v2661
    %v2769 = vunpack.c.l.b16 %v2662
    %v2770 = vunpack.c.h.b16 %v2662
    %v2771 = vunpack.c.l.b16 %v2663
    %v2772 = vunpack.c.l.b16 %v2664
    %v2773 = vunpack.c.h.b16 %v2664
    %v2774 = vunpack.c.l.b16 %v2665
    %v2775 = vunpack.c.h.b16 %v2665
    %v2776 = vunpack.c.l.b16 %v2666
    %v2777 = vunpack.c.h.b16 %v2666
    %v2778 = vunpack.c.l.b16 %v2667
    %v2779 = vunpack.c.h.b16 %v2667
    %v2780 = vunpack.c.l.b16 %v2668
    %v2781 = vpack.c.b16 %v2754, %v2745
    %v2782 = vpack.c.b16 %v2755, %v2746
    %v2783 = vpack.c.b16 %v2756, %v2747
    %v2784 = vpack.c.b16 %v2757, %v2748
    %v2785 = vpack.c.b16 %v2758, %v2749
    %v2786 = vpack.c.b16 %v2759, %v2750
    %v2787 = vpack.c.b16 %v2760, %v2751
    %v2788 = vpack.c.b16 %v2761, %v2752
    %v2789 = vpack.c.b16 %v2762, %v2753
    %v2790 = vpack.c.b16 %v2772, %v2763
    %v2791 = vpack.c.b16 %v2773, %v2764
    %v2792 = vpack.c.b16 %v2774, %v2765
    %v2793 = vpack.c.b16 %v2775, %v2766
    %v2794 = vpack.c.b16 %v2776, %v2767
    %v2795 = vpack.c.b16 %v2777, %v2768
    %v2796 = vpack.c.b16 %v2778, %v2769
    %v2797 = vpack.c.b16 %v2779, %v2770
    %v2798 = vpack.c.b16 %v2780, %v2771
    %v2818 = vsel %vm316, %v2724, 0
    %2820 = vmatprep.subr.bf16.mxu0 %v2782
    %2821 = vmatpush1.bf16.msra.mxu0 %v2781
    %2822 = vmatprep.subr.bf16.mxu0 %v2791
    %2823 = vmatpush1.bf16.msra.mxu0 %v2790
    %2824 = vmatprep.subr.bf16.mxu0 0
    %2825 = vmatpush1.bf16.msra.mxu0 0
    %2826 = vmatprep.subr.bf16.mxu0 0
    %2827 = vmatpush1.bf16.msra.mxu0 0
    %2828 = vmatprep.subr.bf16.mxu0 0
    %2829 = vmatpush1.bf16.msra.mxu0 0
    %2830 = vmatprep.subr.bf16.mxu0 0
    %2831 = vmatpush1.bf16.msra.mxu0 0
    %2832 = vmatprep.subr.bf16.mxu0 0
    %2833 = vmatpush1.bf16.msra.mxu0 0
    %2834 = vmatprep.subr.bf16.mxu0 0
    %2835 = vmatpush1.bf16.msra.mxu0 0
    %2836 = vmatprep.subr.bf16.mxu0 0
    %2837 = vmatpush1.bf16.msra.mxu0 0
    %2838 = vmatprep.subr.bf16.mxu0 0
    %2839 = vmatpush1.bf16.msra.mxu0 0
    %2840 = vmatprep.subr.bf16.mxu0 0
    %2841 = vmatpush1.bf16.msra.mxu0 0
    %2842 = vmatprep.subr.bf16.mxu0 0
    %2843 = vmatpush1.bf16.msra.mxu0 0
    %2844 = vmatprep.subr.bf16.mxu0 0
    %2845 = vmatpush1.bf16.msra.mxu0 0
    %2846 = vmatprep.subr.bf16.mxu0 0
    %2847 = vmatpush1.bf16.msra.mxu0 0
    %2848 = vmatprep.subr.bf16.mxu0 0
    %2849 = vmatpush1.bf16.msra.mxu0 0
    %2850 = vmatprep.subr.bf16.mxu0 0
    %2851 = vmatpush1.bf16.msra.mxu0 0
    %2852 = vmatprep.mubr.bf16.mxu0 0
    %2853 = vmatmul.mubr.bf16.gmra.mrb[0].mxu0 %v2818
    %v2854 = vpop.f32.mrb[0].mxu0
    %v2855 = vadd.f32 %v2676, %v2854
    %v2856 = vpop.f32.mrb[0].mxu0
    %v2857 = vadd.f32 %v2680, %v2856
    %v2858 = vpop.f32.mrb[0].mxu0
    %v2859 = vpop.f32.mrb[0].mxu0
    %2860 = vdwg.mxu0
    %2861 = vmatprep.subr.bf16.mxu0 %v2784
    %2862 = vmatpush1.bf16.msra.mxu0 %v2783
    %2863 = vmatprep.subr.bf16.mxu0 %v2793
    %2864 = vmatpush1.bf16.msra.mxu0 %v2792
    %2865 = vmatprep.subr.bf16.mxu0 0
    %2866 = vmatpush1.bf16.msra.mxu0 0
    %2867 = vmatprep.subr.bf16.mxu0 0
    %2868 = vmatpush1.bf16.msra.mxu0 0
    %2869 = vmatprep.subr.bf16.mxu0 0
    %2870 = vmatpush1.bf16.msra.mxu0 0
    %2871 = vmatprep.subr.bf16.mxu0 0
    %2872 = vmatpush1.bf16.msra.mxu0 0
    %2873 = vmatprep.subr.bf16.mxu0 0
    %2874 = vmatpush1.bf16.msra.mxu0 0
    %2875 = vmatprep.subr.bf16.mxu0 0
    %2876 = vmatpush1.bf16.msra.mxu0 0
    %2877 = vmatprep.subr.bf16.mxu0 0
    %2878 = vmatpush1.bf16.msra.mxu0 0
    %2879 = vmatprep.subr.bf16.mxu0 0
    %2880 = vmatpush1.bf16.msra.mxu0 0
    %2881 = vmatprep.subr.bf16.mxu0 0
    %2882 = vmatpush1.bf16.msra.mxu0 0
    %2883 = vmatprep.subr.bf16.mxu0 0
    %2884 = vmatpush1.bf16.msra.mxu0 0
    %2885 = vmatprep.subr.bf16.mxu0 0
    %2886 = vmatpush1.bf16.msra.mxu0 0
    %2887 = vmatprep.subr.bf16.mxu0 0
    %2888 = vmatpush1.bf16.msra.mxu0 0
    %2889 = vmatprep.subr.bf16.mxu0 0
    %2890 = vmatpush1.bf16.msra.mxu0 0
    %2891 = vmatprep.subr.bf16.mxu0 0
    %2892 = vmatpush1.bf16.msra.mxu0 0
    %2893 = vmatprep.mubr.bf16.mxu0 0
    %2894 = vmatmul.mubr.bf16.gmra.mrb[0].mxu0 %v2818
    %v2895 = vpop.f32.mrb[0].mxu0
    %v2896 = vadd.f32 %v2684, %v2895
    %v2897 = vpop.f32.mrb[0].mxu0
    %v2898 = vadd.f32 %v2688, %v2897
    %v2899 = vpop.f32.mrb[0].mxu0
    %v2900 = vpop.f32.mrb[0].mxu0
    %2901 = vdwg.mxu0
    %2902 = vmatprep.subr.bf16.mxu0 %v2786
    %2903 = vmatpush1.bf16.msra.mxu0 %v2785
    %2904 = vmatprep.subr.bf16.mxu0 %v2795
    %2905 = vmatpush1.bf16.msra.mxu0 %v2794
    %2906 = vmatprep.subr.bf16.mxu0 0
    %2907 = vmatpush1.bf16.msra.mxu0 0
    %2908 = vmatprep.subr.bf16.mxu0 0
    %2909 = vmatpush1.bf16.msra.mxu0 0
    %2910 = vmatprep.subr.bf16.mxu0 0
    %2911 = vmatpush1.bf16.msra.mxu0 0
    %2912 = vmatprep.subr.bf16.mxu0 0
    %2913 = vmatpush1.bf16.msra.mxu0 0
    %2914 = vmatprep.subr.bf16.mxu0 0
    %2915 = vmatpush1.bf16.msra.mxu0 0
    %2916 = vmatprep.subr.bf16.mxu0 0
    %2917 = vmatpush1.bf16.msra.mxu0 0
    %2918 = vmatprep.subr.bf16.mxu0 0
    %2919 = vmatpush1.bf16.msra.mxu0 0
    %2920 = vmatprep.subr.bf16.mxu0 0
    %2921 = vmatpush1.bf16.msra.mxu0 0
    %2922 = vmatprep.subr.bf16.mxu0 0
    %2923 = vmatpush1.bf16.msra.mxu0 0
    %2924 = vmatprep.subr.bf16.mxu0 0
    %2925 = vmatpush1.bf16.msra.mxu0 0
    %2926 = vmatprep.subr.bf16.mxu0 0
    %2927 = vmatpush1.bf16.msra.mxu0 0
    %2928 = vmatprep.subr.bf16.mxu0 0
    %2929 = vmatpush1.bf16.msra.mxu0 0
    %2930 = vmatprep.subr.bf16.mxu0 0
    %2931 = vmatpush1.bf16.msra.mxu0 0
    %2932 = vmatprep.subr.bf16.mxu0 0
    %2933 = vmatpush1.bf16.msra.mxu0 0
    %2934 = vmatprep.mubr.bf16.mxu0 0
    %2935 = vmatmul.mubr.bf16.gmra.mrb[0].mxu0 %v2818
    %v2936 = vpop.f32.mrb[0].mxu0
    %v2937 = vadd.f32 %v2692, %v2936
    %v2938 = vpop.f32.mrb[0].mxu0
    %v2939 = vadd.f32 %v2696, %v2938
    %v2940 = vpop.f32.mrb[0].mxu0
    %v2941 = vpop.f32.mrb[0].mxu0
    %2942 = vdwg.mxu0
    %2943 = vmatprep.subr.bf16.mxu0 %v2788
    %2944 = vmatpush1.bf16.msra.mxu0 %v2787
    %2945 = vmatprep.subr.bf16.mxu0 %v2797
    %2946 = vmatpush1.bf16.msra.mxu0 %v2796
    %2947 = vmatprep.subr.bf16.mxu0 0
    %2948 = vmatpush1.bf16.msra.mxu0 0
    %2949 = vmatprep.subr.bf16.mxu0 0
    %2950 = vmatpush1.bf16.msra.mxu0 0
    %2951 = vmatprep.subr.bf16.mxu0 0
    %2952 = vmatpush1.bf16.msra.mxu0 0
    %2953 = vmatprep.subr.bf16.mxu0 0
    %2954 = vmatpush1.bf16.msra.mxu0 0
    %2955 = vmatprep.subr.bf16.mxu0 0
    %2956 = vmatpush1.bf16.msra.mxu0 0
    %2957 = vmatprep.subr.bf16.mxu0 0
    %2958 = vmatpush1.bf16.msra.mxu0 0
    %2959 = vmatprep.subr.bf16.mxu0 0
    %2960 = vmatpush1.bf16.msra.mxu0 0
    %2961 = vmatprep.subr.bf16.mxu0 0
    %2962 = vmatpush1.bf16.msra.mxu0 0
    %2963 = vmatprep.subr.bf16.mxu0 0
    %2964 = vmatpush1.bf16.msra.mxu0 0
    %2965 = vmatprep.subr.bf16.mxu0 0
    %2966 = vmatpush1.bf16.msra.mxu0 0
    %2967 = vmatprep.subr.bf16.mxu0 0
    %2968 = vmatpush1.bf16.msra.mxu0 0
    %2969 = vmatprep.subr.bf16.mxu0 0
    %2970 = vmatpush1.bf16.msra.mxu0 0
    %2971 = vmatprep.subr.bf16.mxu0 0
    %2972 = vmatpush1.bf16.msra.mxu0 0
    %2973 = vmatprep.subr.bf16.mxu0 0
    %2974 = vmatpush1.bf16.msra.mxu0 0
    %2975 = vmatprep.mubr.bf16.mxu0 0
    %2976 = vmatmul.mubr.bf16.gmra.mrb[0].mxu0 %v2818
    %v2977 = vpop.f32.mrb[0].mxu0
    %v2978 = vadd.f32 %v2700, %v2977
    %v2979 = vpop.f32.mrb[0].mxu0
    %v2980 = vadd.f32 %v2704, %v2979
    %v2981 = vpop.f32.mrb[0].mxu0
    %v2982 = vpop.f32.mrb[0].mxu0
    %2983 = vdwg.mxu0
    %2984 = vmatprep.subr.bf16.mxu0 0
    %2985 = vmatpush1.bf16.msra.mxu0 %v2789
    %2986 = vmatprep.subr.bf16.mxu0 0
    %2987 = vmatpush1.bf16.msra.mxu0 %v2798
    %2988 = vmatprep.subr.bf16.mxu0 0
    %2989 = vmatpush1.bf16.msra.mxu0 0
    %2990 = vmatprep.subr.bf16.mxu0 0
    %2991 = vmatpush1.bf16.msra.mxu0 0
    %2992 = vmatprep.subr.bf16.mxu0 0
    %2993 = vmatpush1.bf16.msra.mxu0 0
    %2994 = vmatprep.subr.bf16.mxu0 0
    %2995 = vmatpush1.bf16.msra.mxu0 0
    %2996 = vmatprep.subr.bf16.mxu0 0
    %2997 = vmatpush1.bf16.msra.mxu0 0
    %2998 = vmatprep.subr.bf16.mxu0 0
    %2999 = vmatpush1.bf16.msra.mxu0 0
    %3000 = vmatprep.subr.bf16.mxu0 0
    %3001 = vmatpush1.bf16.msra.mxu0 0
    %3002 = vmatprep.subr.bf16.mxu0 0
    %3003 = vmatpush1.bf16.msra.mxu0 0
    %3004 = vmatprep.subr.bf16.mxu0 0
    %3005 = vmatpush1.bf16.msra.mxu0 0
    %3006 = vmatprep.subr.bf16.mxu0 0
    %3007 = vmatpush1.bf16.msra.mxu0 0
    %3008 = vmatprep.subr.bf16.mxu0 0
    %3009 = vmatpush1.bf16.msra.mxu0 0
    %3010 = vmatprep.subr.bf16.mxu0 0
    %3011 = vmatpush1.bf16.msra.mxu0 0
    %3012 = vmatprep.subr.bf16.mxu0 0
    %3013 = vmatpush1.bf16.msra.mxu0 0
    %3014 = vmatprep.subr.bf16.mxu0 0
    %3015 = vmatpush1.bf16.msra.mxu0 0
    %3016 = vmatprep.mubr.bf16.mxu0 0
    %3017 = vmatmul.mubr.bf16.gmra.mrb[0].mxu0 %v2818
    %v3018 = vpop.f32.mrb[0].mxu0
    %v3019 = vadd.f32 %v2708, %v3018
    %v3020 = vpop.f32.mrb[0].mxu0
    %v3021 = vpop.f32.mrb[0].mxu0
    %v3022 = vpop.f32.mrb[0].mxu0
    %3023 = vdwg.mxu0
    %v3033 = vcombine.low %v2855, %v2857
    %v3034 = vcombine.low %v2896, %v2898
    %v3036 = vunpack.c.l.s4 1983009808
    %v3037 = vunpack.c.0.s8 %v3036
    %v3038 = vlaneseq
    %v3039 = vshrl.u32 %v3038, 7
    %v3040 = vsub.s32 %v3037, %v3039
    %v3041 = vrot.slane %v3033, %v3040
    %v3043 = vunpack.c.l.s4 1983009808
    %v3044 = vunpack.c.0.s8 %v3043
    %v3045 = vlaneseq
    %v3046 = vshrl.u32 %v3045, 7
    %v3047 = vsub.s32 %v3044, %v3046
    %v3048 = vrot.slane %v3034, %v3047
    %v3049 = vcombine.low %v3041, %v3048
    %v3050 = vcombine.low %v2937, %v2939
    %v3051 = vcombine.low %v2978, %v2980
    %v3053 = vunpack.c.l.s4 1983009808
    %v3054 = vunpack.c.0.s8 %v3053
    %v3055 = vlaneseq
    %v3056 = vshrl.u32 %v3055, 7
    %v3057 = vsub.s32 %v3054, %v3056
    %v3058 = vrot.slane %v3050, %v3057
    %v3060 = vunpack.c.l.s4 1983009808
    %v3061 = vunpack.c.0.s8 %v3060
    %v3062 = vlaneseq
    %v3063 = vshrl.u32 %v3062, 7
    %v3064 = vsub.s32 %v3061, %v3063
    %v3065 = vrot.slane %v3051, %v3064
    %v3066 = vcombine.low %v3058, %v3065
    %v3068 = vunpack.c.l.s4 1983009808
    %v3069 = vunpack.c.0.s8 %v3068
    %v3070 = vlaneseq
    %v3071 = vshrl.u32 %v3070, 7
    %v3072 = vsub.s32 %v3069, %v3071
    %v3073 = vrot.slane %v3019, %v3072
    %3077 = vst [vmem:[%s17] sm:$0xff] %v3049
    %3078 = vst [vmem:[%s17 + $0x8] sm:$0xff] %v3066
    %3079 = vst [vmem:[%s17 + $0x10] sm:$0x3] %v3073
    // Predicated region
    $region106: #{hypernetwork_forward.1} parent=1 // pred_check
      _
    $region107: #{hypernetwork_forward.1} parent=1 // pred_check_branch
      %3081 = sbr.rel (0) target = $region109
    $region108: #{hypernetwork_forward.1} parent=1 // pred_region
      _
    $region109: #{hypernetwork_forward.1} parent=1 // pred_fallthru
      _
    // Predicated region
    $region110: #{hypernetwork_forward.1} parent=1 // pred_check
      _
    $region111: #{hypernetwork_forward.1} parent=1 // pred_check_branch
      %3083 = sbr.rel (0) target = $region113
    $region112: #{hypernetwork_forward.1} parent=1 // pred_region
      _
    $region113: #{hypernetwork_forward.1} parent=1 // pred_fallthru
      _
    %3084 = vsyncpa [#allocation3], 1
    %3085 = vsyncpa [#allocation5], 1
    %3086 = vsyncpa [#allocation8], 1
    %3087 = vsyncpa [#allocation11], 1
    %3088 = vsyncpa [#allocation14], 1

</llo_original>
